<compile_context>
chip_gen: v7x
topology: tpu7x:2x2x1
jax: 0.10.0
libtpu: 0.0.40
codegen_flags: <defaults>
</compile_context>

<pallas_src>
import jax
import jax.numpy as jnp
from jax.experimental import pallas as pl
from jax.experimental.pallas import tpu as pltpu

GRAD_CLIP = 0.01

_MIN_LANES = 128
_BYTES_PER_BLOCK = 4 * 1024 * 1024      # ~4 MiB per block per array
_VMEM_LIMIT_BYTES = 32 * 1024 * 1024    # in+out double-buffered fits with headroom
_SMALL_GRAD_BYTES = 1 * 1024 * 1024     # below this, fused jnp.where beats a launch


# ---------------- Pallas kernel (backward only) ----------------

def _clip_kernel(g_ref, o_ref):
    g = g_ref[...]
    # f32 compare for exact 0.01-threshold parity on bf16/f16 grads.
    # NaN fails the <= test, so NaNs are zeroed by the same single select.
    keep = jnp.abs(g.astype(jnp.float32)) <= GRAD_CLIP
    o_ref[...] = jnp.where(keep, g, jnp.zeros_like(g))


# ---------------- helpers ----------------

def _cdiv(a, b):
    return -(-a // b)


def _round_up(a, b):
    return _cdiv(a, b) * b


def _clip_where(g):
    """XLA-fused fallback for small grads / ragged tails."""
    keep = jnp.abs(g.astype(jnp.float32)) <= GRAD_CLIP
    return jnp.where(keep, g, jnp.zeros_like(g))


def _clip_pallas_flat(flat):
    """Clip a 1-D gradient whose size is a positive multiple of 128."""
    n = flat.shape[0]
    itemsize = jnp.dtype(flat.dtype).itemsize
    sub = max(8, 32 // itemsize)          # f32 -> 8, bf16/f16 -> 16, int8/fp8 -> 32

    # Widest lane-dense factorization that divides n (store/DMA efficiency).
    lanes = _MIN_LANES
    for cand in (1024, 512, 256):
        if n % (cand * sub) == 0:
            lanes = cand
            break
    rows = n // lanes
    slab = flat.reshape(rows, lanes)

    # Constant bytes-per-block across dtypes and lane widths.
    target_rows = max(sub, (_BYTES_PER_BLOCK // (lanes * itemsize)) // sub * sub)
    if rows <= target_rows:
        block_rows = rows                 # block == full array dim (always legal)
    else:
        num_blocks = _cdiv(rows, target_rows)
        # Balance blocks so the trailing one isn't tiny (helps v7x megacore).
        block_rows = min(target_rows, _round_up(_cdiv(rows, num_blocks), sub))
    grid = (_cdiv(rows, block_rows),)

    out = pl.pallas_call(
        _clip_kernel,
        out_shape=jax.ShapeDtypeStruct((rows, lanes), slab.dtype),
        grid=grid,
        in_specs=[pl.BlockSpec((block_rows, lanes), lambda i: (i, 0))],
        out_specs=pl.BlockSpec((block_rows, lanes), lambda i: (i, 0)),
        input_output_aliases={0: 0},      # cotangent is dead after clipping
        cost_estimate=pl.CostEstimate(
            flops=3 * n, transcendentals=0, bytes_accessed=2 * n * itemsize),
        compiler_params=pltpu.CompilerParams(
            dimension_semantics=("parallel",),
            vmem_limit_bytes=_VMEM_LIMIT_BYTES),
    )(slab)
    return out.reshape(-1)


def _clip_grad(g):
    """Apply gradient clipping to an arbitrarily-shaped gradient."""
    n = g.size
    if n == 0:
        return g
    if n * jnp.dtype(g.dtype).itemsize < _SMALL_GRAD_BYTES:
        # Small grads: let XLA fuse the select into neighbouring backward ops.
        return _clip_where(g)

    orig_shape = g.shape
    flat = g.reshape(-1)
    n_tail = n % _MIN_LANES
    n_main = n - n_tail

    main_out = _clip_pallas_flat(flat[:n_main])
    if n_tail:
        tail_out = _clip_where(flat[n_main:])
        flat_out = jnp.concatenate([main_out, tail_out])
    else:
        flat_out = main_out
    return flat_out.reshape(orig_shape)


# ---------------- custom_vjp wrapper (the module) ----------------

@jax.custom_vjp
def gradient_clip(x):
    """Forward pass of GradientClip: identity (no kernel, no HBM traffic)."""
    return x


def _gradient_clip_fwd(x):
    return x, None


def _gradient_clip_bwd(_, g):
    return (_clip_grad(g),)


gradient_clip.defvjp(_gradient_clip_fwd, _gradient_clip_bwd)


# ---------------- self-test ----------------

if __name__ == "__main__":
    key = jax.random.PRNGKey(0)

    def ref_clip(m):
        z = jnp.zeros_like(m)
        out = jnp.where(jnp.abs(m.astype(jnp.float32)) > GRAD_CLIP, z, m)
        return jnp.where(jnp.isnan(out.astype(jnp.float32)), z, out)

    # 1) Module-sized input: forward identity + small-grad (fused) backward path.
    x_small = jax.random.normal(key, (2, 4, 16, 16), dtype=jnp.float32)
    y = jax.block_until_ready(gradient_clip(x_small))
    assert y.shape == x_small.shape and y.dtype == x_small.dtype
    assert jnp.allclose(y, x_small), "forward must be identity"

    m_small = jnp.linspace(0.0, 0.05, x_small.size, dtype=jnp.float32).reshape(x_small.shape)
    m_small = m_small.at[0, 0, 0, 3].set(jnp.nan)
    g_small = jax.block_until_ready(
        jax.grad(lambda inp: jnp.sum(gradient_clip(inp) * m_small))(x_small))
    assert not jnp.any(jnp.isnan(g_small))
    assert jnp.allclose(g_small, ref_clip(m_small)), "small-grad backward mismatch"

    # 2) Large 128-aligned gradient -> Pallas kernel (grid > 1, multi-block).
    x_big = jax.random.normal(key, (2, 4, 512, 512), dtype=jnp.float32)
    m_big = jnp.linspace(0.0, 0.05, x_big.size, dtype=jnp.float32).reshape(x_big.shape)
    m_big = m_big.at[0, 0, 0, 3].set(jnp.nan)
    g_big = jax.block_until_ready(
        jax.grad(lambda inp: jnp.sum(gradient_clip(inp) * m_big))(x_big))
    assert not jnp.any(jnp.isnan(g_big)), "NaNs must be zeroed"
    assert jnp.allclose(g_big, ref_clip(m_big)), "large-grad backward mismatch"

    # 3) Ragged gradient (size % 128 != 0, > 1 MiB) -> Pallas prefix + jnp tail.
    x_rag = jax.random.normal(jax.random.PRNGKey(1), (3, 5, 7, 5003), dtype=jnp.float32)
    m_rag = jnp.linspace(-0.05, 0.05, x_rag.size, dtype=jnp.float32).reshape(x_rag.shape)
    g_rag = jax.block_until_ready(
        jax.grad(lambda inp: jnp.sum(gradient_clip(inp) * m_rag))(x_rag))
    assert jnp.allclose(g_rag, ref_clip(m_rag)), "ragged backward mismatch"

    # 4) bf16 gradient -> Pallas path with f32-threshold compare.
    x_bf = jax.random.normal(key, (2, 4, 256, 256), dtype=jnp.float32).astype(jnp.bfloat16)
    m_bf = (jnp.linspace(-0.05, 0.05, x_bf.size, dtype=jnp.float32)
            .reshape(x_bf.shape).astype(jnp.bfloat16))
    g_bf = jax.block_until_ready(
        jax.grad(lambda inp: jnp.sum((gradient_clip(inp) * m_bf).astype(jnp.float32)))(x_bf))
    g_bf_ref = jnp.where(jnp.abs(m_bf.astype(jnp.float32)) <= GRAD_CLIP,
                         m_bf, jnp.zeros_like(m_bf))
    assert jnp.array_equal(g_bf, g_bf_ref), "bf16 backward mismatch"

    print("KERNEL_OK")
</pallas_src>

<mosaic_0001>
module attributes {stable_mosaic.version = 11 : i64} {
  func.func @_clip_kernel(%arg0: i32, %arg1: memref<1024x1024xf32, #tpu.memory_space<vmem>>, %arg2: memref<1024x1024xf32, #tpu.memory_space<vmem>>) attributes {dimension_semantics = [#tpu.dimension_semantics<parallel>], iteration_bounds = array<i64: 2>, scalar_prefetch = 0 : i64, scratch_operands = 0 : i64, tpu.core_type = #tpu.core_type<tc>, window_params = [{transform_indices = @transform_0, window_bounds = array<i64: 1024, 1024>}, {transform_indices = @transform_1, window_bounds = array<i64: 1024, 1024>}]} {
    %c0 = arith.constant 0 : index
    %c0_0 = arith.constant 0 : index
    %0 = vector.load %arg1[%c0, %c0_0] : memref<1024x1024xf32, #tpu.memory_space<vmem>>, vector<1024x1024xf32>
    %1 = math.absf %0 : vector<1024x1024xf32>
    %cst = arith.constant 0.00999999977 : f32
    %2 = vector.broadcast %cst : f32 to vector<1024x1024xf32>
    %3 = arith.cmpf ole, %1, %2 : vector<1024x1024xf32>
    %cst_1 = arith.constant 0.000000e+00 : f32
    %4 = vector.broadcast %cst_1 : f32 to vector<1024x1024xf32>
    %5 = arith.select %3, %0, %4 : vector<1024x1024xi1>, vector<1024x1024xf32>
    %c0_2 = arith.constant 0 : index
    %c0_3 = arith.constant 0 : index
    %6 = vector.load %arg2[%c0_2, %c0_3] : memref<1024x1024xf32, #tpu.memory_space<vmem>>, vector<1024x1024xf32>
    tpu.vector_store %arg2[%c0_2, %c0_3], %5 {strides = array<i32>} : memref<1024x1024xf32, #tpu.memory_space<vmem>>, vector<1024x1024xf32>,
    return
  }
  func.func @transform_0(%arg0: i32) -> (i32, i32) {
    %c0_i32 = arith.constant 0 : i32
    %c0_i32_0 = arith.constant 0 : i32
    return %arg0, %c0_i32 : i32, i32
  }
  func.func @transform_1(%arg0: i32) -> (i32, i32) {
    %c0_i32 = arith.constant 0 : i32
    %c0_i32_0 = arith.constant 0 : i32
    return %arg0, %c0_i32 : i32, i32
  }
}

</mosaic_0001>

<llo_original>
// kernel: tpu_custom_call.1
$region0: #{tpu_custom_call.1}
  #allocation0 [shape = 'u32[]', space=smem, size = 0x4, offset = 0x4, fixed_abs, tag = 'smem constant byte address 0x4 - core index']
  #allocation1 [shape = 'u32[144,128]{1,0:T(1,128)}', space=vmem, size = 0x12000, scoped, tag = 'internal scratch']
  %s0 = inlined_call_operand.hbm [shape: f32[2048,1024], index: 0, kind: input, shape index: {}, may-alias: {0,1}]
  %s1 = inlined_call_operand.hbm [shape: f32[2048,1024], index: 1, kind: output, shape index: {}, may-alias: {0,1}]
  %s2 = sld [smem:[#allocation0]]
  $region41: #{tpu_custom_call.1} parent=0
    _
  %s4 = ssub.s32 1, %s2
  %s5 = scalar_select 0, %s4, %s2
  $region1: #{tpu_custom_call.1} parent=0
    #allocation2 [shape = 'u8[8388608]{0}', space=vmem, size = 0x800000, scoped, tag = 'input window, operand 0']
    #allocation3 [shape = 's32[2]{0}', space=sflag, size = 0x8, scoped, tag = 'scoped memory for tpu_custom_call.1']
    #allocation4 [shape = 's32[2]{0}', space=sflag, size = 0x8, scoped, tag = 'scoped memory for tpu_custom_call.1']
    #allocation5 [shape = 'u8[8388608]{0}', space=vmem, size = 0x800000, scoped, tag = 'output window, operand 0']
    %6 = vsyncpa [#allocation3], 0
    %s7 = scalar_lea.sflag [#allocation3], 1
    %8 = vsyncpa %s7, 0
    %9 = vsyncpa [#allocation4], 0
    %s10 = scalar_lea.sflag [#allocation4], 1
    %11 = vsyncpa %s10, 0
    loop: start=0, step=1, limit=4
    $region2: #{tpu_custom_call.1} parent=1 // loop_pre_header
      _
    $region3: #{tpu_custom_call.1} parent=1 // loop_header
      %s13 = sphi 0, %s17
      %p14 = scmp.ge.s32.totalorder %s13, 4
      %s23 = sphi 0, %s25
      %s26 = sphi 0, %s23
      %s27 = sphi 0, %s26
      %s43 = sphi 0, %s27
      %s49 = sphi 0, %s51
      %s52 = sphi 0, %s49
      %s53 = sphi 0, %s52
      %s69 = sphi 0, %s53
    $region4: #{tpu_custom_call.1} parent=1 // loop_header_branch
      %16 = sbr.rel (%p14) target = $region8
    $region5: #{tpu_custom_call.1} parent=1 // loop_body
      %s18 = ssub.s32 %s13, 1
      %s19 = ssub.s32 %s13, 2
      %s20 = sadd.s32 %s13, 1
      %s21 = ssub.s32 %s13, %s20
      %p22 = scmp.eq.s32.totalorder %s21, 0
      %s24 = sadd.s32 %s23, 1
      %s25 = scalar_select %p22, %s23, %s24
      %p28 = pneg %p22
      %p29 = scmp.eq.s32.totalorder %s13, 1
      %p30 = por %p28, %p29
      %p31 = scmp.ne.s32.totalorder %s23, %s26
      %p32 = scmp.eq.s32.totalorder %s13, 0
      %p33 = por %p31, %p32
      %p34 = scmp.ne.s32.totalorder %s23, %s26
      %p35 = scmp.eq.s32.totalorder %s18, 1
      %p36 = por %p34, %p35
      %p37 = scmp.ne.s32.totalorder %s26, %s27
      %p38 = scmp.eq.s32.totalorder %s18, 0
      %p39 = por %p37, %p38
      %p40 = scmp.ne.s32.totalorder %s26, %s27
      %p41 = scmp.eq.s32.totalorder %s19, 1
      %p42 = por %p40, %p41
      %p44 = scmp.ne.s32.totalorder %s27, %s43
      %p45 = scmp.eq.s32.totalorder %s19, 0
      %p46 = por %p44, %p45
      %s47 = ssub.s32 %s13, %s20
      %p48 = scmp.eq.s32.totalorder %s47, 0
      %s50 = sadd.s32 %s49, 1
      %s51 = scalar_select %p48, %s49, %s50
      %p54 = pneg %p48
      %p55 = scmp.eq.s32.totalorder %s13, 1
      %p56 = por %p54, %p55
      %p57 = scmp.ne.s32.totalorder %s49, %s52
      %p58 = scmp.eq.s32.totalorder %s13, 0
      %p59 = por %p57, %p58
      %p60 = scmp.ne.s32.totalorder %s49, %s52
      %p61 = scmp.eq.s32.totalorder %s18, 1
      %p62 = por %p60, %p61
      %p63 = scmp.ne.s32.totalorder %s52, %s53
      %p64 = scmp.eq.s32.totalorder %s18, 0
      %p65 = por %p63, %p64
      %p66 = scmp.ne.s32.totalorder %s52, %s53
      %p67 = scmp.eq.s32.totalorder %s19, 1
      %p68 = por %p66, %p67
      %p70 = scmp.ne.s32.totalorder %s53, %s69
      %p71 = scmp.eq.s32.totalorder %s19, 0
      %p72 = por %p70, %p71
      %p73 = scmp.le.s32.totalorder 1, %s13
      %p74 = scmp.lt.s32.totalorder %s13, 3
      %p75 = pnand %p73, %p74
      %p76 = pneg %p75
      // Predicated region
      $region9: #{tpu_custom_call.1} parent=5 // pred_check
        _
      $region10: #{tpu_custom_call.1} parent=5 // pred_check_branch
        %78 = sbr.rel (%p75) target = $region12
      $region11: #{tpu_custom_call.1} parent=5 // pred_region
        %s79 = ssub.s32 %s13, 1
      $region12: #{tpu_custom_call.1} parent=5 // pred_fallthru
        _
      %p80 = scmp.lt.s32.totalorder %s13, 2
      // Predicated region
      $region13: #{tpu_custom_call.1} parent=5 // pred_check
        %p81 = pneg %p80
      $region14: #{tpu_custom_call.1} parent=5 // pred_check_branch
        %83 = sbr.rel (%p81) target = $region16
      $region15: #{tpu_custom_call.1} parent=5 // pred_region
        // Predicated region
        $region17: #{tpu_custom_call.1} parent=15 // pred_check
          %p84 = pneg %p33
        $region18: #{tpu_custom_call.1} parent=15 // pred_check_branch
          %86 = sbr.rel (%p84) target = $region20
        $region19: #{tpu_custom_call.1} parent=15 // pred_region
          %s87 = sand.u32 %s23, 1
          %s88 = scalar_lea.sflag [#allocation3], %s87
          %s89 = sand.u32 %s23, 1
          %s90 = smul.addr %s89, 8192
          %s91 = scalar_lea.vmem [#allocation2], %s90
          %s92 = smul.u32 128, %s13
          %s94 = ssub.s32 131072, 131072
          %95 = vsyncadd %s88, %s94
          %s96 = smul.addr %s92, 8
          %s97 = smul.addr %s96, 128
          %s98 = scalar_lea.hbm %s0, %s97
          %s99 = sshll.u32 %s91, 4
          %s100 = int_to_ptr.vmem [resolvable:$true] %s99
          %105 = dma.hbm_to_vmem [thread:$0]  %s98, 131072, %s100, %s88, 1024, 1024, 64
        $region20: #{tpu_custom_call.1} parent=15 // pred_fallthru
          _
      $region16: #{tpu_custom_call.1} parent=5 // pred_fallthru
        _
      %p106 = scmp.le.s32.totalorder 1, %s13
      %p107 = scmp.lt.s32.totalorder %s13, 3
      %p108 = pnand %p106, %p107
      %p109 = pneg %p108
      // Predicated region
      $region21: #{tpu_custom_call.1} parent=5 // pred_check
        _
      $region22: #{tpu_custom_call.1} parent=5 // pred_check_branch
        %111 = sbr.rel (%p108) target = $region24
      $region23: #{tpu_custom_call.1} parent=5 // pred_region
        %s112 = ssub.s32 %s13, 1
        %s113 = sand.u32 %s26, 1
        %s114 = scalar_lea.sflag [#allocation3], %s113
        %s115 = sand.u32 %s26, 1
        %s116 = smul.addr %s115, 8192
        %s117 = scalar_lea.vmem [#allocation2], %s116
        // Predicated region
        $region25: #{tpu_custom_call.1} parent=23 // pred_check
          %p118 = pneg %p39
        $region26: #{tpu_custom_call.1} parent=23 // pred_check_branch
          %120 = sbr.rel (%p118) target = $region28
        $region27: #{tpu_custom_call.1} parent=23 // pred_region
          %121 = dma.done %s114, 131072
        $region28: #{tpu_custom_call.1} parent=23 // pred_fallthru
          _
        %s122 = sand.u32 %s26, 1
        %s123 = scalar_lea.sflag [#allocation3], %s122
        %s124 = sand.u32 %s26, 1
        %s125 = smul.addr %s124, 8192
        %s126 = scalar_lea.vmem [#allocation2], %s125
        %p127 = pneg %p39
        %p128 = pneg %p36
        %p129 = pneg %p65
        %p130 = pneg %p62
        %s131 = sand.u32 %s52, 1
        %s132 = scalar_lea.sflag [#allocation4], %s131
        %s133 = sand.u32 %s52, 1
        %s134 = smul.addr %s133, 8192
        %s135 = scalar_lea.vmem [#allocation5], %s134
        %s136 = smul.u32 128, %s18
        %s137 = smul.u32 128, %s18
        %v138 = vld [vmem:[%s117] sm:$0xff]
        %v139 = vld [vmem:[%s117 + $0x8] sm:$0xff]
        %v140 = vld [vmem:[%s117 + $0x10] sm:$0xff]
        %v141 = vld [vmem:[%s117 + $0x18] sm:$0xff]
        %v142 = vld [vmem:[%s117 + $0x20] sm:$0xff]
        %v143 = vld [vmem:[%s117 + $0x28] sm:$0xff]
        %v144 = vld [vmem:[%s117 + $0x30] sm:$0xff]
        %v145 = vld [vmem:[%s117 + $0x38] sm:$0xff]
        %v146 = vld [vmem:[%s117 + $0x40] sm:$0xff]
        %v147 = vld [vmem:[%s117 + $0x48] sm:$0xff]
        %v148 = vld [vmem:[%s117 + $0x50] sm:$0xff]
        %v149 = vld [vmem:[%s117 + $0x58] sm:$0xff]
        %v150 = vld [vmem:[%s117 + $0x60] sm:$0xff]
        %v151 = vld [vmem:[%s117 + $0x68] sm:$0xff]
        %v152 = vld [vmem:[%s117 + $0x70] sm:$0xff]
        %v153 = vld [vmem:[%s117 + $0x78] sm:$0xff]
        %v154 = vld [vmem:[%s117 + $0x80] sm:$0xff]
        %v155 = vld [vmem:[%s117 + $0x88] sm:$0xff]
        %v156 = vld [vmem:[%s117 + $0x90] sm:$0xff]
        %v157 = vld [vmem:[%s117 + $0x98] sm:$0xff]
        %v158 = vld [vmem:[%s117 + $0xa0] sm:$0xff]
        %v159 = vld [vmem:[%s117 + $0xa8] sm:$0xff]
        %v160 = vld [vmem:[%s117 + $0xb0] sm:$0xff]
        %v161 = vld [vmem:[%s117 + $0xb8] sm:$0xff]
        %v162 = vld [vmem:[%s117 + $0xc0] sm:$0xff]
        %v163 = vld [vmem:[%s117 + $0xc8] sm:$0xff]
        %v164 = vld [vmem:[%s117 + $0xd0] sm:$0xff]
        %v165 = vld [vmem:[%s117 + $0xd8] sm:$0xff]
        %v166 = vld [vmem:[%s117 + $0xe0] sm:$0xff]
        %v167 = vld [vmem:[%s117 + $0xe8] sm:$0xff]
        %v168 = vld [vmem:[%s117 + $0xf0] sm:$0xff]
        %v169 = vld [vmem:[%s117 + $0xf8] sm:$0xff]
        %v170 = vld [vmem:[%s117 + $0x100] sm:$0xff]
        %v171 = vld [vmem:[%s117 + $0x108] sm:$0xff]
        %v172 = vld [vmem:[%s117 + $0x110] sm:$0xff]
        %v173 = vld [vmem:[%s117 + $0x118] sm:$0xff]
        %v174 = vld [vmem:[%s117 + $0x120] sm:$0xff]
        %v175 = vld [vmem:[%s117 + $0x128] sm:$0xff]
        %v176 = vld [vmem:[%s117 + $0x130] sm:$0xff]
        %v177 = vld [vmem:[%s117 + $0x138] sm:$0xff]
        %v178 = vld [vmem:[%s117 + $0x140] sm:$0xff]
        %v179 = vld [vmem:[%s117 + $0x148] sm:$0xff]
        %v180 = vld [vmem:[%s117 + $0x150] sm:$0xff]
        %v181 = vld [vmem:[%s117 + $0x158] sm:$0xff]
        %v182 = vld [vmem:[%s117 + $0x160] sm:$0xff]
        %v183 = vld [vmem:[%s117 + $0x168] sm:$0xff]
        %v184 = vld [vmem:[%s117 + $0x170] sm:$0xff]
        %v185 = vld [vmem:[%s117 + $0x178] sm:$0xff]
        %v186 = vld [vmem:[%s117 + $0x180] sm:$0xff]
        %v187 = vld [vmem:[%s117 + $0x188] sm:$0xff]
        %v188 = vld [vmem:[%s117 + $0x190] sm:$0xff]
        %v189 = vld [vmem:[%s117 + $0x198] sm:$0xff]
        %v190 = vld [vmem:[%s117 + $0x1a0] sm:$0xff]
        %v191 = vld [vmem:[%s117 + $0x1a8] sm:$0xff]
        %v192 = vld [vmem:[%s117 + $0x1b0] sm:$0xff]
        %v193 = vld [vmem:[%s117 + $0x1b8] sm:$0xff]
        %v194 = vld [vmem:[%s117 + $0x1c0] sm:$0xff]
        %v195 = vld [vmem:[%s117 + $0x1c8] sm:$0xff]
        %v196 = vld [vmem:[%s117 + $0x1d0] sm:$0xff]
        %v197 = vld [vmem:[%s117 + $0x1d8] sm:$0xff]
        %v198 = vld [vmem:[%s117 + $0x1e0] sm:$0xff]
        %v199 = vld [vmem:[%s117 + $0x1e8] sm:$0xff]
        %v200 = vld [vmem:[%s117 + $0x1f0] sm:$0xff]
        %v201 = vld [vmem:[%s117 + $0x1f8] sm:$0xff]
        %v202 = vld [vmem:[%s117 + $0x200] sm:$0xff]
        %v203 = vld [vmem:[%s117 + $0x208] sm:$0xff]
        %v204 = vld [vmem:[%s117 + $0x210] sm:$0xff]
        %v205 = vld [vmem:[%s117 + $0x218] sm:$0xff]
        %v206 = vld [vmem:[%s117 + $0x220] sm:$0xff]
        %v207 = vld [vmem:[%s117 + $0x228] sm:$0xff]
        %v208 = vld [vmem:[%s117 + $0x230] sm:$0xff]
        %v209 = vld [vmem:[%s117 + $0x238] sm:$0xff]
        %v210 = vld [vmem:[%s117 + $0x240] sm:$0xff]
        %v211 = vld [vmem:[%s117 + $0x248] sm:$0xff]
        %v212 = vld [vmem:[%s117 + $0x250] sm:$0xff]
        %v213 = vld [vmem:[%s117 + $0x258] sm:$0xff]
        %v214 = vld [vmem:[%s117 + $0x260] sm:$0xff]
        %v215 = vld [vmem:[%s117 + $0x268] sm:$0xff]
        %v216 = vld [vmem:[%s117 + $0x270] sm:$0xff]
        %v217 = vld [vmem:[%s117 + $0x278] sm:$0xff]
        %v218 = vld [vmem:[%s117 + $0x280] sm:$0xff]
        %v219 = vld [vmem:[%s117 + $0x288] sm:$0xff]
        %v220 = vld [vmem:[%s117 + $0x290] sm:$0xff]
        %v221 = vld [vmem:[%s117 + $0x298] sm:$0xff]
        %v222 = vld [vmem:[%s117 + $0x2a0] sm:$0xff]
        %v223 = vld [vmem:[%s117 + $0x2a8] sm:$0xff]
        %v224 = vld [vmem:[%s117 + $0x2b0] sm:$0xff]
        %v225 = vld [vmem:[%s117 + $0x2b8] sm:$0xff]
        %v226 = vld [vmem:[%s117 + $0x2c0] sm:$0xff]
        %v227 = vld [vmem:[%s117 + $0x2c8] sm:$0xff]
        %v228 = vld [vmem:[%s117 + $0x2d0] sm:$0xff]
        %v229 = vld [vmem:[%s117 + $0x2d8] sm:$0xff]
        %v230 = vld [vmem:[%s117 + $0x2e0] sm:$0xff]
        %v231 = vld [vmem:[%s117 + $0x2e8] sm:$0xff]
        %v232 = vld [vmem:[%s117 + $0x2f0] sm:$0xff]
        %v233 = vld [vmem:[%s117 + $0x2f8] sm:$0xff]
        %v234 = vld [vmem:[%s117 + $0x300] sm:$0xff]
        %v235 = vld [vmem:[%s117 + $0x308] sm:$0xff]
        %v236 = vld [vmem:[%s117 + $0x310] sm:$0xff]
        %v237 = vld [vmem:[%s117 + $0x318] sm:$0xff]
        %v238 = vld [vmem:[%s117 + $0x320] sm:$0xff]
        %v239 = vld [vmem:[%s117 + $0x328] sm:$0xff]
        %v240 = vld [vmem:[%s117 + $0x330] sm:$0xff]
        %v241 = vld [vmem:[%s117 + $0x338] sm:$0xff]
        %v242 = vld [vmem:[%s117 + $0x340] sm:$0xff]
        %v243 = vld [vmem:[%s117 + $0x348] sm:$0xff]
        %v244 = vld [vmem:[%s117 + $0x350] sm:$0xff]
        %v245 = vld [vmem:[%s117 + $0x358] sm:$0xff]
        %v246 = vld [vmem:[%s117 + $0x360] sm:$0xff]
        %v247 = vld [vmem:[%s117 + $0x368] sm:$0xff]
        %v248 = vld [vmem:[%s117 + $0x370] sm:$0xff]
        %v249 = vld [vmem:[%s117 + $0x378] sm:$0xff]
        %v250 = vld [vmem:[%s117 + $0x380] sm:$0xff]
        %v251 = vld [vmem:[%s117 + $0x388] sm:$0xff]
        %v252 = vld [vmem:[%s117 + $0x390] sm:$0xff]
        %v253 = vld [vmem:[%s117 + $0x398] sm:$0xff]
        %v254 = vld [vmem:[%s117 + $0x3a0] sm:$0xff]
        %v255 = vld [vmem:[%s117 + $0x3a8] sm:$0xff]
        %v256 = vld [vmem:[%s117 + $0x3b0] sm:$0xff]
        %v257 = vld [vmem:[%s117 + $0x3b8] sm:$0xff]
        %v258 = vld [vmem:[%s117 + $0x3c0] sm:$0xff]
        %v259 = vld [vmem:[%s117 + $0x3c8] sm:$0xff]
        %v260 = vld [vmem:[%s117 + $0x3d0] sm:$0xff]
        %v261 = vld [vmem:[%s117 + $0x3d8] sm:$0xff]
        %v262 = vld [vmem:[%s117 + $0x3e0] sm:$0xff]
        %v263 = vld [vmem:[%s117 + $0x3e8] sm:$0xff]
        %v264 = vld [vmem:[%s117 + $0x3f0] sm:$0xff]
        %v265 = vld [vmem:[%s117 + $0x3f8] sm:$0xff]
        %v266 = vld [vmem:[%s117 + $0x400] sm:$0xff]
        %v267 = vld [vmem:[%s117 + $0x408] sm:$0xff]
        %v268 = vld [vmem:[%s117 + $0x410] sm:$0xff]
        %v269 = vld [vmem:[%s117 + $0x418] sm:$0xff]
        %v270 = vld [vmem:[%s117 + $0x420] sm:$0xff]
        %v271 = vld [vmem:[%s117 + $0x428] sm:$0xff]
        %v272 = vld [vmem:[%s117 + $0x430] sm:$0xff]
        %v273 = vld [vmem:[%s117 + $0x438] sm:$0xff]
        %v274 = vld [vmem:[%s117 + $0x440] sm:$0xff]
        %v275 = vld [vmem:[%s117 + $0x448] sm:$0xff]
        %v276 = vld [vmem:[%s117 + $0x450] sm:$0xff]
        %v277 = vld [vmem:[%s117 + $0x458] sm:$0xff]
        %v278 = vld [vmem:[%s117 + $0x460] sm:$0xff]
        %v279 = vld [vmem:[%s117 + $0x468] sm:$0xff]
        %v280 = vld [vmem:[%s117 + $0x470] sm:$0xff]
        %v281 = vld [vmem:[%s117 + $0x478] sm:$0xff]
        %v282 = vld [vmem:[%s117 + $0x480] sm:$0xff]
        %v283 = vld [vmem:[%s117 + $0x488] sm:$0xff]
        %v284 = vld [vmem:[%s117 + $0x490] sm:$0xff]
        %v285 = vld [vmem:[%s117 + $0x498] sm:$0xff]
        %v286 = vld [vmem:[%s117 + $0x4a0] sm:$0xff]
        %v287 = vld [vmem:[%s117 + $0x4a8] sm:$0xff]
        %v288 = vld [vmem:[%s117 + $0x4b0] sm:$0xff]
        %v289 = vld [vmem:[%s117 + $0x4b8] sm:$0xff]
        %v290 = vld [vmem:[%s117 + $0x4c0] sm:$0xff]
        %v291 = vld [vmem:[%s117 + $0x4c8] sm:$0xff]
        %v292 = vld [vmem:[%s117 + $0x4d0] sm:$0xff]
        %v293 = vld [vmem:[%s117 + $0x4d8] sm:$0xff]
        %v294 = vld [vmem:[%s117 + $0x4e0] sm:$0xff]
        %v295 = vld [vmem:[%s117 + $0x4e8] sm:$0xff]
        %v296 = vld [vmem:[%s117 + $0x4f0] sm:$0xff]
        %v297 = vld [vmem:[%s117 + $0x4f8] sm:$0xff]
        %v298 = vld [vmem:[%s117 + $0x500] sm:$0xff]
        %v299 = vld [vmem:[%s117 + $0x508] sm:$0xff]
        %v300 = vld [vmem:[%s117 + $0x510] sm:$0xff]
        %v301 = vld [vmem:[%s117 + $0x518] sm:$0xff]
        %v302 = vld [vmem:[%s117 + $0x520] sm:$0xff]
        %v303 = vld [vmem:[%s117 + $0x528] sm:$0xff]
        %v304 = vld [vmem:[%s117 + $0x530] sm:$0xff]
        %v305 = vld [vmem:[%s117 + $0x538] sm:$0xff]
        %v306 = vld [vmem:[%s117 + $0x540] sm:$0xff]
        %v307 = vld [vmem:[%s117 + $0x548] sm:$0xff]
        %v308 = vld [vmem:[%s117 + $0x550] sm:$0xff]
        %v309 = vld [vmem:[%s117 + $0x558] sm:$0xff]
        %v310 = vld [vmem:[%s117 + $0x560] sm:$0xff]
        %v311 = vld [vmem:[%s117 + $0x568] sm:$0xff]
        %v312 = vld [vmem:[%s117 + $0x570] sm:$0xff]
        %v313 = vld [vmem:[%s117 + $0x578] sm:$0xff]
        %v314 = vld [vmem:[%s117 + $0x580] sm:$0xff]
        %v315 = vld [vmem:[%s117 + $0x588] sm:$0xff]
        %v316 = vld [vmem:[%s117 + $0x590] sm:$0xff]
        %v317 = vld [vmem:[%s117 + $0x598] sm:$0xff]
        %v318 = vld [vmem:[%s117 + $0x5a0] sm:$0xff]
        %v319 = vld [vmem:[%s117 + $0x5a8] sm:$0xff]
        %v320 = vld [vmem:[%s117 + $0x5b0] sm:$0xff]
        %v321 = vld [vmem:[%s117 + $0x5b8] sm:$0xff]
        %v322 = vld [vmem:[%s117 + $0x5c0] sm:$0xff]
        %v323 = vld [vmem:[%s117 + $0x5c8] sm:$0xff]
        %v324 = vld [vmem:[%s117 + $0x5d0] sm:$0xff]
        %v325 = vld [vmem:[%s117 + $0x5d8] sm:$0xff]
        %v326 = vld [vmem:[%s117 + $0x5e0] sm:$0xff]
        %v327 = vld [vmem:[%s117 + $0x5e8] sm:$0xff]
        %v328 = vld [vmem:[%s117 + $0x5f0] sm:$0xff]
        %v329 = vld [vmem:[%s117 + $0x5f8] sm:$0xff]
        %v330 = vld [vmem:[%s117 + $0x600] sm:$0xff]
        %v331 = vld [vmem:[%s117 + $0x608] sm:$0xff]
        %v332 = vld [vmem:[%s117 + $0x610] sm:$0xff]
        %v333 = vld [vmem:[%s117 + $0x618] sm:$0xff]
        %v334 = vld [vmem:[%s117 + $0x620] sm:$0xff]
        %v335 = vld [vmem:[%s117 + $0x628] sm:$0xff]
        %v336 = vld [vmem:[%s117 + $0x630] sm:$0xff]
        %v337 = vld [vmem:[%s117 + $0x638] sm:$0xff]
        %v338 = vld [vmem:[%s117 + $0x640] sm:$0xff]
        %v339 = vld [vmem:[%s117 + $0x648] sm:$0xff]
        %v340 = vld [vmem:[%s117 + $0x650] sm:$0xff]
        %v341 = vld [vmem:[%s117 + $0x658] sm:$0xff]
        %v342 = vld [vmem:[%s117 + $0x660] sm:$0xff]
        %v343 = vld [vmem:[%s117 + $0x668] sm:$0xff]
        %v344 = vld [vmem:[%s117 + $0x670] sm:$0xff]
        %v345 = vld [vmem:[%s117 + $0x678] sm:$0xff]
        %v346 = vld [vmem:[%s117 + $0x680] sm:$0xff]
        %v347 = vld [vmem:[%s117 + $0x688] sm:$0xff]
        %v348 = vld [vmem:[%s117 + $0x690] sm:$0xff]
        %v349 = vld [vmem:[%s117 + $0x698] sm:$0xff]
        %v350 = vld [vmem:[%s117 + $0x6a0] sm:$0xff]
        %v351 = vld [vmem:[%s117 + $0x6a8] sm:$0xff]
        %v352 = vld [vmem:[%s117 + $0x6b0] sm:$0xff]
        %v353 = vld [vmem:[%s117 + $0x6b8] sm:$0xff]
        %v354 = vld [vmem:[%s117 + $0x6c0] sm:$0xff]
        %v355 = vld [vmem:[%s117 + $0x6c8] sm:$0xff]
        %v356 = vld [vmem:[%s117 + $0x6d0] sm:$0xff]
        %v357 = vld [vmem:[%s117 + $0x6d8] sm:$0xff]
        %v358 = vld [vmem:[%s117 + $0x6e0] sm:$0xff]
        %v359 = vld [vmem:[%s117 + $0x6e8] sm:$0xff]
        %v360 = vld [vmem:[%s117 + $0x6f0] sm:$0xff]
        %v361 = vld [vmem:[%s117 + $0x6f8] sm:$0xff]
        %v362 = vld [vmem:[%s117 + $0x700] sm:$0xff]
        %v363 = vld [vmem:[%s117 + $0x708] sm:$0xff]
        %v364 = vld [vmem:[%s117 + $0x710] sm:$0xff]
        %v365 = vld [vmem:[%s117 + $0x718] sm:$0xff]
        %v366 = vld [vmem:[%s117 + $0x720] sm:$0xff]
        %v367 = vld [vmem:[%s117 + $0x728] sm:$0xff]
        %v368 = vld [vmem:[%s117 + $0x730] sm:$0xff]
        %v369 = vld [vmem:[%s117 + $0x738] sm:$0xff]
        %v370 = vld [vmem:[%s117 + $0x740] sm:$0xff]
        %v371 = vld [vmem:[%s117 + $0x748] sm:$0xff]
        %v372 = vld [vmem:[%s117 + $0x750] sm:$0xff]
        %v373 = vld [vmem:[%s117 + $0x758] sm:$0xff]
        %v374 = vld [vmem:[%s117 + $0x760] sm:$0xff]
        %v375 = vld [vmem:[%s117 + $0x768] sm:$0xff]
        %v376 = vld [vmem:[%s117 + $0x770] sm:$0xff]
        %v377 = vld [vmem:[%s117 + $0x778] sm:$0xff]
        %v378 = vld [vmem:[%s117 + $0x780] sm:$0xff]
        %v379 = vld [vmem:[%s117 + $0x788] sm:$0xff]
        %v380 = vld [vmem:[%s117 + $0x790] sm:$0xff]
        %v381 = vld [vmem:[%s117 + $0x798] sm:$0xff]
        %v382 = vld [vmem:[%s117 + $0x7a0] sm:$0xff]
        %v383 = vld [vmem:[%s117 + $0x7a8] sm:$0xff]
        %v384 = vld [vmem:[%s117 + $0x7b0] sm:$0xff]
        %v385 = vld [vmem:[%s117 + $0x7b8] sm:$0xff]
        %v386 = vld [vmem:[%s117 + $0x7c0] sm:$0xff]
        %v387 = vld [vmem:[%s117 + $0x7c8] sm:$0xff]
        %v388 = vld [vmem:[%s117 + $0x7d0] sm:$0xff]
        %v389 = vld [vmem:[%s117 + $0x7d8] sm:$0xff]
        %v390 = vld [vmem:[%s117 + $0x7e0] sm:$0xff]
        %v391 = vld [vmem:[%s117 + $0x7e8] sm:$0xff]
        %v392 = vld [vmem:[%s117 + $0x7f0] sm:$0xff]
        %v393 = vld [vmem:[%s117 + $0x7f8] sm:$0xff]
        %v394 = vld [vmem:[%s117 + $0x800] sm:$0xff]
        %v395 = vld [vmem:[%s117 + $0x808] sm:$0xff]
        %v396 = vld [vmem:[%s117 + $0x810] sm:$0xff]
        %v397 = vld [vmem:[%s117 + $0x818] sm:$0xff]
        %v398 = vld [vmem:[%s117 + $0x820] sm:$0xff]
        %v399 = vld [vmem:[%s117 + $0x828] sm:$0xff]
        %v400 = vld [vmem:[%s117 + $0x830] sm:$0xff]
        %v401 = vld [vmem:[%s117 + $0x838] sm:$0xff]
        %v402 = vld [vmem:[%s117 + $0x840] sm:$0xff]
        %v403 = vld [vmem:[%s117 + $0x848] sm:$0xff]
        %v404 = vld [vmem:[%s117 + $0x850] sm:$0xff]
        %v405 = vld [vmem:[%s117 + $0x858] sm:$0xff]
        %v406 = vld [vmem:[%s117 + $0x860] sm:$0xff]
        %v407 = vld [vmem:[%s117 + $0x868] sm:$0xff]
        %v408 = vld [vmem:[%s117 + $0x870] sm:$0xff]
        %v409 = vld [vmem:[%s117 + $0x878] sm:$0xff]
        %v410 = vld [vmem:[%s117 + $0x880] sm:$0xff]
        %v411 = vld [vmem:[%s117 + $0x888] sm:$0xff]
        %v412 = vld [vmem:[%s117 + $0x890] sm:$0xff]
        %v413 = vld [vmem:[%s117 + $0x898] sm:$0xff]
        %v414 = vld [vmem:[%s117 + $0x8a0] sm:$0xff]
        %v415 = vld [vmem:[%s117 + $0x8a8] sm:$0xff]
        %v416 = vld [vmem:[%s117 + $0x8b0] sm:$0xff]
        %v417 = vld [vmem:[%s117 + $0x8b8] sm:$0xff]
        %v418 = vld [vmem:[%s117 + $0x8c0] sm:$0xff]
        %v419 = vld [vmem:[%s117 + $0x8c8] sm:$0xff]
        %v420 = vld [vmem:[%s117 + $0x8d0] sm:$0xff]
        %v421 = vld [vmem:[%s117 + $0x8d8] sm:$0xff]
        %v422 = vld [vmem:[%s117 + $0x8e0] sm:$0xff]
        %v423 = vld [vmem:[%s117 + $0x8e8] sm:$0xff]
        %v424 = vld [vmem:[%s117 + $0x8f0] sm:$0xff]
        %v425 = vld [vmem:[%s117 + $0x8f8] sm:$0xff]
        %v426 = vld [vmem:[%s117 + $0x900] sm:$0xff]
        %v427 = vld [vmem:[%s117 + $0x908] sm:$0xff]
        %v428 = vld [vmem:[%s117 + $0x910] sm:$0xff]
        %v429 = vld [vmem:[%s117 + $0x918] sm:$0xff]
        %v430 = vld [vmem:[%s117 + $0x920] sm:$0xff]
        %v431 = vld [vmem:[%s117 + $0x928] sm:$0xff]
        %v432 = vld [vmem:[%s117 + $0x930] sm:$0xff]
        %v433 = vld [vmem:[%s117 + $0x938] sm:$0xff]
        %v434 = vld [vmem:[%s117 + $0x940] sm:$0xff]
        %v435 = vld [vmem:[%s117 + $0x948] sm:$0xff]
        %v436 = vld [vmem:[%s117 + $0x950] sm:$0xff]
        %v437 = vld [vmem:[%s117 + $0x958] sm:$0xff]
        %v438 = vld [vmem:[%s117 + $0x960] sm:$0xff]
        %v439 = vld [vmem:[%s117 + $0x968] sm:$0xff]
        %v440 = vld [vmem:[%s117 + $0x970] sm:$0xff]
        %v441 = vld [vmem:[%s117 + $0x978] sm:$0xff]
        %v442 = vld [vmem:[%s117 + $0x980] sm:$0xff]
        %v443 = vld [vmem:[%s117 + $0x988] sm:$0xff]
        %v444 = vld [vmem:[%s117 + $0x990] sm:$0xff]
        %v445 = vld [vmem:[%s117 + $0x998] sm:$0xff]
        %v446 = vld [vmem:[%s117 + $0x9a0] sm:$0xff]
        %v447 = vld [vmem:[%s117 + $0x9a8] sm:$0xff]
        %v448 = vld [vmem:[%s117 + $0x9b0] sm:$0xff]
        %v449 = vld [vmem:[%s117 + $0x9b8] sm:$0xff]
        %v450 = vld [vmem:[%s117 + $0x9c0] sm:$0xff]
        %v451 = vld [vmem:[%s117 + $0x9c8] sm:$0xff]
        %v452 = vld [vmem:[%s117 + $0x9d0] sm:$0xff]
        %v453 = vld [vmem:[%s117 + $0x9d8] sm:$0xff]
        %v454 = vld [vmem:[%s117 + $0x9e0] sm:$0xff]
        %v455 = vld [vmem:[%s117 + $0x9e8] sm:$0xff]
        %v456 = vld [vmem:[%s117 + $0x9f0] sm:$0xff]
        %v457 = vld [vmem:[%s117 + $0x9f8] sm:$0xff]
        %v458 = vld [vmem:[%s117 + $0xa00] sm:$0xff]
        %v459 = vld [vmem:[%s117 + $0xa08] sm:$0xff]
        %v460 = vld [vmem:[%s117 + $0xa10] sm:$0xff]
        %v461 = vld [vmem:[%s117 + $0xa18] sm:$0xff]
        %v462 = vld [vmem:[%s117 + $0xa20] sm:$0xff]
        %v463 = vld [vmem:[%s117 + $0xa28] sm:$0xff]
        %v464 = vld [vmem:[%s117 + $0xa30] sm:$0xff]
        %v465 = vld [vmem:[%s117 + $0xa38] sm:$0xff]
        %v466 = vld [vmem:[%s117 + $0xa40] sm:$0xff]
        %v467 = vld [vmem:[%s117 + $0xa48] sm:$0xff]
        %v468 = vld [vmem:[%s117 + $0xa50] sm:$0xff]
        %v469 = vld [vmem:[%s117 + $0xa58] sm:$0xff]
        %v470 = vld [vmem:[%s117 + $0xa60] sm:$0xff]
        %v471 = vld [vmem:[%s117 + $0xa68] sm:$0xff]
        %v472 = vld [vmem:[%s117 + $0xa70] sm:$0xff]
        %v473 = vld [vmem:[%s117 + $0xa78] sm:$0xff]
        %v474 = vld [vmem:[%s117 + $0xa80] sm:$0xff]
        %v475 = vld [vmem:[%s117 + $0xa88] sm:$0xff]
        %v476 = vld [vmem:[%s117 + $0xa90] sm:$0xff]
        %v477 = vld [vmem:[%s117 + $0xa98] sm:$0xff]
        %v478 = vld [vmem:[%s117 + $0xaa0] sm:$0xff]
        %v479 = vld [vmem:[%s117 + $0xaa8] sm:$0xff]
        %v480 = vld [vmem:[%s117 + $0xab0] sm:$0xff]
        %v481 = vld [vmem:[%s117 + $0xab8] sm:$0xff]
        %v482 = vld [vmem:[%s117 + $0xac0] sm:$0xff]
        %v483 = vld [vmem:[%s117 + $0xac8] sm:$0xff]
        %v484 = vld [vmem:[%s117 + $0xad0] sm:$0xff]
        %v485 = vld [vmem:[%s117 + $0xad8] sm:$0xff]
        %v486 = vld [vmem:[%s117 + $0xae0] sm:$0xff]
        %v487 = vld [vmem:[%s117 + $0xae8] sm:$0xff]
        %v488 = vld [vmem:[%s117 + $0xaf0] sm:$0xff]
        %v489 = vld [vmem:[%s117 + $0xaf8] sm:$0xff]
        %v490 = vld [vmem:[%s117 + $0xb00] sm:$0xff]
        %v491 = vld [vmem:[%s117 + $0xb08] sm:$0xff]
        %v492 = vld [vmem:[%s117 + $0xb10] sm:$0xff]
        %v493 = vld [vmem:[%s117 + $0xb18] sm:$0xff]
        %v494 = vld [vmem:[%s117 + $0xb20] sm:$0xff]
        %v495 = vld [vmem:[%s117 + $0xb28] sm:$0xff]
        %v496 = vld [vmem:[%s117 + $0xb30] sm:$0xff]
        %v497 = vld [vmem:[%s117 + $0xb38] sm:$0xff]
        %v498 = vld [vmem:[%s117 + $0xb40] sm:$0xff]
        %v499 = vld [vmem:[%s117 + $0xb48] sm:$0xff]
        %v500 = vld [vmem:[%s117 + $0xb50] sm:$0xff]
        %v501 = vld [vmem:[%s117 + $0xb58] sm:$0xff]
        %v502 = vld [vmem:[%s117 + $0xb60] sm:$0xff]
        %v503 = vld [vmem:[%s117 + $0xb68] sm:$0xff]
        %v504 = vld [vmem:[%s117 + $0xb70] sm:$0xff]
        %v505 = vld [vmem:[%s117 + $0xb78] sm:$0xff]
        %v506 = vld [vmem:[%s117 + $0xb80] sm:$0xff]
        %v507 = vld [vmem:[%s117 + $0xb88] sm:$0xff]
        %v508 = vld [vmem:[%s117 + $0xb90] sm:$0xff]
        %v509 = vld [vmem:[%s117 + $0xb98] sm:$0xff]
        %v510 = vld [vmem:[%s117 + $0xba0] sm:$0xff]
        %v511 = vld [vmem:[%s117 + $0xba8] sm:$0xff]
        %v512 = vld [vmem:[%s117 + $0xbb0] sm:$0xff]
        %v513 = vld [vmem:[%s117 + $0xbb8] sm:$0xff]
        %v514 = vld [vmem:[%s117 + $0xbc0] sm:$0xff]
        %v515 = vld [vmem:[%s117 + $0xbc8] sm:$0xff]
        %v516 = vld [vmem:[%s117 + $0xbd0] sm:$0xff]
        %v517 = vld [vmem:[%s117 + $0xbd8] sm:$0xff]
        %v518 = vld [vmem:[%s117 + $0xbe0] sm:$0xff]
        %v519 = vld [vmem:[%s117 + $0xbe8] sm:$0xff]
        %v520 = vld [vmem:[%s117 + $0xbf0] sm:$0xff]
        %v521 = vld [vmem:[%s117 + $0xbf8] sm:$0xff]
        %v522 = vld [vmem:[%s117 + $0xc00] sm:$0xff]
        %v523 = vld [vmem:[%s117 + $0xc08] sm:$0xff]
        %v524 = vld [vmem:[%s117 + $0xc10] sm:$0xff]
        %v525 = vld [vmem:[%s117 + $0xc18] sm:$0xff]
        %v526 = vld [vmem:[%s117 + $0xc20] sm:$0xff]
        %v527 = vld [vmem:[%s117 + $0xc28] sm:$0xff]
        %v528 = vld [vmem:[%s117 + $0xc30] sm:$0xff]
        %v529 = vld [vmem:[%s117 + $0xc38] sm:$0xff]
        %v530 = vld [vmem:[%s117 + $0xc40] sm:$0xff]
        %v531 = vld [vmem:[%s117 + $0xc48] sm:$0xff]
        %v532 = vld [vmem:[%s117 + $0xc50] sm:$0xff]
        %v533 = vld [vmem:[%s117 + $0xc58] sm:$0xff]
        %v534 = vld [vmem:[%s117 + $0xc60] sm:$0xff]
        %v535 = vld [vmem:[%s117 + $0xc68] sm:$0xff]
        %v536 = vld [vmem:[%s117 + $0xc70] sm:$0xff]
        %v537 = vld [vmem:[%s117 + $0xc78] sm:$0xff]
        %v538 = vld [vmem:[%s117 + $0xc80] sm:$0xff]
        %v539 = vld [vmem:[%s117 + $0xc88] sm:$0xff]
        %v540 = vld [vmem:[%s117 + $0xc90] sm:$0xff]
        %v541 = vld [vmem:[%s117 + $0xc98] sm:$0xff]
        %v542 = vld [vmem:[%s117 + $0xca0] sm:$0xff]
        %v543 = vld [vmem:[%s117 + $0xca8] sm:$0xff]
        %v544 = vld [vmem:[%s117 + $0xcb0] sm:$0xff]
        %v545 = vld [vmem:[%s117 + $0xcb8] sm:$0xff]
        %v546 = vld [vmem:[%s117 + $0xcc0] sm:$0xff]
        %v547 = vld [vmem:[%s117 + $0xcc8] sm:$0xff]
        %v548 = vld [vmem:[%s117 + $0xcd0] sm:$0xff]
        %v549 = vld [vmem:[%s117 + $0xcd8] sm:$0xff]
        %v550 = vld [vmem:[%s117 + $0xce0] sm:$0xff]
        %v551 = vld [vmem:[%s117 + $0xce8] sm:$0xff]
        %v552 = vld [vmem:[%s117 + $0xcf0] sm:$0xff]
        %v553 = vld [vmem:[%s117 + $0xcf8] sm:$0xff]
        %v554 = vld [vmem:[%s117 + $0xd00] sm:$0xff]
        %v555 = vld [vmem:[%s117 + $0xd08] sm:$0xff]
        %v556 = vld [vmem:[%s117 + $0xd10] sm:$0xff]
        %v557 = vld [vmem:[%s117 + $0xd18] sm:$0xff]
        %v558 = vld [vmem:[%s117 + $0xd20] sm:$0xff]
        %v559 = vld [vmem:[%s117 + $0xd28] sm:$0xff]
        %v560 = vld [vmem:[%s117 + $0xd30] sm:$0xff]
        %v561 = vld [vmem:[%s117 + $0xd38] sm:$0xff]
        %v562 = vld [vmem:[%s117 + $0xd40] sm:$0xff]
        %v563 = vld [vmem:[%s117 + $0xd48] sm:$0xff]
        %v564 = vld [vmem:[%s117 + $0xd50] sm:$0xff]
        %v565 = vld [vmem:[%s117 + $0xd58] sm:$0xff]
        %v566 = vld [vmem:[%s117 + $0xd60] sm:$0xff]
        %v567 = vld [vmem:[%s117 + $0xd68] sm:$0xff]
        %v568 = vld [vmem:[%s117 + $0xd70] sm:$0xff]
        %v569 = vld [vmem:[%s117 + $0xd78] sm:$0xff]
        %v570 = vld [vmem:[%s117 + $0xd80] sm:$0xff]
        %v571 = vld [vmem:[%s117 + $0xd88] sm:$0xff]
        %v572 = vld [vmem:[%s117 + $0xd90] sm:$0xff]
        %v573 = vld [vmem:[%s117 + $0xd98] sm:$0xff]
        %v574 = vld [vmem:[%s117 + $0xda0] sm:$0xff]
        %v575 = vld [vmem:[%s117 + $0xda8] sm:$0xff]
        %v576 = vld [vmem:[%s117 + $0xdb0] sm:$0xff]
        %v577 = vld [vmem:[%s117 + $0xdb8] sm:$0xff]
        %v578 = vld [vmem:[%s117 + $0xdc0] sm:$0xff]
        %v579 = vld [vmem:[%s117 + $0xdc8] sm:$0xff]
        %v580 = vld [vmem:[%s117 + $0xdd0] sm:$0xff]
        %v581 = vld [vmem:[%s117 + $0xdd8] sm:$0xff]
        %v582 = vld [vmem:[%s117 + $0xde0] sm:$0xff]
        %v583 = vld [vmem:[%s117 + $0xde8] sm:$0xff]
        %v584 = vld [vmem:[%s117 + $0xdf0] sm:$0xff]
        %v585 = vld [vmem:[%s117 + $0xdf8] sm:$0xff]
        %v586 = vld [vmem:[%s117 + $0xe00] sm:$0xff]
        %v587 = vld [vmem:[%s117 + $0xe08] sm:$0xff]
        %v588 = vld [vmem:[%s117 + $0xe10] sm:$0xff]
        %v589 = vld [vmem:[%s117 + $0xe18] sm:$0xff]
        %v590 = vld [vmem:[%s117 + $0xe20] sm:$0xff]
        %v591 = vld [vmem:[%s117 + $0xe28] sm:$0xff]
        %v592 = vld [vmem:[%s117 + $0xe30] sm:$0xff]
        %v593 = vld [vmem:[%s117 + $0xe38] sm:$0xff]
        %v594 = vld [vmem:[%s117 + $0xe40] sm:$0xff]
        %v595 = vld [vmem:[%s117 + $0xe48] sm:$0xff]
        %v596 = vld [vmem:[%s117 + $0xe50] sm:$0xff]
        %v597 = vld [vmem:[%s117 + $0xe58] sm:$0xff]
        %v598 = vld [vmem:[%s117 + $0xe60] sm:$0xff]
        %v599 = vld [vmem:[%s117 + $0xe68] sm:$0xff]
        %v600 = vld [vmem:[%s117 + $0xe70] sm:$0xff]
        %v601 = vld [vmem:[%s117 + $0xe78] sm:$0xff]
        %v602 = vld [vmem:[%s117 + $0xe80] sm:$0xff]
        %v603 = vld [vmem:[%s117 + $0xe88] sm:$0xff]
        %v604 = vld [vmem:[%s117 + $0xe90] sm:$0xff]
        %v605 = vld [vmem:[%s117 + $0xe98] sm:$0xff]
        %v606 = vld [vmem:[%s117 + $0xea0] sm:$0xff]
        %v607 = vld [vmem:[%s117 + $0xea8] sm:$0xff]
        %v608 = vld [vmem:[%s117 + $0xeb0] sm:$0xff]
        %v609 = vld [vmem:[%s117 + $0xeb8] sm:$0xff]
        %v610 = vld [vmem:[%s117 + $0xec0] sm:$0xff]
        %v611 = vld [vmem:[%s117 + $0xec8] sm:$0xff]
        %v612 = vld [vmem:[%s117 + $0xed0] sm:$0xff]
        %v613 = vld [vmem:[%s117 + $0xed8] sm:$0xff]
        %v614 = vld [vmem:[%s117 + $0xee0] sm:$0xff]
        %v615 = vld [vmem:[%s117 + $0xee8] sm:$0xff]
        %v616 = vld [vmem:[%s117 + $0xef0] sm:$0xff]
        %v617 = vld [vmem:[%s117 + $0xef8] sm:$0xff]
        %v618 = vld [vmem:[%s117 + $0xf00] sm:$0xff]
        %v619 = vld [vmem:[%s117 + $0xf08] sm:$0xff]
        %v620 = vld [vmem:[%s117 + $0xf10] sm:$0xff]
        %v621 = vld [vmem:[%s117 + $0xf18] sm:$0xff]
        %v622 = vld [vmem:[%s117 + $0xf20] sm:$0xff]
        %v623 = vld [vmem:[%s117 + $0xf28] sm:$0xff]
        %v624 = vld [vmem:[%s117 + $0xf30] sm:$0xff]
        %v625 = vld [vmem:[%s117 + $0xf38] sm:$0xff]
        %v626 = vld [vmem:[%s117 + $0xf40] sm:$0xff]
        %v627 = vld [vmem:[%s117 + $0xf48] sm:$0xff]
        %v628 = vld [vmem:[%s117 + $0xf50] sm:$0xff]
        %v629 = vld [vmem:[%s117 + $0xf58] sm:$0xff]
        %v630 = vld [vmem:[%s117 + $0xf60] sm:$0xff]
        %v631 = vld [vmem:[%s117 + $0xf68] sm:$0xff]
        %v632 = vld [vmem:[%s117 + $0xf70] sm:$0xff]
        %v633 = vld [vmem:[%s117 + $0xf78] sm:$0xff]
        %v634 = vld [vmem:[%s117 + $0xf80] sm:$0xff]
        %v635 = vld [vmem:[%s117 + $0xf88] sm:$0xff]
        %v636 = vld [vmem:[%s117 + $0xf90] sm:$0xff]
        %v637 = vld [vmem:[%s117 + $0xf98] sm:$0xff]
        %v638 = vld [vmem:[%s117 + $0xfa0] sm:$0xff]
        %v639 = vld [vmem:[%s117 + $0xfa8] sm:$0xff]
        %v640 = vld [vmem:[%s117 + $0xfb0] sm:$0xff]
        %v641 = vld [vmem:[%s117 + $0xfb8] sm:$0xff]
        %v642 = vld [vmem:[%s117 + $0xfc0] sm:$0xff]
        %v643 = vld [vmem:[%s117 + $0xfc8] sm:$0xff]
        %v644 = vld [vmem:[%s117 + $0xfd0] sm:$0xff]
        %v645 = vld [vmem:[%s117 + $0xfd8] sm:$0xff]
        %v646 = vld [vmem:[%s117 + $0xfe0] sm:$0xff]
        %v647 = vld [vmem:[%s117 + $0xfe8] sm:$0xff]
        %v648 = vld [vmem:[%s117 + $0xff0] sm:$0xff]
        %v649 = vld [vmem:[%s117 + $0xff8] sm:$0xff]
        %v650 = vld [vmem:[%s117 + $0x1000] sm:$0xff]
        %v651 = vld [vmem:[%s117 + $0x1008] sm:$0xff]
        %v652 = vld [vmem:[%s117 + $0x1010] sm:$0xff]
        %v653 = vld [vmem:[%s117 + $0x1018] sm:$0xff]
        %v654 = vld [vmem:[%s117 + $0x1020] sm:$0xff]
        %v655 = vld [vmem:[%s117 + $0x1028] sm:$0xff]
        %v656 = vld [vmem:[%s117 + $0x1030] sm:$0xff]
        %v657 = vld [vmem:[%s117 + $0x1038] sm:$0xff]
        %v658 = vld [vmem:[%s117 + $0x1040] sm:$0xff]
        %v659 = vld [vmem:[%s117 + $0x1048] sm:$0xff]
        %v660 = vld [vmem:[%s117 + $0x1050] sm:$0xff]
        %v661 = vld [vmem:[%s117 + $0x1058] sm:$0xff]
        %v662 = vld [vmem:[%s117 + $0x1060] sm:$0xff]
        %v663 = vld [vmem:[%s117 + $0x1068] sm:$0xff]
        %v664 = vld [vmem:[%s117 + $0x1070] sm:$0xff]
        %v665 = vld [vmem:[%s117 + $0x1078] sm:$0xff]
        %v666 = vld [vmem:[%s117 + $0x1080] sm:$0xff]
        %v667 = vld [vmem:[%s117 + $0x1088] sm:$0xff]
        %v668 = vld [vmem:[%s117 + $0x1090] sm:$0xff]
        %v669 = vld [vmem:[%s117 + $0x1098] sm:$0xff]
        %v670 = vld [vmem:[%s117 + $0x10a0] sm:$0xff]
        %v671 = vld [vmem:[%s117 + $0x10a8] sm:$0xff]
        %v672 = vld [vmem:[%s117 + $0x10b0] sm:$0xff]
        %v673 = vld [vmem:[%s117 + $0x10b8] sm:$0xff]
        %v674 = vld [vmem:[%s117 + $0x10c0] sm:$0xff]
        %v675 = vld [vmem:[%s117 + $0x10c8] sm:$0xff]
        %v676 = vld [vmem:[%s117 + $0x10d0] sm:$0xff]
        %v677 = vld [vmem:[%s117 + $0x10d8] sm:$0xff]
        %v678 = vld [vmem:[%s117 + $0x10e0] sm:$0xff]
        %v679 = vld [vmem:[%s117 + $0x10e8] sm:$0xff]
        %v680 = vld [vmem:[%s117 + $0x10f0] sm:$0xff]
        %v681 = vld [vmem:[%s117 + $0x10f8] sm:$0xff]
        %v682 = vld [vmem:[%s117 + $0x1100] sm:$0xff]
        %v683 = vld [vmem:[%s117 + $0x1108] sm:$0xff]
        %v684 = vld [vmem:[%s117 + $0x1110] sm:$0xff]
        %v685 = vld [vmem:[%s117 + $0x1118] sm:$0xff]
        %v686 = vld [vmem:[%s117 + $0x1120] sm:$0xff]
        %v687 = vld [vmem:[%s117 + $0x1128] sm:$0xff]
        %v688 = vld [vmem:[%s117 + $0x1130] sm:$0xff]
        %v689 = vld [vmem:[%s117 + $0x1138] sm:$0xff]
        %v690 = vld [vmem:[%s117 + $0x1140] sm:$0xff]
        %v691 = vld [vmem:[%s117 + $0x1148] sm:$0xff]
        %v692 = vld [vmem:[%s117 + $0x1150] sm:$0xff]
        %v693 = vld [vmem:[%s117 + $0x1158] sm:$0xff]
        %v694 = vld [vmem:[%s117 + $0x1160] sm:$0xff]
        %v695 = vld [vmem:[%s117 + $0x1168] sm:$0xff]
        %v696 = vld [vmem:[%s117 + $0x1170] sm:$0xff]
        %v697 = vld [vmem:[%s117 + $0x1178] sm:$0xff]
        %v698 = vld [vmem:[%s117 + $0x1180] sm:$0xff]
        %v699 = vld [vmem:[%s117 + $0x1188] sm:$0xff]
        %v700 = vld [vmem:[%s117 + $0x1190] sm:$0xff]
        %v701 = vld [vmem:[%s117 + $0x1198] sm:$0xff]
        %v702 = vld [vmem:[%s117 + $0x11a0] sm:$0xff]
        %v703 = vld [vmem:[%s117 + $0x11a8] sm:$0xff]
        %v704 = vld [vmem:[%s117 + $0x11b0] sm:$0xff]
        %v705 = vld [vmem:[%s117 + $0x11b8] sm:$0xff]
        %v706 = vld [vmem:[%s117 + $0x11c0] sm:$0xff]
        %v707 = vld [vmem:[%s117 + $0x11c8] sm:$0xff]
        %v708 = vld [vmem:[%s117 + $0x11d0] sm:$0xff]
        %v709 = vld [vmem:[%s117 + $0x11d8] sm:$0xff]
        %v710 = vld [vmem:[%s117 + $0x11e0] sm:$0xff]
        %v711 = vld [vmem:[%s117 + $0x11e8] sm:$0xff]
        %v712 = vld [vmem:[%s117 + $0x11f0] sm:$0xff]
        %v713 = vld [vmem:[%s117 + $0x11f8] sm:$0xff]
        %v714 = vld [vmem:[%s117 + $0x1200] sm:$0xff]
        %v715 = vld [vmem:[%s117 + $0x1208] sm:$0xff]
        %v716 = vld [vmem:[%s117 + $0x1210] sm:$0xff]
        %v717 = vld [vmem:[%s117 + $0x1218] sm:$0xff]
        %v718 = vld [vmem:[%s117 + $0x1220] sm:$0xff]
        %v719 = vld [vmem:[%s117 + $0x1228] sm:$0xff]
        %v720 = vld [vmem:[%s117 + $0x1230] sm:$0xff]
        %v721 = vld [vmem:[%s117 + $0x1238] sm:$0xff]
        %v722 = vld [vmem:[%s117 + $0x1240] sm:$0xff]
        %v723 = vld [vmem:[%s117 + $0x1248] sm:$0xff]
        %v724 = vld [vmem:[%s117 + $0x1250] sm:$0xff]
        %v725 = vld [vmem:[%s117 + $0x1258] sm:$0xff]
        %v726 = vld [vmem:[%s117 + $0x1260] sm:$0xff]
        %v727 = vld [vmem:[%s117 + $0x1268] sm:$0xff]
        %v728 = vld [vmem:[%s117 + $0x1270] sm:$0xff]
        %v729 = vld [vmem:[%s117 + $0x1278] sm:$0xff]
        %v730 = vld [vmem:[%s117 + $0x1280] sm:$0xff]
        %v731 = vld [vmem:[%s117 + $0x1288] sm:$0xff]
        %v732 = vld [vmem:[%s117 + $0x1290] sm:$0xff]
        %v733 = vld [vmem:[%s117 + $0x1298] sm:$0xff]
        %v734 = vld [vmem:[%s117 + $0x12a0] sm:$0xff]
        %v735 = vld [vmem:[%s117 + $0x12a8] sm:$0xff]
        %v736 = vld [vmem:[%s117 + $0x12b0] sm:$0xff]
        %v737 = vld [vmem:[%s117 + $0x12b8] sm:$0xff]
        %v738 = vld [vmem:[%s117 + $0x12c0] sm:$0xff]
        %v739 = vld [vmem:[%s117 + $0x12c8] sm:$0xff]
        %v740 = vld [vmem:[%s117 + $0x12d0] sm:$0xff]
        %v741 = vld [vmem:[%s117 + $0x12d8] sm:$0xff]
        %v742 = vld [vmem:[%s117 + $0x12e0] sm:$0xff]
        %v743 = vld [vmem:[%s117 + $0x12e8] sm:$0xff]
        %v744 = vld [vmem:[%s117 + $0x12f0] sm:$0xff]
        %v745 = vld [vmem:[%s117 + $0x12f8] sm:$0xff]
        %v746 = vld [vmem:[%s117 + $0x1300] sm:$0xff]
        %v747 = vld [vmem:[%s117 + $0x1308] sm:$0xff]
        %v748 = vld [vmem:[%s117 + $0x1310] sm:$0xff]
        %v749 = vld [vmem:[%s117 + $0x1318] sm:$0xff]
        %v750 = vld [vmem:[%s117 + $0x1320] sm:$0xff]
        %v751 = vld [vmem:[%s117 + $0x1328] sm:$0xff]
        %v752 = vld [vmem:[%s117 + $0x1330] sm:$0xff]
        %v753 = vld [vmem:[%s117 + $0x1338] sm:$0xff]
        %v754 = vld [vmem:[%s117 + $0x1340] sm:$0xff]
        %v755 = vld [vmem:[%s117 + $0x1348] sm:$0xff]
        %v756 = vld [vmem:[%s117 + $0x1350] sm:$0xff]
        %v757 = vld [vmem:[%s117 + $0x1358] sm:$0xff]
        %v758 = vld [vmem:[%s117 + $0x1360] sm:$0xff]
        %v759 = vld [vmem:[%s117 + $0x1368] sm:$0xff]
        %v760 = vld [vmem:[%s117 + $0x1370] sm:$0xff]
        %v761 = vld [vmem:[%s117 + $0x1378] sm:$0xff]
        %v762 = vld [vmem:[%s117 + $0x1380] sm:$0xff]
        %v763 = vld [vmem:[%s117 + $0x1388] sm:$0xff]
        %v764 = vld [vmem:[%s117 + $0x1390] sm:$0xff]
        %v765 = vld [vmem:[%s117 + $0x1398] sm:$0xff]
        %v766 = vld [vmem:[%s117 + $0x13a0] sm:$0xff]
        %v767 = vld [vmem:[%s117 + $0x13a8] sm:$0xff]
        %v768 = vld [vmem:[%s117 + $0x13b0] sm:$0xff]
        %v769 = vld [vmem:[%s117 + $0x13b8] sm:$0xff]
        %v770 = vld [vmem:[%s117 + $0x13c0] sm:$0xff]
        %v771 = vld [vmem:[%s117 + $0x13c8] sm:$0xff]
        %v772 = vld [vmem:[%s117 + $0x13d0] sm:$0xff]
        %v773 = vld [vmem:[%s117 + $0x13d8] sm:$0xff]
        %v774 = vld [vmem:[%s117 + $0x13e0] sm:$0xff]
        %v775 = vld [vmem:[%s117 + $0x13e8] sm:$0xff]
        %v776 = vld [vmem:[%s117 + $0x13f0] sm:$0xff]
        %v777 = vld [vmem:[%s117 + $0x13f8] sm:$0xff]
        %v778 = vld [vmem:[%s117 + $0x1400] sm:$0xff]
        %v779 = vld [vmem:[%s117 + $0x1408] sm:$0xff]
        %v780 = vld [vmem:[%s117 + $0x1410] sm:$0xff]
        %v781 = vld [vmem:[%s117 + $0x1418] sm:$0xff]
        %v782 = vld [vmem:[%s117 + $0x1420] sm:$0xff]
        %v783 = vld [vmem:[%s117 + $0x1428] sm:$0xff]
        %v784 = vld [vmem:[%s117 + $0x1430] sm:$0xff]
        %v785 = vld [vmem:[%s117 + $0x1438] sm:$0xff]
        %v786 = vld [vmem:[%s117 + $0x1440] sm:$0xff]
        %v787 = vld [vmem:[%s117 + $0x1448] sm:$0xff]
        %v788 = vld [vmem:[%s117 + $0x1450] sm:$0xff]
        %v789 = vld [vmem:[%s117 + $0x1458] sm:$0xff]
        %v790 = vld [vmem:[%s117 + $0x1460] sm:$0xff]
        %v791 = vld [vmem:[%s117 + $0x1468] sm:$0xff]
        %v792 = vld [vmem:[%s117 + $0x1470] sm:$0xff]
        %v793 = vld [vmem:[%s117 + $0x1478] sm:$0xff]
        %v794 = vld [vmem:[%s117 + $0x1480] sm:$0xff]
        %v795 = vld [vmem:[%s117 + $0x1488] sm:$0xff]
        %v796 = vld [vmem:[%s117 + $0x1490] sm:$0xff]
        %v797 = vld [vmem:[%s117 + $0x1498] sm:$0xff]
        %v798 = vld [vmem:[%s117 + $0x14a0] sm:$0xff]
        %v799 = vld [vmem:[%s117 + $0x14a8] sm:$0xff]
        %v800 = vld [vmem:[%s117 + $0x14b0] sm:$0xff]
        %v801 = vld [vmem:[%s117 + $0x14b8] sm:$0xff]
        %v802 = vld [vmem:[%s117 + $0x14c0] sm:$0xff]
        %v803 = vld [vmem:[%s117 + $0x14c8] sm:$0xff]
        %v804 = vld [vmem:[%s117 + $0x14d0] sm:$0xff]
        %v805 = vld [vmem:[%s117 + $0x14d8] sm:$0xff]
        %v806 = vld [vmem:[%s117 + $0x14e0] sm:$0xff]
        %v807 = vld [vmem:[%s117 + $0x14e8] sm:$0xff]
        %v808 = vld [vmem:[%s117 + $0x14f0] sm:$0xff]
        %v809 = vld [vmem:[%s117 + $0x14f8] sm:$0xff]
        %v810 = vld [vmem:[%s117 + $0x1500] sm:$0xff]
        %v811 = vld [vmem:[%s117 + $0x1508] sm:$0xff]
        %v812 = vld [vmem:[%s117 + $0x1510] sm:$0xff]
        %v813 = vld [vmem:[%s117 + $0x1518] sm:$0xff]
        %v814 = vld [vmem:[%s117 + $0x1520] sm:$0xff]
        %v815 = vld [vmem:[%s117 + $0x1528] sm:$0xff]
        %v816 = vld [vmem:[%s117 + $0x1530] sm:$0xff]
        %v817 = vld [vmem:[%s117 + $0x1538] sm:$0xff]
        %v818 = vld [vmem:[%s117 + $0x1540] sm:$0xff]
        %v819 = vld [vmem:[%s117 + $0x1548] sm:$0xff]
        %v820 = vld [vmem:[%s117 + $0x1550] sm:$0xff]
        %v821 = vld [vmem:[%s117 + $0x1558] sm:$0xff]
        %v822 = vld [vmem:[%s117 + $0x1560] sm:$0xff]
        %v823 = vld [vmem:[%s117 + $0x1568] sm:$0xff]
        %v824 = vld [vmem:[%s117 + $0x1570] sm:$0xff]
        %v825 = vld [vmem:[%s117 + $0x1578] sm:$0xff]
        %v826 = vld [vmem:[%s117 + $0x1580] sm:$0xff]
        %v827 = vld [vmem:[%s117 + $0x1588] sm:$0xff]
        %v828 = vld [vmem:[%s117 + $0x1590] sm:$0xff]
        %v829 = vld [vmem:[%s117 + $0x1598] sm:$0xff]
        %v830 = vld [vmem:[%s117 + $0x15a0] sm:$0xff]
        %v831 = vld [vmem:[%s117 + $0x15a8] sm:$0xff]
        %v832 = vld [vmem:[%s117 + $0x15b0] sm:$0xff]
        %v833 = vld [vmem:[%s117 + $0x15b8] sm:$0xff]
        %v834 = vld [vmem:[%s117 + $0x15c0] sm:$0xff]
        %v835 = vld [vmem:[%s117 + $0x15c8] sm:$0xff]
        %v836 = vld [vmem:[%s117 + $0x15d0] sm:$0xff]
        %v837 = vld [vmem:[%s117 + $0x15d8] sm:$0xff]
        %v838 = vld [vmem:[%s117 + $0x15e0] sm:$0xff]
        %v839 = vld [vmem:[%s117 + $0x15e8] sm:$0xff]
        %v840 = vld [vmem:[%s117 + $0x15f0] sm:$0xff]
        %v841 = vld [vmem:[%s117 + $0x15f8] sm:$0xff]
        %v842 = vld [vmem:[%s117 + $0x1600] sm:$0xff]
        %v843 = vld [vmem:[%s117 + $0x1608] sm:$0xff]
        %v844 = vld [vmem:[%s117 + $0x1610] sm:$0xff]
        %v845 = vld [vmem:[%s117 + $0x1618] sm:$0xff]
        %v846 = vld [vmem:[%s117 + $0x1620] sm:$0xff]
        %v847 = vld [vmem:[%s117 + $0x1628] sm:$0xff]
        %v848 = vld [vmem:[%s117 + $0x1630] sm:$0xff]
        %v849 = vld [vmem:[%s117 + $0x1638] sm:$0xff]
        %v850 = vld [vmem:[%s117 + $0x1640] sm:$0xff]
        %v851 = vld [vmem:[%s117 + $0x1648] sm:$0xff]
        %v852 = vld [vmem:[%s117 + $0x1650] sm:$0xff]
        %v853 = vld [vmem:[%s117 + $0x1658] sm:$0xff]
        %v854 = vld [vmem:[%s117 + $0x1660] sm:$0xff]
        %v855 = vld [vmem:[%s117 + $0x1668] sm:$0xff]
        %v856 = vld [vmem:[%s117 + $0x1670] sm:$0xff]
        %v857 = vld [vmem:[%s117 + $0x1678] sm:$0xff]
        %v858 = vld [vmem:[%s117 + $0x1680] sm:$0xff]
        %v859 = vld [vmem:[%s117 + $0x1688] sm:$0xff]
        %v860 = vld [vmem:[%s117 + $0x1690] sm:$0xff]
        %v861 = vld [vmem:[%s117 + $0x1698] sm:$0xff]
        %v862 = vld [vmem:[%s117 + $0x16a0] sm:$0xff]
        %v863 = vld [vmem:[%s117 + $0x16a8] sm:$0xff]
        %v864 = vld [vmem:[%s117 + $0x16b0] sm:$0xff]
        %v865 = vld [vmem:[%s117 + $0x16b8] sm:$0xff]
        %v866 = vld [vmem:[%s117 + $0x16c0] sm:$0xff]
        %v867 = vld [vmem:[%s117 + $0x16c8] sm:$0xff]
        %v868 = vld [vmem:[%s117 + $0x16d0] sm:$0xff]
        %v869 = vld [vmem:[%s117 + $0x16d8] sm:$0xff]
        %v870 = vld [vmem:[%s117 + $0x16e0] sm:$0xff]
        %v871 = vld [vmem:[%s117 + $0x16e8] sm:$0xff]
        %v872 = vld [vmem:[%s117 + $0x16f0] sm:$0xff]
        %v873 = vld [vmem:[%s117 + $0x16f8] sm:$0xff]
        %v874 = vld [vmem:[%s117 + $0x1700] sm:$0xff]
        %v875 = vld [vmem:[%s117 + $0x1708] sm:$0xff]
        %v876 = vld [vmem:[%s117 + $0x1710] sm:$0xff]
        %v877 = vld [vmem:[%s117 + $0x1718] sm:$0xff]
        %v878 = vld [vmem:[%s117 + $0x1720] sm:$0xff]
        %v879 = vld [vmem:[%s117 + $0x1728] sm:$0xff]
        %v880 = vld [vmem:[%s117 + $0x1730] sm:$0xff]
        %v881 = vld [vmem:[%s117 + $0x1738] sm:$0xff]
        %v882 = vld [vmem:[%s117 + $0x1740] sm:$0xff]
        %v883 = vld [vmem:[%s117 + $0x1748] sm:$0xff]
        %v884 = vld [vmem:[%s117 + $0x1750] sm:$0xff]
        %v885 = vld [vmem:[%s117 + $0x1758] sm:$0xff]
        %v886 = vld [vmem:[%s117 + $0x1760] sm:$0xff]
        %v887 = vld [vmem:[%s117 + $0x1768] sm:$0xff]
        %v888 = vld [vmem:[%s117 + $0x1770] sm:$0xff]
        %v889 = vld [vmem:[%s117 + $0x1778] sm:$0xff]
        %v890 = vld [vmem:[%s117 + $0x1780] sm:$0xff]
        %v891 = vld [vmem:[%s117 + $0x1788] sm:$0xff]
        %v892 = vld [vmem:[%s117 + $0x1790] sm:$0xff]
        %v893 = vld [vmem:[%s117 + $0x1798] sm:$0xff]
        %v894 = vld [vmem:[%s117 + $0x17a0] sm:$0xff]
        %v895 = vld [vmem:[%s117 + $0x17a8] sm:$0xff]
        %v896 = vld [vmem:[%s117 + $0x17b0] sm:$0xff]
        %v897 = vld [vmem:[%s117 + $0x17b8] sm:$0xff]
        %v898 = vld [vmem:[%s117 + $0x17c0] sm:$0xff]
        %v899 = vld [vmem:[%s117 + $0x17c8] sm:$0xff]
        %v900 = vld [vmem:[%s117 + $0x17d0] sm:$0xff]
        %v901 = vld [vmem:[%s117 + $0x17d8] sm:$0xff]
        %v902 = vld [vmem:[%s117 + $0x17e0] sm:$0xff]
        %v903 = vld [vmem:[%s117 + $0x17e8] sm:$0xff]
        %v904 = vld [vmem:[%s117 + $0x17f0] sm:$0xff]
        %v905 = vld [vmem:[%s117 + $0x17f8] sm:$0xff]
        %v906 = vld [vmem:[%s117 + $0x1800] sm:$0xff]
        %v907 = vld [vmem:[%s117 + $0x1808] sm:$0xff]
        %v908 = vld [vmem:[%s117 + $0x1810] sm:$0xff]
        %v909 = vld [vmem:[%s117 + $0x1818] sm:$0xff]
        %v910 = vld [vmem:[%s117 + $0x1820] sm:$0xff]
        %v911 = vld [vmem:[%s117 + $0x1828] sm:$0xff]
        %v912 = vld [vmem:[%s117 + $0x1830] sm:$0xff]
        %v913 = vld [vmem:[%s117 + $0x1838] sm:$0xff]
        %v914 = vld [vmem:[%s117 + $0x1840] sm:$0xff]
        %v915 = vld [vmem:[%s117 + $0x1848] sm:$0xff]
        %v916 = vld [vmem:[%s117 + $0x1850] sm:$0xff]
        %v917 = vld [vmem:[%s117 + $0x1858] sm:$0xff]
        %v918 = vld [vmem:[%s117 + $0x1860] sm:$0xff]
        %v919 = vld [vmem:[%s117 + $0x1868] sm:$0xff]
        %v920 = vld [vmem:[%s117 + $0x1870] sm:$0xff]
        %v921 = vld [vmem:[%s117 + $0x1878] sm:$0xff]
        %v922 = vld [vmem:[%s117 + $0x1880] sm:$0xff]
        %v923 = vld [vmem:[%s117 + $0x1888] sm:$0xff]
        %v924 = vld [vmem:[%s117 + $0x1890] sm:$0xff]
        %v925 = vld [vmem:[%s117 + $0x1898] sm:$0xff]
        %v926 = vld [vmem:[%s117 + $0x18a0] sm:$0xff]
        %v927 = vld [vmem:[%s117 + $0x18a8] sm:$0xff]
        %v928 = vld [vmem:[%s117 + $0x18b0] sm:$0xff]
        %v929 = vld [vmem:[%s117 + $0x18b8] sm:$0xff]
        %v930 = vld [vmem:[%s117 + $0x18c0] sm:$0xff]
        %v931 = vld [vmem:[%s117 + $0x18c8] sm:$0xff]
        %v932 = vld [vmem:[%s117 + $0x18d0] sm:$0xff]
        %v933 = vld [vmem:[%s117 + $0x18d8] sm:$0xff]
        %v934 = vld [vmem:[%s117 + $0x18e0] sm:$0xff]
        %v935 = vld [vmem:[%s117 + $0x18e8] sm:$0xff]
        %v936 = vld [vmem:[%s117 + $0x18f0] sm:$0xff]
        %v937 = vld [vmem:[%s117 + $0x18f8] sm:$0xff]
        %v938 = vld [vmem:[%s117 + $0x1900] sm:$0xff]
        %v939 = vld [vmem:[%s117 + $0x1908] sm:$0xff]
        %v940 = vld [vmem:[%s117 + $0x1910] sm:$0xff]
        %v941 = vld [vmem:[%s117 + $0x1918] sm:$0xff]
        %v942 = vld [vmem:[%s117 + $0x1920] sm:$0xff]
        %v943 = vld [vmem:[%s117 + $0x1928] sm:$0xff]
        %v944 = vld [vmem:[%s117 + $0x1930] sm:$0xff]
        %v945 = vld [vmem:[%s117 + $0x1938] sm:$0xff]
        %v946 = vld [vmem:[%s117 + $0x1940] sm:$0xff]
        %v947 = vld [vmem:[%s117 + $0x1948] sm:$0xff]
        %v948 = vld [vmem:[%s117 + $0x1950] sm:$0xff]
        %v949 = vld [vmem:[%s117 + $0x1958] sm:$0xff]
        %v950 = vld [vmem:[%s117 + $0x1960] sm:$0xff]
        %v951 = vld [vmem:[%s117 + $0x1968] sm:$0xff]
        %v952 = vld [vmem:[%s117 + $0x1970] sm:$0xff]
        %v953 = vld [vmem:[%s117 + $0x1978] sm:$0xff]
        %v954 = vld [vmem:[%s117 + $0x1980] sm:$0xff]
        %v955 = vld [vmem:[%s117 + $0x1988] sm:$0xff]
        %v956 = vld [vmem:[%s117 + $0x1990] sm:$0xff]
        %v957 = vld [vmem:[%s117 + $0x1998] sm:$0xff]
        %v958 = vld [vmem:[%s117 + $0x19a0] sm:$0xff]
        %v959 = vld [vmem:[%s117 + $0x19a8] sm:$0xff]
        %v960 = vld [vmem:[%s117 + $0x19b0] sm:$0xff]
        %v961 = vld [vmem:[%s117 + $0x19b8] sm:$0xff]
        %v962 = vld [vmem:[%s117 + $0x19c0] sm:$0xff]
        %v963 = vld [vmem:[%s117 + $0x19c8] sm:$0xff]
        %v964 = vld [vmem:[%s117 + $0x19d0] sm:$0xff]
        %v965 = vld [vmem:[%s117 + $0x19d8] sm:$0xff]
        %v966 = vld [vmem:[%s117 + $0x19e0] sm:$0xff]
        %v967 = vld [vmem:[%s117 + $0x19e8] sm:$0xff]
        %v968 = vld [vmem:[%s117 + $0x19f0] sm:$0xff]
        %v969 = vld [vmem:[%s117 + $0x19f8] sm:$0xff]
        %v970 = vld [vmem:[%s117 + $0x1a00] sm:$0xff]
        %v971 = vld [vmem:[%s117 + $0x1a08] sm:$0xff]
        %v972 = vld [vmem:[%s117 + $0x1a10] sm:$0xff]
        %v973 = vld [vmem:[%s117 + $0x1a18] sm:$0xff]
        %v974 = vld [vmem:[%s117 + $0x1a20] sm:$0xff]
        %v975 = vld [vmem:[%s117 + $0x1a28] sm:$0xff]
        %v976 = vld [vmem:[%s117 + $0x1a30] sm:$0xff]
        %v977 = vld [vmem:[%s117 + $0x1a38] sm:$0xff]
        %v978 = vld [vmem:[%s117 + $0x1a40] sm:$0xff]
        %v979 = vld [vmem:[%s117 + $0x1a48] sm:$0xff]
        %v980 = vld [vmem:[%s117 + $0x1a50] sm:$0xff]
        %v981 = vld [vmem:[%s117 + $0x1a58] sm:$0xff]
        %v982 = vld [vmem:[%s117 + $0x1a60] sm:$0xff]
        %v983 = vld [vmem:[%s117 + $0x1a68] sm:$0xff]
        %v984 = vld [vmem:[%s117 + $0x1a70] sm:$0xff]
        %v985 = vld [vmem:[%s117 + $0x1a78] sm:$0xff]
        %v986 = vld [vmem:[%s117 + $0x1a80] sm:$0xff]
        %v987 = vld [vmem:[%s117 + $0x1a88] sm:$0xff]
        %v988 = vld [vmem:[%s117 + $0x1a90] sm:$0xff]
        %v989 = vld [vmem:[%s117 + $0x1a98] sm:$0xff]
        %v990 = vld [vmem:[%s117 + $0x1aa0] sm:$0xff]
        %v991 = vld [vmem:[%s117 + $0x1aa8] sm:$0xff]
        %v992 = vld [vmem:[%s117 + $0x1ab0] sm:$0xff]
        %v993 = vld [vmem:[%s117 + $0x1ab8] sm:$0xff]
        %v994 = vld [vmem:[%s117 + $0x1ac0] sm:$0xff]
        %v995 = vld [vmem:[%s117 + $0x1ac8] sm:$0xff]
        %v996 = vld [vmem:[%s117 + $0x1ad0] sm:$0xff]
        %v997 = vld [vmem:[%s117 + $0x1ad8] sm:$0xff]
        %v998 = vld [vmem:[%s117 + $0x1ae0] sm:$0xff]
        %v999 = vld [vmem:[%s117 + $0x1ae8] sm:$0xff]
        %v1000 = vld [vmem:[%s117 + $0x1af0] sm:$0xff]
        %v1001 = vld [vmem:[%s117 + $0x1af8] sm:$0xff]
        %v1002 = vld [vmem:[%s117 + $0x1b00] sm:$0xff]
        %v1003 = vld [vmem:[%s117 + $0x1b08] sm:$0xff]
        %v1004 = vld [vmem:[%s117 + $0x1b10] sm:$0xff]
        %v1005 = vld [vmem:[%s117 + $0x1b18] sm:$0xff]
        %v1006 = vld [vmem:[%s117 + $0x1b20] sm:$0xff]
        %v1007 = vld [vmem:[%s117 + $0x1b28] sm:$0xff]
        %v1008 = vld [vmem:[%s117 + $0x1b30] sm:$0xff]
        %v1009 = vld [vmem:[%s117 + $0x1b38] sm:$0xff]
        %v1010 = vld [vmem:[%s117 + $0x1b40] sm:$0xff]
        %v1011 = vld [vmem:[%s117 + $0x1b48] sm:$0xff]
        %v1012 = vld [vmem:[%s117 + $0x1b50] sm:$0xff]
        %v1013 = vld [vmem:[%s117 + $0x1b58] sm:$0xff]
        %v1014 = vld [vmem:[%s117 + $0x1b60] sm:$0xff]
        %v1015 = vld [vmem:[%s117 + $0x1b68] sm:$0xff]
        %v1016 = vld [vmem:[%s117 + $0x1b70] sm:$0xff]
        %v1017 = vld [vmem:[%s117 + $0x1b78] sm:$0xff]
        %v1018 = vld [vmem:[%s117 + $0x1b80] sm:$0xff]
        %v1019 = vld [vmem:[%s117 + $0x1b88] sm:$0xff]
        %v1020 = vld [vmem:[%s117 + $0x1b90] sm:$0xff]
        %v1021 = vld [vmem:[%s117 + $0x1b98] sm:$0xff]
        %v1022 = vld [vmem:[%s117 + $0x1ba0] sm:$0xff]
        %v1023 = vld [vmem:[%s117 + $0x1ba8] sm:$0xff]
        %v1024 = vld [vmem:[%s117 + $0x1bb0] sm:$0xff]
        %v1025 = vld [vmem:[%s117 + $0x1bb8] sm:$0xff]
        %v1026 = vld [vmem:[%s117 + $0x1bc0] sm:$0xff]
        %v1027 = vld [vmem:[%s117 + $0x1bc8] sm:$0xff]
        %v1028 = vld [vmem:[%s117 + $0x1bd0] sm:$0xff]
        %v1029 = vld [vmem:[%s117 + $0x1bd8] sm:$0xff]
        %v1030 = vld [vmem:[%s117 + $0x1be0] sm:$0xff]
        %v1031 = vld [vmem:[%s117 + $0x1be8] sm:$0xff]
        %v1032 = vld [vmem:[%s117 + $0x1bf0] sm:$0xff]
        %v1033 = vld [vmem:[%s117 + $0x1bf8] sm:$0xff]
        %v1034 = vld [vmem:[%s117 + $0x1c00] sm:$0xff]
        %v1035 = vld [vmem:[%s117 + $0x1c08] sm:$0xff]
        %v1036 = vld [vmem:[%s117 + $0x1c10] sm:$0xff]
        %v1037 = vld [vmem:[%s117 + $0x1c18] sm:$0xff]
        %v1038 = vld [vmem:[%s117 + $0x1c20] sm:$0xff]
        %v1039 = vld [vmem:[%s117 + $0x1c28] sm:$0xff]
        %v1040 = vld [vmem:[%s117 + $0x1c30] sm:$0xff]
        %v1041 = vld [vmem:[%s117 + $0x1c38] sm:$0xff]
        %v1042 = vld [vmem:[%s117 + $0x1c40] sm:$0xff]
        %v1043 = vld [vmem:[%s117 + $0x1c48] sm:$0xff]
        %v1044 = vld [vmem:[%s117 + $0x1c50] sm:$0xff]
        %v1045 = vld [vmem:[%s117 + $0x1c58] sm:$0xff]
        %v1046 = vld [vmem:[%s117 + $0x1c60] sm:$0xff]
        %v1047 = vld [vmem:[%s117 + $0x1c68] sm:$0xff]
        %v1048 = vld [vmem:[%s117 + $0x1c70] sm:$0xff]
        %v1049 = vld [vmem:[%s117 + $0x1c78] sm:$0xff]
        %v1050 = vld [vmem:[%s117 + $0x1c80] sm:$0xff]
        %v1051 = vld [vmem:[%s117 + $0x1c88] sm:$0xff]
        %v1052 = vld [vmem:[%s117 + $0x1c90] sm:$0xff]
        %v1053 = vld [vmem:[%s117 + $0x1c98] sm:$0xff]
        %v1054 = vld [vmem:[%s117 + $0x1ca0] sm:$0xff]
        %v1055 = vld [vmem:[%s117 + $0x1ca8] sm:$0xff]
        %v1056 = vld [vmem:[%s117 + $0x1cb0] sm:$0xff]
        %v1057 = vld [vmem:[%s117 + $0x1cb8] sm:$0xff]
        %v1058 = vld [vmem:[%s117 + $0x1cc0] sm:$0xff]
        %v1059 = vld [vmem:[%s117 + $0x1cc8] sm:$0xff]
        %v1060 = vld [vmem:[%s117 + $0x1cd0] sm:$0xff]
        %v1061 = vld [vmem:[%s117 + $0x1cd8] sm:$0xff]
        %v1062 = vld [vmem:[%s117 + $0x1ce0] sm:$0xff]
        %v1063 = vld [vmem:[%s117 + $0x1ce8] sm:$0xff]
        %v1064 = vld [vmem:[%s117 + $0x1cf0] sm:$0xff]
        %v1065 = vld [vmem:[%s117 + $0x1cf8] sm:$0xff]
        %v1066 = vld [vmem:[%s117 + $0x1d00] sm:$0xff]
        %v1067 = vld [vmem:[%s117 + $0x1d08] sm:$0xff]
        %v1068 = vld [vmem:[%s117 + $0x1d10] sm:$0xff]
        %v1069 = vld [vmem:[%s117 + $0x1d18] sm:$0xff]
        %v1070 = vld [vmem:[%s117 + $0x1d20] sm:$0xff]
        %v1071 = vld [vmem:[%s117 + $0x1d28] sm:$0xff]
        %v1072 = vld [vmem:[%s117 + $0x1d30] sm:$0xff]
        %v1073 = vld [vmem:[%s117 + $0x1d38] sm:$0xff]
        %v1074 = vld [vmem:[%s117 + $0x1d40] sm:$0xff]
        %v1075 = vld [vmem:[%s117 + $0x1d48] sm:$0xff]
        %v1076 = vld [vmem:[%s117 + $0x1d50] sm:$0xff]
        %v1077 = vld [vmem:[%s117 + $0x1d58] sm:$0xff]
        %v1078 = vld [vmem:[%s117 + $0x1d60] sm:$0xff]
        %v1079 = vld [vmem:[%s117 + $0x1d68] sm:$0xff]
        %v1080 = vld [vmem:[%s117 + $0x1d70] sm:$0xff]
        %v1081 = vld [vmem:[%s117 + $0x1d78] sm:$0xff]
        %v1082 = vld [vmem:[%s117 + $0x1d80] sm:$0xff]
        %v1083 = vld [vmem:[%s117 + $0x1d88] sm:$0xff]
        %v1084 = vld [vmem:[%s117 + $0x1d90] sm:$0xff]
        %v1085 = vld [vmem:[%s117 + $0x1d98] sm:$0xff]
        %v1086 = vld [vmem:[%s117 + $0x1da0] sm:$0xff]
        %v1087 = vld [vmem:[%s117 + $0x1da8] sm:$0xff]
        %v1088 = vld [vmem:[%s117 + $0x1db0] sm:$0xff]
        %v1089 = vld [vmem:[%s117 + $0x1db8] sm:$0xff]
        %v1090 = vld [vmem:[%s117 + $0x1dc0] sm:$0xff]
        %v1091 = vld [vmem:[%s117 + $0x1dc8] sm:$0xff]
        %v1092 = vld [vmem:[%s117 + $0x1dd0] sm:$0xff]
        %v1093 = vld [vmem:[%s117 + $0x1dd8] sm:$0xff]
        %v1094 = vld [vmem:[%s117 + $0x1de0] sm:$0xff]
        %v1095 = vld [vmem:[%s117 + $0x1de8] sm:$0xff]
        %v1096 = vld [vmem:[%s117 + $0x1df0] sm:$0xff]
        %v1097 = vld [vmem:[%s117 + $0x1df8] sm:$0xff]
        %v1098 = vld [vmem:[%s117 + $0x1e00] sm:$0xff]
        %v1099 = vld [vmem:[%s117 + $0x1e08] sm:$0xff]
        %v1100 = vld [vmem:[%s117 + $0x1e10] sm:$0xff]
        %v1101 = vld [vmem:[%s117 + $0x1e18] sm:$0xff]
        %v1102 = vld [vmem:[%s117 + $0x1e20] sm:$0xff]
        %v1103 = vld [vmem:[%s117 + $0x1e28] sm:$0xff]
        %v1104 = vld [vmem:[%s117 + $0x1e30] sm:$0xff]
        %v1105 = vld [vmem:[%s117 + $0x1e38] sm:$0xff]
        %v1106 = vld [vmem:[%s117 + $0x1e40] sm:$0xff]
        %v1107 = vld [vmem:[%s117 + $0x1e48] sm:$0xff]
        %v1108 = vld [vmem:[%s117 + $0x1e50] sm:$0xff]
        %v1109 = vld [vmem:[%s117 + $0x1e58] sm:$0xff]
        %v1110 = vld [vmem:[%s117 + $0x1e60] sm:$0xff]
        %v1111 = vld [vmem:[%s117 + $0x1e68] sm:$0xff]
        %v1112 = vld [vmem:[%s117 + $0x1e70] sm:$0xff]
        %v1113 = vld [vmem:[%s117 + $0x1e78] sm:$0xff]
        %v1114 = vld [vmem:[%s117 + $0x1e80] sm:$0xff]
        %v1115 = vld [vmem:[%s117 + $0x1e88] sm:$0xff]
        %v1116 = vld [vmem:[%s117 + $0x1e90] sm:$0xff]
        %v1117 = vld [vmem:[%s117 + $0x1e98] sm:$0xff]
        %v1118 = vld [vmem:[%s117 + $0x1ea0] sm:$0xff]
        %v1119 = vld [vmem:[%s117 + $0x1ea8] sm:$0xff]
        %v1120 = vld [vmem:[%s117 + $0x1eb0] sm:$0xff]
        %v1121 = vld [vmem:[%s117 + $0x1eb8] sm:$0xff]
        %v1122 = vld [vmem:[%s117 + $0x1ec0] sm:$0xff]
        %v1123 = vld [vmem:[%s117 + $0x1ec8] sm:$0xff]
        %v1124 = vld [vmem:[%s117 + $0x1ed0] sm:$0xff]
        %v1125 = vld [vmem:[%s117 + $0x1ed8] sm:$0xff]
        %v1126 = vld [vmem:[%s117 + $0x1ee0] sm:$0xff]
        %v1127 = vld [vmem:[%s117 + $0x1ee8] sm:$0xff]
        %v1128 = vld [vmem:[%s117 + $0x1ef0] sm:$0xff]
        %v1129 = vld [vmem:[%s117 + $0x1ef8] sm:$0xff]
        %v1130 = vld [vmem:[%s117 + $0x1f00] sm:$0xff]
        %v1131 = vld [vmem:[%s117 + $0x1f08] sm:$0xff]
        %v1132 = vld [vmem:[%s117 + $0x1f10] sm:$0xff]
        %v1133 = vld [vmem:[%s117 + $0x1f18] sm:$0xff]
        %v1134 = vld [vmem:[%s117 + $0x1f20] sm:$0xff]
        %v1135 = vld [vmem:[%s117 + $0x1f28] sm:$0xff]
        %v1136 = vld [vmem:[%s117 + $0x1f30] sm:$0xff]
        %v1137 = vld [vmem:[%s117 + $0x1f38] sm:$0xff]
        %v1138 = vld [vmem:[%s117 + $0x1f40] sm:$0xff]
        %v1139 = vld [vmem:[%s117 + $0x1f48] sm:$0xff]
        %v1140 = vld [vmem:[%s117 + $0x1f50] sm:$0xff]
        %v1141 = vld [vmem:[%s117 + $0x1f58] sm:$0xff]
        %v1142 = vld [vmem:[%s117 + $0x1f60] sm:$0xff]
        %v1143 = vld [vmem:[%s117 + $0x1f68] sm:$0xff]
        %v1144 = vld [vmem:[%s117 + $0x1f70] sm:$0xff]
        %v1145 = vld [vmem:[%s117 + $0x1f78] sm:$0xff]
        %v1146 = vld [vmem:[%s117 + $0x1f80] sm:$0xff]
        %v1147 = vld [vmem:[%s117 + $0x1f88] sm:$0xff]
        %v1148 = vld [vmem:[%s117 + $0x1f90] sm:$0xff]
        %v1149 = vld [vmem:[%s117 + $0x1f98] sm:$0xff]
        %v1150 = vld [vmem:[%s117 + $0x1fa0] sm:$0xff]
        %v1151 = vld [vmem:[%s117 + $0x1fa8] sm:$0xff]
        %v1152 = vld [vmem:[%s117 + $0x1fb0] sm:$0xff]
        %v1153 = vld [vmem:[%s117 + $0x1fb8] sm:$0xff]
        %v1154 = vld [vmem:[%s117 + $0x1fc0] sm:$0xff]
        %v1155 = vld [vmem:[%s117 + $0x1fc8] sm:$0xff]
        %v1156 = vld [vmem:[%s117 + $0x1fd0] sm:$0xff]
        %v1157 = vld [vmem:[%s117 + $0x1fd8] sm:$0xff]
        %v1158 = vld [vmem:[%s117 + $0x1fe0] sm:$0xff]
        %v1159 = vld [vmem:[%s117 + $0x1fe8] sm:$0xff]
        %v1160 = vld [vmem:[%s117 + $0x1ff0] sm:$0xff]
        %v1161 = vld [vmem:[%s117 + $0x1ff8] sm:$0xff]
        %v1162 = vand.u32 2147483647, %v138
        %v1163 = vand.u32 2147483647, %v139
        %v1164 = vand.u32 2147483647, %v140
        %v1165 = vand.u32 2147483647, %v141
        %v1166 = vand.u32 2147483647, %v142
        %v1167 = vand.u32 2147483647, %v143
        %v1168 = vand.u32 2147483647, %v144
        %v1169 = vand.u32 2147483647, %v145
        %v1170 = vand.u32 2147483647, %v146
        %v1171 = vand.u32 2147483647, %v147
        %v1172 = vand.u32 2147483647, %v148
        %v1173 = vand.u32 2147483647, %v149
        %v1174 = vand.u32 2147483647, %v150
        %v1175 = vand.u32 2147483647, %v151
        %v1176 = vand.u32 2147483647, %v152
        %v1177 = vand.u32 2147483647, %v153
        %v1178 = vand.u32 2147483647, %v154
        %v1179 = vand.u32 2147483647, %v155
        %v1180 = vand.u32 2147483647, %v156
        %v1181 = vand.u32 2147483647, %v157
        %v1182 = vand.u32 2147483647, %v158
        %v1183 = vand.u32 2147483647, %v159
        %v1184 = vand.u32 2147483647, %v160
        %v1185 = vand.u32 2147483647, %v161
        %v1186 = vand.u32 2147483647, %v162
        %v1187 = vand.u32 2147483647, %v163
        %v1188 = vand.u32 2147483647, %v164
        %v1189 = vand.u32 2147483647, %v165
        %v1190 = vand.u32 2147483647, %v166
        %v1191 = vand.u32 2147483647, %v167
        %v1192 = vand.u32 2147483647, %v168
        %v1193 = vand.u32 2147483647, %v169
        %v1194 = vand.u32 2147483647, %v170
        %v1195 = vand.u32 2147483647, %v171
        %v1196 = vand.u32 2147483647, %v172
        %v1197 = vand.u32 2147483647, %v173
        %v1198 = vand.u32 2147483647, %v174
        %v1199 = vand.u32 2147483647, %v175
        %v1200 = vand.u32 2147483647, %v176
        %v1201 = vand.u32 2147483647, %v177
        %v1202 = vand.u32 2147483647, %v178
        %v1203 = vand.u32 2147483647, %v179
        %v1204 = vand.u32 2147483647, %v180
        %v1205 = vand.u32 2147483647, %v181
        %v1206 = vand.u32 2147483647, %v182
        %v1207 = vand.u32 2147483647, %v183
        %v1208 = vand.u32 2147483647, %v184
        %v1209 = vand.u32 2147483647, %v185
        %v1210 = vand.u32 2147483647, %v186
        %v1211 = vand.u32 2147483647, %v187
        %v1212 = vand.u32 2147483647, %v188
        %v1213 = vand.u32 2147483647, %v189
        %v1214 = vand.u32 2147483647, %v190
        %v1215 = vand.u32 2147483647, %v191
        %v1216 = vand.u32 2147483647, %v192
        %v1217 = vand.u32 2147483647, %v193
        %v1218 = vand.u32 2147483647, %v194
        %v1219 = vand.u32 2147483647, %v195
        %v1220 = vand.u32 2147483647, %v196
        %v1221 = vand.u32 2147483647, %v197
        %v1222 = vand.u32 2147483647, %v198
        %v1223 = vand.u32 2147483647, %v199
        %v1224 = vand.u32 2147483647, %v200
        %v1225 = vand.u32 2147483647, %v201
        %v1226 = vand.u32 2147483647, %v202
        %v1227 = vand.u32 2147483647, %v203
        %v1228 = vand.u32 2147483647, %v204
        %v1229 = vand.u32 2147483647, %v205
        %v1230 = vand.u32 2147483647, %v206
        %v1231 = vand.u32 2147483647, %v207
        %v1232 = vand.u32 2147483647, %v208
        %v1233 = vand.u32 2147483647, %v209
        %v1234 = vand.u32 2147483647, %v210
        %v1235 = vand.u32 2147483647, %v211
        %v1236 = vand.u32 2147483647, %v212
        %v1237 = vand.u32 2147483647, %v213
        %v1238 = vand.u32 2147483647, %v214
        %v1239 = vand.u32 2147483647, %v215
        %v1240 = vand.u32 2147483647, %v216
        %v1241 = vand.u32 2147483647, %v217
        %v1242 = vand.u32 2147483647, %v218
        %v1243 = vand.u32 2147483647, %v219
        %v1244 = vand.u32 2147483647, %v220
        %v1245 = vand.u32 2147483647, %v221
        %v1246 = vand.u32 2147483647, %v222
        %v1247 = vand.u32 2147483647, %v223
        %v1248 = vand.u32 2147483647, %v224
        %v1249 = vand.u32 2147483647, %v225
        %v1250 = vand.u32 2147483647, %v226
        %v1251 = vand.u32 2147483647, %v227
        %v1252 = vand.u32 2147483647, %v228
        %v1253 = vand.u32 2147483647, %v229
        %v1254 = vand.u32 2147483647, %v230
        %v1255 = vand.u32 2147483647, %v231
        %v1256 = vand.u32 2147483647, %v232
        %v1257 = vand.u32 2147483647, %v233
        %v1258 = vand.u32 2147483647, %v234
        %v1259 = vand.u32 2147483647, %v235
        %v1260 = vand.u32 2147483647, %v236
        %v1261 = vand.u32 2147483647, %v237
        %v1262 = vand.u32 2147483647, %v238
        %v1263 = vand.u32 2147483647, %v239
        %v1264 = vand.u32 2147483647, %v240
        %v1265 = vand.u32 2147483647, %v241
        %v1266 = vand.u32 2147483647, %v242
        %v1267 = vand.u32 2147483647, %v243
        %v1268 = vand.u32 2147483647, %v244
        %v1269 = vand.u32 2147483647, %v245
        %v1270 = vand.u32 2147483647, %v246
        %v1271 = vand.u32 2147483647, %v247
        %v1272 = vand.u32 2147483647, %v248
        %v1273 = vand.u32 2147483647, %v249
        %v1274 = vand.u32 2147483647, %v250
        %v1275 = vand.u32 2147483647, %v251
        %v1276 = vand.u32 2147483647, %v252
        %v1277 = vand.u32 2147483647, %v253
        %v1278 = vand.u32 2147483647, %v254
        %v1279 = vand.u32 2147483647, %v255
        %v1280 = vand.u32 2147483647, %v256
        %v1281 = vand.u32 2147483647, %v257
        %v1282 = vand.u32 2147483647, %v258
        %v1283 = vand.u32 2147483647, %v259
        %v1284 = vand.u32 2147483647, %v260
        %v1285 = vand.u32 2147483647, %v261
        %v1286 = vand.u32 2147483647, %v262
        %v1287 = vand.u32 2147483647, %v263
        %v1288 = vand.u32 2147483647, %v264
        %v1289 = vand.u32 2147483647, %v265
        %v1290 = vand.u32 2147483647, %v266
        %v1291 = vand.u32 2147483647, %v267
        %v1292 = vand.u32 2147483647, %v268
        %v1293 = vand.u32 2147483647, %v269
        %v1294 = vand.u32 2147483647, %v270
        %v1295 = vand.u32 2147483647, %v271
        %v1296 = vand.u32 2147483647, %v272
        %v1297 = vand.u32 2147483647, %v273
        %v1298 = vand.u32 2147483647, %v274
        %v1299 = vand.u32 2147483647, %v275
        %v1300 = vand.u32 2147483647, %v276
        %v1301 = vand.u32 2147483647, %v277
        %v1302 = vand.u32 2147483647, %v278
        %v1303 = vand.u32 2147483647, %v279
        %v1304 = vand.u32 2147483647, %v280
        %v1305 = vand.u32 2147483647, %v281
        %v1306 = vand.u32 2147483647, %v282
        %v1307 = vand.u32 2147483647, %v283
        %v1308 = vand.u32 2147483647, %v284
        %v1309 = vand.u32 2147483647, %v285
        %v1310 = vand.u32 2147483647, %v286
        %v1311 = vand.u32 2147483647, %v287
        %v1312 = vand.u32 2147483647, %v288
        %v1313 = vand.u32 2147483647, %v289
        %v1314 = vand.u32 2147483647, %v290
        %v1315 = vand.u32 2147483647, %v291
        %v1316 = vand.u32 2147483647, %v292
        %v1317 = vand.u32 2147483647, %v293
        %v1318 = vand.u32 2147483647, %v294
        %v1319 = vand.u32 2147483647, %v295
        %v1320 = vand.u32 2147483647, %v296
        %v1321 = vand.u32 2147483647, %v297
        %v1322 = vand.u32 2147483647, %v298
        %v1323 = vand.u32 2147483647, %v299
        %v1324 = vand.u32 2147483647, %v300
        %v1325 = vand.u32 2147483647, %v301
        %v1326 = vand.u32 2147483647, %v302
        %v1327 = vand.u32 2147483647, %v303
        %v1328 = vand.u32 2147483647, %v304
        %v1329 = vand.u32 2147483647, %v305
        %v1330 = vand.u32 2147483647, %v306
        %v1331 = vand.u32 2147483647, %v307
        %v1332 = vand.u32 2147483647, %v308
        %v1333 = vand.u32 2147483647, %v309
        %v1334 = vand.u32 2147483647, %v310
        %v1335 = vand.u32 2147483647, %v311
        %v1336 = vand.u32 2147483647, %v312
        %v1337 = vand.u32 2147483647, %v313
        %v1338 = vand.u32 2147483647, %v314
        %v1339 = vand.u32 2147483647, %v315
        %v1340 = vand.u32 2147483647, %v316
        %v1341 = vand.u32 2147483647, %v317
        %v1342 = vand.u32 2147483647, %v318
        %v1343 = vand.u32 2147483647, %v319
        %v1344 = vand.u32 2147483647, %v320
        %v1345 = vand.u32 2147483647, %v321
        %v1346 = vand.u32 2147483647, %v322
        %v1347 = vand.u32 2147483647, %v323
        %v1348 = vand.u32 2147483647, %v324
        %v1349 = vand.u32 2147483647, %v325
        %v1350 = vand.u32 2147483647, %v326
        %v1351 = vand.u32 2147483647, %v327
        %v1352 = vand.u32 2147483647, %v328
        %v1353 = vand.u32 2147483647, %v329
        %v1354 = vand.u32 2147483647, %v330
        %v1355 = vand.u32 2147483647, %v331
        %v1356 = vand.u32 2147483647, %v332
        %v1357 = vand.u32 2147483647, %v333
        %v1358 = vand.u32 2147483647, %v334
        %v1359 = vand.u32 2147483647, %v335
        %v1360 = vand.u32 2147483647, %v336
        %v1361 = vand.u32 2147483647, %v337
        %v1362 = vand.u32 2147483647, %v338
        %v1363 = vand.u32 2147483647, %v339
        %v1364 = vand.u32 2147483647, %v340
        %v1365 = vand.u32 2147483647, %v341
        %v1366 = vand.u32 2147483647, %v342
        %v1367 = vand.u32 2147483647, %v343
        %v1368 = vand.u32 2147483647, %v344
        %v1369 = vand.u32 2147483647, %v345
        %v1370 = vand.u32 2147483647, %v346
        %v1371 = vand.u32 2147483647, %v347
        %v1372 = vand.u32 2147483647, %v348
        %v1373 = vand.u32 2147483647, %v349
        %v1374 = vand.u32 2147483647, %v350
        %v1375 = vand.u32 2147483647, %v351
        %v1376 = vand.u32 2147483647, %v352
        %v1377 = vand.u32 2147483647, %v353
        %v1378 = vand.u32 2147483647, %v354
        %v1379 = vand.u32 2147483647, %v355
        %v1380 = vand.u32 2147483647, %v356
        %v1381 = vand.u32 2147483647, %v357
        %v1382 = vand.u32 2147483647, %v358
        %v1383 = vand.u32 2147483647, %v359
        %v1384 = vand.u32 2147483647, %v360
        %v1385 = vand.u32 2147483647, %v361
        %v1386 = vand.u32 2147483647, %v362
        %v1387 = vand.u32 2147483647, %v363
        %v1388 = vand.u32 2147483647, %v364
        %v1389 = vand.u32 2147483647, %v365
        %v1390 = vand.u32 2147483647, %v366
        %v1391 = vand.u32 2147483647, %v367
        %v1392 = vand.u32 2147483647, %v368
        %v1393 = vand.u32 2147483647, %v369
        %v1394 = vand.u32 2147483647, %v370
        %v1395 = vand.u32 2147483647, %v371
        %v1396 = vand.u32 2147483647, %v372
        %v1397 = vand.u32 2147483647, %v373
        %v1398 = vand.u32 2147483647, %v374
        %v1399 = vand.u32 2147483647, %v375
        %v1400 = vand.u32 2147483647, %v376
        %v1401 = vand.u32 2147483647, %v377
        %v1402 = vand.u32 2147483647, %v378
        %v1403 = vand.u32 2147483647, %v379
        %v1404 = vand.u32 2147483647, %v380
        %v1405 = vand.u32 2147483647, %v381
        %v1406 = vand.u32 2147483647, %v382
        %v1407 = vand.u32 2147483647, %v383
        %v1408 = vand.u32 2147483647, %v384
        %v1409 = vand.u32 2147483647, %v385
        %v1410 = vand.u32 2147483647, %v386
        %v1411 = vand.u32 2147483647, %v387
        %v1412 = vand.u32 2147483647, %v388
        %v1413 = vand.u32 2147483647, %v389
        %v1414 = vand.u32 2147483647, %v390
        %v1415 = vand.u32 2147483647, %v391
        %v1416 = vand.u32 2147483647, %v392
        %v1417 = vand.u32 2147483647, %v393
        %v1418 = vand.u32 2147483647, %v394
        %v1419 = vand.u32 2147483647, %v395
        %v1420 = vand.u32 2147483647, %v396
        %v1421 = vand.u32 2147483647, %v397
        %v1422 = vand.u32 2147483647, %v398
        %v1423 = vand.u32 2147483647, %v399
        %v1424 = vand.u32 2147483647, %v400
        %v1425 = vand.u32 2147483647, %v401
        %v1426 = vand.u32 2147483647, %v402
        %v1427 = vand.u32 2147483647, %v403
        %v1428 = vand.u32 2147483647, %v404
        %v1429 = vand.u32 2147483647, %v405
        %v1430 = vand.u32 2147483647, %v406
        %v1431 = vand.u32 2147483647, %v407
        %v1432 = vand.u32 2147483647, %v408
        %v1433 = vand.u32 2147483647, %v409
        %v1434 = vand.u32 2147483647, %v410
        %v1435 = vand.u32 2147483647, %v411
        %v1436 = vand.u32 2147483647, %v412
        %v1437 = vand.u32 2147483647, %v413
        %v1438 = vand.u32 2147483647, %v414
        %v1439 = vand.u32 2147483647, %v415
        %v1440 = vand.u32 2147483647, %v416
        %v1441 = vand.u32 2147483647, %v417
        %v1442 = vand.u32 2147483647, %v418
        %v1443 = vand.u32 2147483647, %v419
        %v1444 = vand.u32 2147483647, %v420
        %v1445 = vand.u32 2147483647, %v421
        %v1446 = vand.u32 2147483647, %v422
        %v1447 = vand.u32 2147483647, %v423
        %v1448 = vand.u32 2147483647, %v424
        %v1449 = vand.u32 2147483647, %v425
        %v1450 = vand.u32 2147483647, %v426
        %v1451 = vand.u32 2147483647, %v427
        %v1452 = vand.u32 2147483647, %v428
        %v1453 = vand.u32 2147483647, %v429
        %v1454 = vand.u32 2147483647, %v430
        %v1455 = vand.u32 2147483647, %v431
        %v1456 = vand.u32 2147483647, %v432
        %v1457 = vand.u32 2147483647, %v433
        %v1458 = vand.u32 2147483647, %v434
        %v1459 = vand.u32 2147483647, %v435
        %v1460 = vand.u32 2147483647, %v436
        %v1461 = vand.u32 2147483647, %v437
        %v1462 = vand.u32 2147483647, %v438
        %v1463 = vand.u32 2147483647, %v439
        %v1464 = vand.u32 2147483647, %v440
        %v1465 = vand.u32 2147483647, %v441
        %v1466 = vand.u32 2147483647, %v442
        %v1467 = vand.u32 2147483647, %v443
        %v1468 = vand.u32 2147483647, %v444
        %v1469 = vand.u32 2147483647, %v445
        %v1470 = vand.u32 2147483647, %v446
        %v1471 = vand.u32 2147483647, %v447
        %v1472 = vand.u32 2147483647, %v448
        %v1473 = vand.u32 2147483647, %v449
        %v1474 = vand.u32 2147483647, %v450
        %v1475 = vand.u32 2147483647, %v451
        %v1476 = vand.u32 2147483647, %v452
        %v1477 = vand.u32 2147483647, %v453
        %v1478 = vand.u32 2147483647, %v454
        %v1479 = vand.u32 2147483647, %v455
        %v1480 = vand.u32 2147483647, %v456
        %v1481 = vand.u32 2147483647, %v457
        %v1482 = vand.u32 2147483647, %v458
        %v1483 = vand.u32 2147483647, %v459
        %v1484 = vand.u32 2147483647, %v460
        %v1485 = vand.u32 2147483647, %v461
        %v1486 = vand.u32 2147483647, %v462
        %v1487 = vand.u32 2147483647, %v463
        %v1488 = vand.u32 2147483647, %v464
        %v1489 = vand.u32 2147483647, %v465
        %v1490 = vand.u32 2147483647, %v466
        %v1491 = vand.u32 2147483647, %v467
        %v1492 = vand.u32 2147483647, %v468
        %v1493 = vand.u32 2147483647, %v469
        %v1494 = vand.u32 2147483647, %v470
        %v1495 = vand.u32 2147483647, %v471
        %v1496 = vand.u32 2147483647, %v472
        %v1497 = vand.u32 2147483647, %v473
        %v1498 = vand.u32 2147483647, %v474
        %v1499 = vand.u32 2147483647, %v475
        %v1500 = vand.u32 2147483647, %v476
        %v1501 = vand.u32 2147483647, %v477
        %v1502 = vand.u32 2147483647, %v478
        %v1503 = vand.u32 2147483647, %v479
        %v1504 = vand.u32 2147483647, %v480
        %v1505 = vand.u32 2147483647, %v481
        %v1506 = vand.u32 2147483647, %v482
        %v1507 = vand.u32 2147483647, %v483
        %v1508 = vand.u32 2147483647, %v484
        %v1509 = vand.u32 2147483647, %v485
        %v1510 = vand.u32 2147483647, %v486
        %v1511 = vand.u32 2147483647, %v487
        %v1512 = vand.u32 2147483647, %v488
        %v1513 = vand.u32 2147483647, %v489
        %v1514 = vand.u32 2147483647, %v490
        %v1515 = vand.u32 2147483647, %v491
        %v1516 = vand.u32 2147483647, %v492
        %v1517 = vand.u32 2147483647, %v493
        %v1518 = vand.u32 2147483647, %v494
        %v1519 = vand.u32 2147483647, %v495
        %v1520 = vand.u32 2147483647, %v496
        %v1521 = vand.u32 2147483647, %v497
        %v1522 = vand.u32 2147483647, %v498
        %v1523 = vand.u32 2147483647, %v499
        %v1524 = vand.u32 2147483647, %v500
        %v1525 = vand.u32 2147483647, %v501
        %v1526 = vand.u32 2147483647, %v502
        %v1527 = vand.u32 2147483647, %v503
        %v1528 = vand.u32 2147483647, %v504
        %v1529 = vand.u32 2147483647, %v505
        %v1530 = vand.u32 2147483647, %v506
        %v1531 = vand.u32 2147483647, %v507
        %v1532 = vand.u32 2147483647, %v508
        %v1533 = vand.u32 2147483647, %v509
        %v1534 = vand.u32 2147483647, %v510
        %v1535 = vand.u32 2147483647, %v511
        %v1536 = vand.u32 2147483647, %v512
        %v1537 = vand.u32 2147483647, %v513
        %v1538 = vand.u32 2147483647, %v514
        %v1539 = vand.u32 2147483647, %v515
        %v1540 = vand.u32 2147483647, %v516
        %v1541 = vand.u32 2147483647, %v517
        %v1542 = vand.u32 2147483647, %v518
        %v1543 = vand.u32 2147483647, %v519
        %v1544 = vand.u32 2147483647, %v520
        %v1545 = vand.u32 2147483647, %v521
        %v1546 = vand.u32 2147483647, %v522
        %v1547 = vand.u32 2147483647, %v523
        %v1548 = vand.u32 2147483647, %v524
        %v1549 = vand.u32 2147483647, %v525
        %v1550 = vand.u32 2147483647, %v526
        %v1551 = vand.u32 2147483647, %v527
        %v1552 = vand.u32 2147483647, %v528
        %v1553 = vand.u32 2147483647, %v529
        %v1554 = vand.u32 2147483647, %v530
        %v1555 = vand.u32 2147483647, %v531
        %v1556 = vand.u32 2147483647, %v532
        %v1557 = vand.u32 2147483647, %v533
        %v1558 = vand.u32 2147483647, %v534
        %v1559 = vand.u32 2147483647, %v535
        %v1560 = vand.u32 2147483647, %v536
        %v1561 = vand.u32 2147483647, %v537
        %v1562 = vand.u32 2147483647, %v538
        %v1563 = vand.u32 2147483647, %v539
        %v1564 = vand.u32 2147483647, %v540
        %v1565 = vand.u32 2147483647, %v541
        %v1566 = vand.u32 2147483647, %v542
        %v1567 = vand.u32 2147483647, %v543
        %v1568 = vand.u32 2147483647, %v544
        %v1569 = vand.u32 2147483647, %v545
        %v1570 = vand.u32 2147483647, %v546
        %v1571 = vand.u32 2147483647, %v547
        %v1572 = vand.u32 2147483647, %v548
        %v1573 = vand.u32 2147483647, %v549
        %v1574 = vand.u32 2147483647, %v550
        %v1575 = vand.u32 2147483647, %v551
        %v1576 = vand.u32 2147483647, %v552
        %v1577 = vand.u32 2147483647, %v553
        %v1578 = vand.u32 2147483647, %v554
        %v1579 = vand.u32 2147483647, %v555
        %v1580 = vand.u32 2147483647, %v556
        %v1581 = vand.u32 2147483647, %v557
        %v1582 = vand.u32 2147483647, %v558
        %v1583 = vand.u32 2147483647, %v559
        %v1584 = vand.u32 2147483647, %v560
        %v1585 = vand.u32 2147483647, %v561
        %v1586 = vand.u32 2147483647, %v562
        %v1587 = vand.u32 2147483647, %v563
        %v1588 = vand.u32 2147483647, %v564
        %v1589 = vand.u32 2147483647, %v565
        %v1590 = vand.u32 2147483647, %v566
        %v1591 = vand.u32 2147483647, %v567
        %v1592 = vand.u32 2147483647, %v568
        %v1593 = vand.u32 2147483647, %v569
        %v1594 = vand.u32 2147483647, %v570
        %v1595 = vand.u32 2147483647, %v571
        %v1596 = vand.u32 2147483647, %v572
        %v1597 = vand.u32 2147483647, %v573
        %v1598 = vand.u32 2147483647, %v574
        %v1599 = vand.u32 2147483647, %v575
        %v1600 = vand.u32 2147483647, %v576
        %v1601 = vand.u32 2147483647, %v577
        %v1602 = vand.u32 2147483647, %v578
        %v1603 = vand.u32 2147483647, %v579
        %v1604 = vand.u32 2147483647, %v580
        %v1605 = vand.u32 2147483647, %v581
        %v1606 = vand.u32 2147483647, %v582
        %v1607 = vand.u32 2147483647, %v583
        %v1608 = vand.u32 2147483647, %v584
        %v1609 = vand.u32 2147483647, %v585
        %v1610 = vand.u32 2147483647, %v586
        %v1611 = vand.u32 2147483647, %v587
        %v1612 = vand.u32 2147483647, %v588
        %v1613 = vand.u32 2147483647, %v589
        %v1614 = vand.u32 2147483647, %v590
        %v1615 = vand.u32 2147483647, %v591
        %v1616 = vand.u32 2147483647, %v592
        %v1617 = vand.u32 2147483647, %v593
        %v1618 = vand.u32 2147483647, %v594
        %v1619 = vand.u32 2147483647, %v595
        %v1620 = vand.u32 2147483647, %v596
        %v1621 = vand.u32 2147483647, %v597
        %v1622 = vand.u32 2147483647, %v598
        %v1623 = vand.u32 2147483647, %v599
        %v1624 = vand.u32 2147483647, %v600
        %v1625 = vand.u32 2147483647, %v601
        %v1626 = vand.u32 2147483647, %v602
        %v1627 = vand.u32 2147483647, %v603
        %v1628 = vand.u32 2147483647, %v604
        %v1629 = vand.u32 2147483647, %v605
        %v1630 = vand.u32 2147483647, %v606
        %v1631 = vand.u32 2147483647, %v607
        %v1632 = vand.u32 2147483647, %v608
        %v1633 = vand.u32 2147483647, %v609
        %v1634 = vand.u32 2147483647, %v610
        %v1635 = vand.u32 2147483647, %v611
        %v1636 = vand.u32 2147483647, %v612
        %v1637 = vand.u32 2147483647, %v613
        %v1638 = vand.u32 2147483647, %v614
        %v1639 = vand.u32 2147483647, %v615
        %v1640 = vand.u32 2147483647, %v616
        %v1641 = vand.u32 2147483647, %v617
        %v1642 = vand.u32 2147483647, %v618
        %v1643 = vand.u32 2147483647, %v619
        %v1644 = vand.u32 2147483647, %v620
        %v1645 = vand.u32 2147483647, %v621
        %v1646 = vand.u32 2147483647, %v622
        %v1647 = vand.u32 2147483647, %v623
        %v1648 = vand.u32 2147483647, %v624
        %v1649 = vand.u32 2147483647, %v625
        %v1650 = vand.u32 2147483647, %v626
        %v1651 = vand.u32 2147483647, %v627
        %v1652 = vand.u32 2147483647, %v628
        %v1653 = vand.u32 2147483647, %v629
        %v1654 = vand.u32 2147483647, %v630
        %v1655 = vand.u32 2147483647, %v631
        %v1656 = vand.u32 2147483647, %v632
        %v1657 = vand.u32 2147483647, %v633
        %v1658 = vand.u32 2147483647, %v634
        %v1659 = vand.u32 2147483647, %v635
        %v1660 = vand.u32 2147483647, %v636
        %v1661 = vand.u32 2147483647, %v637
        %v1662 = vand.u32 2147483647, %v638
        %v1663 = vand.u32 2147483647, %v639
        %v1664 = vand.u32 2147483647, %v640
        %v1665 = vand.u32 2147483647, %v641
        %v1666 = vand.u32 2147483647, %v642
        %v1667 = vand.u32 2147483647, %v643
        %v1668 = vand.u32 2147483647, %v644
        %v1669 = vand.u32 2147483647, %v645
        %v1670 = vand.u32 2147483647, %v646
        %v1671 = vand.u32 2147483647, %v647
        %v1672 = vand.u32 2147483647, %v648
        %v1673 = vand.u32 2147483647, %v649
        %v1674 = vand.u32 2147483647, %v650
        %v1675 = vand.u32 2147483647, %v651
        %v1676 = vand.u32 2147483647, %v652
        %v1677 = vand.u32 2147483647, %v653
        %v1678 = vand.u32 2147483647, %v654
        %v1679 = vand.u32 2147483647, %v655
        %v1680 = vand.u32 2147483647, %v656
        %v1681 = vand.u32 2147483647, %v657
        %v1682 = vand.u32 2147483647, %v658
        %v1683 = vand.u32 2147483647, %v659
        %v1684 = vand.u32 2147483647, %v660
        %v1685 = vand.u32 2147483647, %v661
        %v1686 = vand.u32 2147483647, %v662
        %v1687 = vand.u32 2147483647, %v663
        %v1688 = vand.u32 2147483647, %v664
        %v1689 = vand.u32 2147483647, %v665
        %v1690 = vand.u32 2147483647, %v666
        %v1691 = vand.u32 2147483647, %v667
        %v1692 = vand.u32 2147483647, %v668
        %v1693 = vand.u32 2147483647, %v669
        %v1694 = vand.u32 2147483647, %v670
        %v1695 = vand.u32 2147483647, %v671
        %v1696 = vand.u32 2147483647, %v672
        %v1697 = vand.u32 2147483647, %v673
        %v1698 = vand.u32 2147483647, %v674
        %v1699 = vand.u32 2147483647, %v675
        %v1700 = vand.u32 2147483647, %v676
        %v1701 = vand.u32 2147483647, %v677
        %v1702 = vand.u32 2147483647, %v678
        %v1703 = vand.u32 2147483647, %v679
        %v1704 = vand.u32 2147483647, %v680
        %v1705 = vand.u32 2147483647, %v681
        %v1706 = vand.u32 2147483647, %v682
        %v1707 = vand.u32 2147483647, %v683
        %v1708 = vand.u32 2147483647, %v684
        %v1709 = vand.u32 2147483647, %v685
        %v1710 = vand.u32 2147483647, %v686
        %v1711 = vand.u32 2147483647, %v687
        %v1712 = vand.u32 2147483647, %v688
        %v1713 = vand.u32 2147483647, %v689
        %v1714 = vand.u32 2147483647, %v690
        %v1715 = vand.u32 2147483647, %v691
        %v1716 = vand.u32 2147483647, %v692
        %v1717 = vand.u32 2147483647, %v693
        %v1718 = vand.u32 2147483647, %v694
        %v1719 = vand.u32 2147483647, %v695
        %v1720 = vand.u32 2147483647, %v696
        %v1721 = vand.u32 2147483647, %v697
        %v1722 = vand.u32 2147483647, %v698
        %v1723 = vand.u32 2147483647, %v699
        %v1724 = vand.u32 2147483647, %v700
        %v1725 = vand.u32 2147483647, %v701
        %v1726 = vand.u32 2147483647, %v702
        %v1727 = vand.u32 2147483647, %v703
        %v1728 = vand.u32 2147483647, %v704
        %v1729 = vand.u32 2147483647, %v705
        %v1730 = vand.u32 2147483647, %v706
        %v1731 = vand.u32 2147483647, %v707
        %v1732 = vand.u32 2147483647, %v708
        %v1733 = vand.u32 2147483647, %v709
        %v1734 = vand.u32 2147483647, %v710
        %v1735 = vand.u32 2147483647, %v711
        %v1736 = vand.u32 2147483647, %v712
        %v1737 = vand.u32 2147483647, %v713
        %v1738 = vand.u32 2147483647, %v714
        %v1739 = vand.u32 2147483647, %v715
        %v1740 = vand.u32 2147483647, %v716
        %v1741 = vand.u32 2147483647, %v717
        %v1742 = vand.u32 2147483647, %v718
        %v1743 = vand.u32 2147483647, %v719
        %v1744 = vand.u32 2147483647, %v720
        %v1745 = vand.u32 2147483647, %v721
        %v1746 = vand.u32 2147483647, %v722
        %v1747 = vand.u32 2147483647, %v723
        %v1748 = vand.u32 2147483647, %v724
        %v1749 = vand.u32 2147483647, %v725
        %v1750 = vand.u32 2147483647, %v726
        %v1751 = vand.u32 2147483647, %v727
        %v1752 = vand.u32 2147483647, %v728
        %v1753 = vand.u32 2147483647, %v729
        %v1754 = vand.u32 2147483647, %v730
        %v1755 = vand.u32 2147483647, %v731
        %v1756 = vand.u32 2147483647, %v732
        %v1757 = vand.u32 2147483647, %v733
        %v1758 = vand.u32 2147483647, %v734
        %v1759 = vand.u32 2147483647, %v735
        %v1760 = vand.u32 2147483647, %v736
        %v1761 = vand.u32 2147483647, %v737
        %v1762 = vand.u32 2147483647, %v738
        %v1763 = vand.u32 2147483647, %v739
        %v1764 = vand.u32 2147483647, %v740
        %v1765 = vand.u32 2147483647, %v741
        %v1766 = vand.u32 2147483647, %v742
        %v1767 = vand.u32 2147483647, %v743
        %v1768 = vand.u32 2147483647, %v744
        %v1769 = vand.u32 2147483647, %v745
        %v1770 = vand.u32 2147483647, %v746
        %v1771 = vand.u32 2147483647, %v747
        %v1772 = vand.u32 2147483647, %v748
        %v1773 = vand.u32 2147483647, %v749
        %v1774 = vand.u32 2147483647, %v750
        %v1775 = vand.u32 2147483647, %v751
        %v1776 = vand.u32 2147483647, %v752
        %v1777 = vand.u32 2147483647, %v753
        %v1778 = vand.u32 2147483647, %v754
        %v1779 = vand.u32 2147483647, %v755
        %v1780 = vand.u32 2147483647, %v756
        %v1781 = vand.u32 2147483647, %v757
        %v1782 = vand.u32 2147483647, %v758
        %v1783 = vand.u32 2147483647, %v759
        %v1784 = vand.u32 2147483647, %v760
        %v1785 = vand.u32 2147483647, %v761
        %v1786 = vand.u32 2147483647, %v762
        %v1787 = vand.u32 2147483647, %v763
        %v1788 = vand.u32 2147483647, %v764
        %v1789 = vand.u32 2147483647, %v765
        %v1790 = vand.u32 2147483647, %v766
        %v1791 = vand.u32 2147483647, %v767
        %v1792 = vand.u32 2147483647, %v768
        %v1793 = vand.u32 2147483647, %v769
        %v1794 = vand.u32 2147483647, %v770
        %v1795 = vand.u32 2147483647, %v771
        %v1796 = vand.u32 2147483647, %v772
        %v1797 = vand.u32 2147483647, %v773
        %v1798 = vand.u32 2147483647, %v774
        %v1799 = vand.u32 2147483647, %v775
        %v1800 = vand.u32 2147483647, %v776
        %v1801 = vand.u32 2147483647, %v777
        %v1802 = vand.u32 2147483647, %v778
        %v1803 = vand.u32 2147483647, %v779
        %v1804 = vand.u32 2147483647, %v780
        %v1805 = vand.u32 2147483647, %v781
        %v1806 = vand.u32 2147483647, %v782
        %v1807 = vand.u32 2147483647, %v783
        %v1808 = vand.u32 2147483647, %v784
        %v1809 = vand.u32 2147483647, %v785
        %v1810 = vand.u32 2147483647, %v786
        %v1811 = vand.u32 2147483647, %v787
        %v1812 = vand.u32 2147483647, %v788
        %v1813 = vand.u32 2147483647, %v789
        %v1814 = vand.u32 2147483647, %v790
        %v1815 = vand.u32 2147483647, %v791
        %v1816 = vand.u32 2147483647, %v792
        %v1817 = vand.u32 2147483647, %v793
        %v1818 = vand.u32 2147483647, %v794
        %v1819 = vand.u32 2147483647, %v795
        %v1820 = vand.u32 2147483647, %v796
        %v1821 = vand.u32 2147483647, %v797
        %v1822 = vand.u32 2147483647, %v798
        %v1823 = vand.u32 2147483647, %v799
        %v1824 = vand.u32 2147483647, %v800
        %v1825 = vand.u32 2147483647, %v801
        %v1826 = vand.u32 2147483647, %v802
        %v1827 = vand.u32 2147483647, %v803
        %v1828 = vand.u32 2147483647, %v804
        %v1829 = vand.u32 2147483647, %v805
        %v1830 = vand.u32 2147483647, %v806
        %v1831 = vand.u32 2147483647, %v807
        %v1832 = vand.u32 2147483647, %v808
        %v1833 = vand.u32 2147483647, %v809
        %v1834 = vand.u32 2147483647, %v810
        %v1835 = vand.u32 2147483647, %v811
        %v1836 = vand.u32 2147483647, %v812
        %v1837 = vand.u32 2147483647, %v813
        %v1838 = vand.u32 2147483647, %v814
        %v1839 = vand.u32 2147483647, %v815
        %v1840 = vand.u32 2147483647, %v816
        %v1841 = vand.u32 2147483647, %v817
        %v1842 = vand.u32 2147483647, %v818
        %v1843 = vand.u32 2147483647, %v819
        %v1844 = vand.u32 2147483647, %v820
        %v1845 = vand.u32 2147483647, %v821
        %v1846 = vand.u32 2147483647, %v822
        %v1847 = vand.u32 2147483647, %v823
        %v1848 = vand.u32 2147483647, %v824
        %v1849 = vand.u32 2147483647, %v825
        %v1850 = vand.u32 2147483647, %v826
        %v1851 = vand.u32 2147483647, %v827
        %v1852 = vand.u32 2147483647, %v828
        %v1853 = vand.u32 2147483647, %v829
        %v1854 = vand.u32 2147483647, %v830
        %v1855 = vand.u32 2147483647, %v831
        %v1856 = vand.u32 2147483647, %v832
        %v1857 = vand.u32 2147483647, %v833
        %v1858 = vand.u32 2147483647, %v834
        %v1859 = vand.u32 2147483647, %v835
        %v1860 = vand.u32 2147483647, %v836
        %v1861 = vand.u32 2147483647, %v837
        %v1862 = vand.u32 2147483647, %v838
        %v1863 = vand.u32 2147483647, %v839
        %v1864 = vand.u32 2147483647, %v840
        %v1865 = vand.u32 2147483647, %v841
        %v1866 = vand.u32 2147483647, %v842
        %v1867 = vand.u32 2147483647, %v843
        %v1868 = vand.u32 2147483647, %v844
        %v1869 = vand.u32 2147483647, %v845
        %v1870 = vand.u32 2147483647, %v846
        %v1871 = vand.u32 2147483647, %v847
        %v1872 = vand.u32 2147483647, %v848
        %v1873 = vand.u32 2147483647, %v849
        %v1874 = vand.u32 2147483647, %v850
        %v1875 = vand.u32 2147483647, %v851
        %v1876 = vand.u32 2147483647, %v852
        %v1877 = vand.u32 2147483647, %v853
        %v1878 = vand.u32 2147483647, %v854
        %v1879 = vand.u32 2147483647, %v855
        %v1880 = vand.u32 2147483647, %v856
        %v1881 = vand.u32 2147483647, %v857
        %v1882 = vand.u32 2147483647, %v858
        %v1883 = vand.u32 2147483647, %v859
        %v1884 = vand.u32 2147483647, %v860
        %v1885 = vand.u32 2147483647, %v861
        %v1886 = vand.u32 2147483647, %v862
        %v1887 = vand.u32 2147483647, %v863
        %v1888 = vand.u32 2147483647, %v864
        %v1889 = vand.u32 2147483647, %v865
        %v1890 = vand.u32 2147483647, %v866
        %v1891 = vand.u32 2147483647, %v867
        %v1892 = vand.u32 2147483647, %v868
        %v1893 = vand.u32 2147483647, %v869
        %v1894 = vand.u32 2147483647, %v870
        %v1895 = vand.u32 2147483647, %v871
        %v1896 = vand.u32 2147483647, %v872
        %v1897 = vand.u32 2147483647, %v873
        %v1898 = vand.u32 2147483647, %v874
        %v1899 = vand.u32 2147483647, %v875
        %v1900 = vand.u32 2147483647, %v876
        %v1901 = vand.u32 2147483647, %v877
        %v1902 = vand.u32 2147483647, %v878
        %v1903 = vand.u32 2147483647, %v879
        %v1904 = vand.u32 2147483647, %v880
        %v1905 = vand.u32 2147483647, %v881
        %v1906 = vand.u32 2147483647, %v882
        %v1907 = vand.u32 2147483647, %v883
        %v1908 = vand.u32 2147483647, %v884
        %v1909 = vand.u32 2147483647, %v885
        %v1910 = vand.u32 2147483647, %v886
        %v1911 = vand.u32 2147483647, %v887
        %v1912 = vand.u32 2147483647, %v888
        %v1913 = vand.u32 2147483647, %v889
        %v1914 = vand.u32 2147483647, %v890
        %v1915 = vand.u32 2147483647, %v891
        %v1916 = vand.u32 2147483647, %v892
        %v1917 = vand.u32 2147483647, %v893
        %v1918 = vand.u32 2147483647, %v894
        %v1919 = vand.u32 2147483647, %v895
        %v1920 = vand.u32 2147483647, %v896
        %v1921 = vand.u32 2147483647, %v897
        %v1922 = vand.u32 2147483647, %v898
        %v1923 = vand.u32 2147483647, %v899
        %v1924 = vand.u32 2147483647, %v900
        %v1925 = vand.u32 2147483647, %v901
        %v1926 = vand.u32 2147483647, %v902
        %v1927 = vand.u32 2147483647, %v903
        %v1928 = vand.u32 2147483647, %v904
        %v1929 = vand.u32 2147483647, %v905
        %v1930 = vand.u32 2147483647, %v906
        %v1931 = vand.u32 2147483647, %v907
        %v1932 = vand.u32 2147483647, %v908
        %v1933 = vand.u32 2147483647, %v909
        %v1934 = vand.u32 2147483647, %v910
        %v1935 = vand.u32 2147483647, %v911
        %v1936 = vand.u32 2147483647, %v912
        %v1937 = vand.u32 2147483647, %v913
        %v1938 = vand.u32 2147483647, %v914
        %v1939 = vand.u32 2147483647, %v915
        %v1940 = vand.u32 2147483647, %v916
        %v1941 = vand.u32 2147483647, %v917
        %v1942 = vand.u32 2147483647, %v918
        %v1943 = vand.u32 2147483647, %v919
        %v1944 = vand.u32 2147483647, %v920
        %v1945 = vand.u32 2147483647, %v921
        %v1946 = vand.u32 2147483647, %v922
        %v1947 = vand.u32 2147483647, %v923
        %v1948 = vand.u32 2147483647, %v924
        %v1949 = vand.u32 2147483647, %v925
        %v1950 = vand.u32 2147483647, %v926
        %v1951 = vand.u32 2147483647, %v927
        %v1952 = vand.u32 2147483647, %v928
        %v1953 = vand.u32 2147483647, %v929
        %v1954 = vand.u32 2147483647, %v930
        %v1955 = vand.u32 2147483647, %v931
        %v1956 = vand.u32 2147483647, %v932
        %v1957 = vand.u32 2147483647, %v933
        %v1958 = vand.u32 2147483647, %v934
        %v1959 = vand.u32 2147483647, %v935
        %v1960 = vand.u32 2147483647, %v936
        %v1961 = vand.u32 2147483647, %v937
        %v1962 = vand.u32 2147483647, %v938
        %v1963 = vand.u32 2147483647, %v939
        %v1964 = vand.u32 2147483647, %v940
        %v1965 = vand.u32 2147483647, %v941
        %v1966 = vand.u32 2147483647, %v942
        %v1967 = vand.u32 2147483647, %v943
        %v1968 = vand.u32 2147483647, %v944
        %v1969 = vand.u32 2147483647, %v945
        %v1970 = vand.u32 2147483647, %v946
        %v1971 = vand.u32 2147483647, %v947
        %v1972 = vand.u32 2147483647, %v948
        %v1973 = vand.u32 2147483647, %v949
        %v1974 = vand.u32 2147483647, %v950
        %v1975 = vand.u32 2147483647, %v951
        %v1976 = vand.u32 2147483647, %v952
        %v1977 = vand.u32 2147483647, %v953
        %v1978 = vand.u32 2147483647, %v954
        %v1979 = vand.u32 2147483647, %v955
        %v1980 = vand.u32 2147483647, %v956
        %v1981 = vand.u32 2147483647, %v957
        %v1982 = vand.u32 2147483647, %v958
        %v1983 = vand.u32 2147483647, %v959
        %v1984 = vand.u32 2147483647, %v960
        %v1985 = vand.u32 2147483647, %v961
        %v1986 = vand.u32 2147483647, %v962
        %v1987 = vand.u32 2147483647, %v963
        %v1988 = vand.u32 2147483647, %v964
        %v1989 = vand.u32 2147483647, %v965
        %v1990 = vand.u32 2147483647, %v966
        %v1991 = vand.u32 2147483647, %v967
        %v1992 = vand.u32 2147483647, %v968
        %v1993 = vand.u32 2147483647, %v969
        %v1994 = vand.u32 2147483647, %v970
        %v1995 = vand.u32 2147483647, %v971
        %v1996 = vand.u32 2147483647, %v972
        %v1997 = vand.u32 2147483647, %v973
        %v1998 = vand.u32 2147483647, %v974
        %v1999 = vand.u32 2147483647, %v975
        %v2000 = vand.u32 2147483647, %v976
        %v2001 = vand.u32 2147483647, %v977
        %v2002 = vand.u32 2147483647, %v978
        %v2003 = vand.u32 2147483647, %v979
        %v2004 = vand.u32 2147483647, %v980
        %v2005 = vand.u32 2147483647, %v981
        %v2006 = vand.u32 2147483647, %v982
        %v2007 = vand.u32 2147483647, %v983
        %v2008 = vand.u32 2147483647, %v984
        %v2009 = vand.u32 2147483647, %v985
        %v2010 = vand.u32 2147483647, %v986
        %v2011 = vand.u32 2147483647, %v987
        %v2012 = vand.u32 2147483647, %v988
        %v2013 = vand.u32 2147483647, %v989
        %v2014 = vand.u32 2147483647, %v990
        %v2015 = vand.u32 2147483647, %v991
        %v2016 = vand.u32 2147483647, %v992
        %v2017 = vand.u32 2147483647, %v993
        %v2018 = vand.u32 2147483647, %v994
        %v2019 = vand.u32 2147483647, %v995
        %v2020 = vand.u32 2147483647, %v996
        %v2021 = vand.u32 2147483647, %v997
        %v2022 = vand.u32 2147483647, %v998
        %v2023 = vand.u32 2147483647, %v999
        %v2024 = vand.u32 2147483647, %v1000
        %v2025 = vand.u32 2147483647, %v1001
        %v2026 = vand.u32 2147483647, %v1002
        %v2027 = vand.u32 2147483647, %v1003
        %v2028 = vand.u32 2147483647, %v1004
        %v2029 = vand.u32 2147483647, %v1005
        %v2030 = vand.u32 2147483647, %v1006
        %v2031 = vand.u32 2147483647, %v1007
        %v2032 = vand.u32 2147483647, %v1008
        %v2033 = vand.u32 2147483647, %v1009
        %v2034 = vand.u32 2147483647, %v1010
        %v2035 = vand.u32 2147483647, %v1011
        %v2036 = vand.u32 2147483647, %v1012
        %v2037 = vand.u32 2147483647, %v1013
        %v2038 = vand.u32 2147483647, %v1014
        %v2039 = vand.u32 2147483647, %v1015
        %v2040 = vand.u32 2147483647, %v1016
        %v2041 = vand.u32 2147483647, %v1017
        %v2042 = vand.u32 2147483647, %v1018
        %v2043 = vand.u32 2147483647, %v1019
        %v2044 = vand.u32 2147483647, %v1020
        %v2045 = vand.u32 2147483647, %v1021
        %v2046 = vand.u32 2147483647, %v1022
        %v2047 = vand.u32 2147483647, %v1023
        %v2048 = vand.u32 2147483647, %v1024
        %v2049 = vand.u32 2147483647, %v1025
        %v2050 = vand.u32 2147483647, %v1026
        %v2051 = vand.u32 2147483647, %v1027
        %v2052 = vand.u32 2147483647, %v1028
        %v2053 = vand.u32 2147483647, %v1029
        %v2054 = vand.u32 2147483647, %v1030
        %v2055 = vand.u32 2147483647, %v1031
        %v2056 = vand.u32 2147483647, %v1032
        %v2057 = vand.u32 2147483647, %v1033
        %v2058 = vand.u32 2147483647, %v1034
        %v2059 = vand.u32 2147483647, %v1035
        %v2060 = vand.u32 2147483647, %v1036
        %v2061 = vand.u32 2147483647, %v1037
        %v2062 = vand.u32 2147483647, %v1038
        %v2063 = vand.u32 2147483647, %v1039
        %v2064 = vand.u32 2147483647, %v1040
        %v2065 = vand.u32 2147483647, %v1041
        %v2066 = vand.u32 2147483647, %v1042
        %v2067 = vand.u32 2147483647, %v1043
        %v2068 = vand.u32 2147483647, %v1044
        %v2069 = vand.u32 2147483647, %v1045
        %v2070 = vand.u32 2147483647, %v1046
        %v2071 = vand.u32 2147483647, %v1047
        %v2072 = vand.u32 2147483647, %v1048
        %v2073 = vand.u32 2147483647, %v1049
        %v2074 = vand.u32 2147483647, %v1050
        %v2075 = vand.u32 2147483647, %v1051
        %v2076 = vand.u32 2147483647, %v1052
        %v2077 = vand.u32 2147483647, %v1053
        %v2078 = vand.u32 2147483647, %v1054
        %v2079 = vand.u32 2147483647, %v1055
        %v2080 = vand.u32 2147483647, %v1056
        %v2081 = vand.u32 2147483647, %v1057
        %v2082 = vand.u32 2147483647, %v1058
        %v2083 = vand.u32 2147483647, %v1059
        %v2084 = vand.u32 2147483647, %v1060
        %v2085 = vand.u32 2147483647, %v1061
        %v2086 = vand.u32 2147483647, %v1062
        %v2087 = vand.u32 2147483647, %v1063
        %v2088 = vand.u32 2147483647, %v1064
        %v2089 = vand.u32 2147483647, %v1065
        %v2090 = vand.u32 2147483647, %v1066
        %v2091 = vand.u32 2147483647, %v1067
        %v2092 = vand.u32 2147483647, %v1068
        %v2093 = vand.u32 2147483647, %v1069
        %v2094 = vand.u32 2147483647, %v1070
        %v2095 = vand.u32 2147483647, %v1071
        %v2096 = vand.u32 2147483647, %v1072
        %v2097 = vand.u32 2147483647, %v1073
        %v2098 = vand.u32 2147483647, %v1074
        %v2099 = vand.u32 2147483647, %v1075
        %v2100 = vand.u32 2147483647, %v1076
        %v2101 = vand.u32 2147483647, %v1077
        %v2102 = vand.u32 2147483647, %v1078
        %v2103 = vand.u32 2147483647, %v1079
        %v2104 = vand.u32 2147483647, %v1080
        %v2105 = vand.u32 2147483647, %v1081
        %v2106 = vand.u32 2147483647, %v1082
        %v2107 = vand.u32 2147483647, %v1083
        %v2108 = vand.u32 2147483647, %v1084
        %v2109 = vand.u32 2147483647, %v1085
        %v2110 = vand.u32 2147483647, %v1086
        %v2111 = vand.u32 2147483647, %v1087
        %v2112 = vand.u32 2147483647, %v1088
        %v2113 = vand.u32 2147483647, %v1089
        %v2114 = vand.u32 2147483647, %v1090
        %v2115 = vand.u32 2147483647, %v1091
        %v2116 = vand.u32 2147483647, %v1092
        %v2117 = vand.u32 2147483647, %v1093
        %v2118 = vand.u32 2147483647, %v1094
        %v2119 = vand.u32 2147483647, %v1095
        %v2120 = vand.u32 2147483647, %v1096
        %v2121 = vand.u32 2147483647, %v1097
        %v2122 = vand.u32 2147483647, %v1098
        %v2123 = vand.u32 2147483647, %v1099
        %v2124 = vand.u32 2147483647, %v1100
        %v2125 = vand.u32 2147483647, %v1101
        %v2126 = vand.u32 2147483647, %v1102
        %v2127 = vand.u32 2147483647, %v1103
        %v2128 = vand.u32 2147483647, %v1104
        %v2129 = vand.u32 2147483647, %v1105
        %v2130 = vand.u32 2147483647, %v1106
        %v2131 = vand.u32 2147483647, %v1107
        %v2132 = vand.u32 2147483647, %v1108
        %v2133 = vand.u32 2147483647, %v1109
        %v2134 = vand.u32 2147483647, %v1110
        %v2135 = vand.u32 2147483647, %v1111
        %v2136 = vand.u32 2147483647, %v1112
        %v2137 = vand.u32 2147483647, %v1113
        %v2138 = vand.u32 2147483647, %v1114
        %v2139 = vand.u32 2147483647, %v1115
        %v2140 = vand.u32 2147483647, %v1116
        %v2141 = vand.u32 2147483647, %v1117
        %v2142 = vand.u32 2147483647, %v1118
        %v2143 = vand.u32 2147483647, %v1119
        %v2144 = vand.u32 2147483647, %v1120
        %v2145 = vand.u32 2147483647, %v1121
        %v2146 = vand.u32 2147483647, %v1122
        %v2147 = vand.u32 2147483647, %v1123
        %v2148 = vand.u32 2147483647, %v1124
        %v2149 = vand.u32 2147483647, %v1125
        %v2150 = vand.u32 2147483647, %v1126
        %v2151 = vand.u32 2147483647, %v1127
        %v2152 = vand.u32 2147483647, %v1128
        %v2153 = vand.u32 2147483647, %v1129
        %v2154 = vand.u32 2147483647, %v1130
        %v2155 = vand.u32 2147483647, %v1131
        %v2156 = vand.u32 2147483647, %v1132
        %v2157 = vand.u32 2147483647, %v1133
        %v2158 = vand.u32 2147483647, %v1134
        %v2159 = vand.u32 2147483647, %v1135
        %v2160 = vand.u32 2147483647, %v1136
        %v2161 = vand.u32 2147483647, %v1137
        %v2162 = vand.u32 2147483647, %v1138
        %v2163 = vand.u32 2147483647, %v1139
        %v2164 = vand.u32 2147483647, %v1140
        %v2165 = vand.u32 2147483647, %v1141
        %v2166 = vand.u32 2147483647, %v1142
        %v2167 = vand.u32 2147483647, %v1143
        %v2168 = vand.u32 2147483647, %v1144
        %v2169 = vand.u32 2147483647, %v1145
        %v2170 = vand.u32 2147483647, %v1146
        %v2171 = vand.u32 2147483647, %v1147
        %v2172 = vand.u32 2147483647, %v1148
        %v2173 = vand.u32 2147483647, %v1149
        %v2174 = vand.u32 2147483647, %v1150
        %v2175 = vand.u32 2147483647, %v1151
        %v2176 = vand.u32 2147483647, %v1152
        %v2177 = vand.u32 2147483647, %v1153
        %v2178 = vand.u32 2147483647, %v1154
        %v2179 = vand.u32 2147483647, %v1155
        %v2180 = vand.u32 2147483647, %v1156
        %v2181 = vand.u32 2147483647, %v1157
        %v2182 = vand.u32 2147483647, %v1158
        %v2183 = vand.u32 2147483647, %v1159
        %v2184 = vand.u32 2147483647, %v1160
        %v2185 = vand.u32 2147483647, %v1161
        %vm2186 = vcmp.le.f32.partialorder %v1162, 0.01
        %vm2187 = vcmp.le.f32.partialorder %v1163, 0.01
        %vm2188 = vcmp.le.f32.partialorder %v1164, 0.01
        %vm2189 = vcmp.le.f32.partialorder %v1165, 0.01
        %vm2190 = vcmp.le.f32.partialorder %v1166, 0.01
        %vm2191 = vcmp.le.f32.partialorder %v1167, 0.01
        %vm2192 = vcmp.le.f32.partialorder %v1168, 0.01
        %vm2193 = vcmp.le.f32.partialorder %v1169, 0.01
        %vm2194 = vcmp.le.f32.partialorder %v1170, 0.01
        %vm2195 = vcmp.le.f32.partialorder %v1171, 0.01
        %vm2196 = vcmp.le.f32.partialorder %v1172, 0.01
        %vm2197 = vcmp.le.f32.partialorder %v1173, 0.01
        %vm2198 = vcmp.le.f32.partialorder %v1174, 0.01
        %vm2199 = vcmp.le.f32.partialorder %v1175, 0.01
        %vm2200 = vcmp.le.f32.partialorder %v1176, 0.01
        %vm2201 = vcmp.le.f32.partialorder %v1177, 0.01
        %vm2202 = vcmp.le.f32.partialorder %v1178, 0.01
        %vm2203 = vcmp.le.f32.partialorder %v1179, 0.01
        %vm2204 = vcmp.le.f32.partialorder %v1180, 0.01
        %vm2205 = vcmp.le.f32.partialorder %v1181, 0.01
        %vm2206 = vcmp.le.f32.partialorder %v1182, 0.01
        %vm2207 = vcmp.le.f32.partialorder %v1183, 0.01
        %vm2208 = vcmp.le.f32.partialorder %v1184, 0.01
        %vm2209 = vcmp.le.f32.partialorder %v1185, 0.01
        %vm2210 = vcmp.le.f32.partialorder %v1186, 0.01
        %vm2211 = vcmp.le.f32.partialorder %v1187, 0.01
        %vm2212 = vcmp.le.f32.partialorder %v1188, 0.01
        %vm2213 = vcmp.le.f32.partialorder %v1189, 0.01
        %vm2214 = vcmp.le.f32.partialorder %v1190, 0.01
        %vm2215 = vcmp.le.f32.partialorder %v1191, 0.01
        %vm2216 = vcmp.le.f32.partialorder %v1192, 0.01
        %vm2217 = vcmp.le.f32.partialorder %v1193, 0.01
        %vm2218 = vcmp.le.f32.partialorder %v1194, 0.01
        %vm2219 = vcmp.le.f32.partialorder %v1195, 0.01
        %vm2220 = vcmp.le.f32.partialorder %v1196, 0.01
        %vm2221 = vcmp.le.f32.partialorder %v1197, 0.01
        %vm2222 = vcmp.le.f32.partialorder %v1198, 0.01
        %vm2223 = vcmp.le.f32.partialorder %v1199, 0.01
        %vm2224 = vcmp.le.f32.partialorder %v1200, 0.01
        %vm2225 = vcmp.le.f32.partialorder %v1201, 0.01
        %vm2226 = vcmp.le.f32.partialorder %v1202, 0.01
        %vm2227 = vcmp.le.f32.partialorder %v1203, 0.01
        %vm2228 = vcmp.le.f32.partialorder %v1204, 0.01
        %vm2229 = vcmp.le.f32.partialorder %v1205, 0.01
        %vm2230 = vcmp.le.f32.partialorder %v1206, 0.01
        %vm2231 = vcmp.le.f32.partialorder %v1207, 0.01
        %vm2232 = vcmp.le.f32.partialorder %v1208, 0.01
        %vm2233 = vcmp.le.f32.partialorder %v1209, 0.01
        %vm2234 = vcmp.le.f32.partialorder %v1210, 0.01
        %vm2235 = vcmp.le.f32.partialorder %v1211, 0.01
        %vm2236 = vcmp.le.f32.partialorder %v1212, 0.01
        %vm2237 = vcmp.le.f32.partialorder %v1213, 0.01
        %vm2238 = vcmp.le.f32.partialorder %v1214, 0.01
        %vm2239 = vcmp.le.f32.partialorder %v1215, 0.01
        %vm2240 = vcmp.le.f32.partialorder %v1216, 0.01
        %vm2241 = vcmp.le.f32.partialorder %v1217, 0.01
        %vm2242 = vcmp.le.f32.partialorder %v1218, 0.01
        %vm2243 = vcmp.le.f32.partialorder %v1219, 0.01
        %vm2244 = vcmp.le.f32.partialorder %v1220, 0.01
        %vm2245 = vcmp.le.f32.partialorder %v1221, 0.01
        %vm2246 = vcmp.le.f32.partialorder %v1222, 0.01
        %vm2247 = vcmp.le.f32.partialorder %v1223, 0.01
        %vm2248 = vcmp.le.f32.partialorder %v1224, 0.01
        %vm2249 = vcmp.le.f32.partialorder %v1225, 0.01
        %vm2250 = vcmp.le.f32.partialorder %v1226, 0.01
        %vm2251 = vcmp.le.f32.partialorder %v1227, 0.01
        %vm2252 = vcmp.le.f32.partialorder %v1228, 0.01
        %vm2253 = vcmp.le.f32.partialorder %v1229, 0.01
        %vm2254 = vcmp.le.f32.partialorder %v1230, 0.01
        %vm2255 = vcmp.le.f32.partialorder %v1231, 0.01
        %vm2256 = vcmp.le.f32.partialorder %v1232, 0.01
        %vm2257 = vcmp.le.f32.partialorder %v1233, 0.01
        %vm2258 = vcmp.le.f32.partialorder %v1234, 0.01
        %vm2259 = vcmp.le.f32.partialorder %v1235, 0.01
        %vm2260 = vcmp.le.f32.partialorder %v1236, 0.01
        %vm2261 = vcmp.le.f32.partialorder %v1237, 0.01
        %vm2262 = vcmp.le.f32.partialorder %v1238, 0.01
        %vm2263 = vcmp.le.f32.partialorder %v1239, 0.01
        %vm2264 = vcmp.le.f32.partialorder %v1240, 0.01
        %vm2265 = vcmp.le.f32.partialorder %v1241, 0.01
        %vm2266 = vcmp.le.f32.partialorder %v1242, 0.01
        %vm2267 = vcmp.le.f32.partialorder %v1243, 0.01
        %vm2268 = vcmp.le.f32.partialorder %v1244, 0.01
        %vm2269 = vcmp.le.f32.partialorder %v1245, 0.01
        %vm2270 = vcmp.le.f32.partialorder %v1246, 0.01
        %vm2271 = vcmp.le.f32.partialorder %v1247, 0.01
        %vm2272 = vcmp.le.f32.partialorder %v1248, 0.01
        %vm2273 = vcmp.le.f32.partialorder %v1249, 0.01
        %vm2274 = vcmp.le.f32.partialorder %v1250, 0.01
        %vm2275 = vcmp.le.f32.partialorder %v1251, 0.01
        %vm2276 = vcmp.le.f32.partialorder %v1252, 0.01
        %vm2277 = vcmp.le.f32.partialorder %v1253, 0.01
        %vm2278 = vcmp.le.f32.partialorder %v1254, 0.01
        %vm2279 = vcmp.le.f32.partialorder %v1255, 0.01
        %vm2280 = vcmp.le.f32.partialorder %v1256, 0.01
        %vm2281 = vcmp.le.f32.partialorder %v1257, 0.01
        %vm2282 = vcmp.le.f32.partialorder %v1258, 0.01
        %vm2283 = vcmp.le.f32.partialorder %v1259, 0.01
        %vm2284 = vcmp.le.f32.partialorder %v1260, 0.01
        %vm2285 = vcmp.le.f32.partialorder %v1261, 0.01
        %vm2286 = vcmp.le.f32.partialorder %v1262, 0.01
        %vm2287 = vcmp.le.f32.partialorder %v1263, 0.01
        %vm2288 = vcmp.le.f32.partialorder %v1264, 0.01
        %vm2289 = vcmp.le.f32.partialorder %v1265, 0.01
        %vm2290 = vcmp.le.f32.partialorder %v1266, 0.01
        %vm2291 = vcmp.le.f32.partialorder %v1267, 0.01
        %vm2292 = vcmp.le.f32.partialorder %v1268, 0.01
        %vm2293 = vcmp.le.f32.partialorder %v1269, 0.01
        %vm2294 = vcmp.le.f32.partialorder %v1270, 0.01
        %vm2295 = vcmp.le.f32.partialorder %v1271, 0.01
        %vm2296 = vcmp.le.f32.partialorder %v1272, 0.01
        %vm2297 = vcmp.le.f32.partialorder %v1273, 0.01
        %vm2298 = vcmp.le.f32.partialorder %v1274, 0.01
        %vm2299 = vcmp.le.f32.partialorder %v1275, 0.01
        %vm2300 = vcmp.le.f32.partialorder %v1276, 0.01
        %vm2301 = vcmp.le.f32.partialorder %v1277, 0.01
        %vm2302 = vcmp.le.f32.partialorder %v1278, 0.01
        %vm2303 = vcmp.le.f32.partialorder %v1279, 0.01
        %vm2304 = vcmp.le.f32.partialorder %v1280, 0.01
        %vm2305 = vcmp.le.f32.partialorder %v1281, 0.01
        %vm2306 = vcmp.le.f32.partialorder %v1282, 0.01
        %vm2307 = vcmp.le.f32.partialorder %v1283, 0.01
        %vm2308 = vcmp.le.f32.partialorder %v1284, 0.01
        %vm2309 = vcmp.le.f32.partialorder %v1285, 0.01
        %vm2310 = vcmp.le.f32.partialorder %v1286, 0.01
        %vm2311 = vcmp.le.f32.partialorder %v1287, 0.01
        %vm2312 = vcmp.le.f32.partialorder %v1288, 0.01
        %vm2313 = vcmp.le.f32.partialorder %v1289, 0.01
        %vm2314 = vcmp.le.f32.partialorder %v1290, 0.01
        %vm2315 = vcmp.le.f32.partialorder %v1291, 0.01
        %vm2316 = vcmp.le.f32.partialorder %v1292, 0.01
        %vm2317 = vcmp.le.f32.partialorder %v1293, 0.01
        %vm2318 = vcmp.le.f32.partialorder %v1294, 0.01
        %vm2319 = vcmp.le.f32.partialorder %v1295, 0.01
        %vm2320 = vcmp.le.f32.partialorder %v1296, 0.01
        %vm2321 = vcmp.le.f32.partialorder %v1297, 0.01
        %vm2322 = vcmp.le.f32.partialorder %v1298, 0.01
        %vm2323 = vcmp.le.f32.partialorder %v1299, 0.01
        %vm2324 = vcmp.le.f32.partialorder %v1300, 0.01
        %vm2325 = vcmp.le.f32.partialorder %v1301, 0.01
        %vm2326 = vcmp.le.f32.partialorder %v1302, 0.01
        %vm2327 = vcmp.le.f32.partialorder %v1303, 0.01
        %vm2328 = vcmp.le.f32.partialorder %v1304, 0.01
        %vm2329 = vcmp.le.f32.partialorder %v1305, 0.01
        %vm2330 = vcmp.le.f32.partialorder %v1306, 0.01
        %vm2331 = vcmp.le.f32.partialorder %v1307, 0.01
        %vm2332 = vcmp.le.f32.partialorder %v1308, 0.01
        %vm2333 = vcmp.le.f32.partialorder %v1309, 0.01
        %vm2334 = vcmp.le.f32.partialorder %v1310, 0.01
        %vm2335 = vcmp.le.f32.partialorder %v1311, 0.01
        %vm2336 = vcmp.le.f32.partialorder %v1312, 0.01
        %vm2337 = vcmp.le.f32.partialorder %v1313, 0.01
        %vm2338 = vcmp.le.f32.partialorder %v1314, 0.01
        %vm2339 = vcmp.le.f32.partialorder %v1315, 0.01
        %vm2340 = vcmp.le.f32.partialorder %v1316, 0.01
        %vm2341 = vcmp.le.f32.partialorder %v1317, 0.01
        %vm2342 = vcmp.le.f32.partialorder %v1318, 0.01
        %vm2343 = vcmp.le.f32.partialorder %v1319, 0.01
        %vm2344 = vcmp.le.f32.partialorder %v1320, 0.01
        %vm2345 = vcmp.le.f32.partialorder %v1321, 0.01
        %vm2346 = vcmp.le.f32.partialorder %v1322, 0.01
        %vm2347 = vcmp.le.f32.partialorder %v1323, 0.01
        %vm2348 = vcmp.le.f32.partialorder %v1324, 0.01
        %vm2349 = vcmp.le.f32.partialorder %v1325, 0.01
        %vm2350 = vcmp.le.f32.partialorder %v1326, 0.01
        %vm2351 = vcmp.le.f32.partialorder %v1327, 0.01
        %vm2352 = vcmp.le.f32.partialorder %v1328, 0.01
        %vm2353 = vcmp.le.f32.partialorder %v1329, 0.01
        %vm2354 = vcmp.le.f32.partialorder %v1330, 0.01
        %vm2355 = vcmp.le.f32.partialorder %v1331, 0.01
        %vm2356 = vcmp.le.f32.partialorder %v1332, 0.01
        %vm2357 = vcmp.le.f32.partialorder %v1333, 0.01
        %vm2358 = vcmp.le.f32.partialorder %v1334, 0.01
        %vm2359 = vcmp.le.f32.partialorder %v1335, 0.01
        %vm2360 = vcmp.le.f32.partialorder %v1336, 0.01
        %vm2361 = vcmp.le.f32.partialorder %v1337, 0.01
        %vm2362 = vcmp.le.f32.partialorder %v1338, 0.01
        %vm2363 = vcmp.le.f32.partialorder %v1339, 0.01
        %vm2364 = vcmp.le.f32.partialorder %v1340, 0.01
        %vm2365 = vcmp.le.f32.partialorder %v1341, 0.01
        %vm2366 = vcmp.le.f32.partialorder %v1342, 0.01
        %vm2367 = vcmp.le.f32.partialorder %v1343, 0.01
        %vm2368 = vcmp.le.f32.partialorder %v1344, 0.01
        %vm2369 = vcmp.le.f32.partialorder %v1345, 0.01
        %vm2370 = vcmp.le.f32.partialorder %v1346, 0.01
        %vm2371 = vcmp.le.f32.partialorder %v1347, 0.01
        %vm2372 = vcmp.le.f32.partialorder %v1348, 0.01
        %vm2373 = vcmp.le.f32.partialorder %v1349, 0.01
        %vm2374 = vcmp.le.f32.partialorder %v1350, 0.01
        %vm2375 = vcmp.le.f32.partialorder %v1351, 0.01
        %vm2376 = vcmp.le.f32.partialorder %v1352, 0.01
        %vm2377 = vcmp.le.f32.partialorder %v1353, 0.01
        %vm2378 = vcmp.le.f32.partialorder %v1354, 0.01
        %vm2379 = vcmp.le.f32.partialorder %v1355, 0.01
        %vm2380 = vcmp.le.f32.partialorder %v1356, 0.01
        %vm2381 = vcmp.le.f32.partialorder %v1357, 0.01
        %vm2382 = vcmp.le.f32.partialorder %v1358, 0.01
        %vm2383 = vcmp.le.f32.partialorder %v1359, 0.01
        %vm2384 = vcmp.le.f32.partialorder %v1360, 0.01
        %vm2385 = vcmp.le.f32.partialorder %v1361, 0.01
        %vm2386 = vcmp.le.f32.partialorder %v1362, 0.01
        %vm2387 = vcmp.le.f32.partialorder %v1363, 0.01
        %vm2388 = vcmp.le.f32.partialorder %v1364, 0.01
        %vm2389 = vcmp.le.f32.partialorder %v1365, 0.01
        %vm2390 = vcmp.le.f32.partialorder %v1366, 0.01
        %vm2391 = vcmp.le.f32.partialorder %v1367, 0.01
        %vm2392 = vcmp.le.f32.partialorder %v1368, 0.01
        %vm2393 = vcmp.le.f32.partialorder %v1369, 0.01
        %vm2394 = vcmp.le.f32.partialorder %v1370, 0.01
        %vm2395 = vcmp.le.f32.partialorder %v1371, 0.01
        %vm2396 = vcmp.le.f32.partialorder %v1372, 0.01
        %vm2397 = vcmp.le.f32.partialorder %v1373, 0.01
        %vm2398 = vcmp.le.f32.partialorder %v1374, 0.01
        %vm2399 = vcmp.le.f32.partialorder %v1375, 0.01
        %vm2400 = vcmp.le.f32.partialorder %v1376, 0.01
        %vm2401 = vcmp.le.f32.partialorder %v1377, 0.01
        %vm2402 = vcmp.le.f32.partialorder %v1378, 0.01
        %vm2403 = vcmp.le.f32.partialorder %v1379, 0.01
        %vm2404 = vcmp.le.f32.partialorder %v1380, 0.01
        %vm2405 = vcmp.le.f32.partialorder %v1381, 0.01
        %vm2406 = vcmp.le.f32.partialorder %v1382, 0.01
        %vm2407 = vcmp.le.f32.partialorder %v1383, 0.01
        %vm2408 = vcmp.le.f32.partialorder %v1384, 0.01
        %vm2409 = vcmp.le.f32.partialorder %v1385, 0.01
        %vm2410 = vcmp.le.f32.partialorder %v1386, 0.01
        %vm2411 = vcmp.le.f32.partialorder %v1387, 0.01
        %vm2412 = vcmp.le.f32.partialorder %v1388, 0.01
        %vm2413 = vcmp.le.f32.partialorder %v1389, 0.01
        %vm2414 = vcmp.le.f32.partialorder %v1390, 0.01
        %vm2415 = vcmp.le.f32.partialorder %v1391, 0.01
        %vm2416 = vcmp.le.f32.partialorder %v1392, 0.01
        %vm2417 = vcmp.le.f32.partialorder %v1393, 0.01
        %vm2418 = vcmp.le.f32.partialorder %v1394, 0.01
        %vm2419 = vcmp.le.f32.partialorder %v1395, 0.01
        %vm2420 = vcmp.le.f32.partialorder %v1396, 0.01
        %vm2421 = vcmp.le.f32.partialorder %v1397, 0.01
        %vm2422 = vcmp.le.f32.partialorder %v1398, 0.01
        %vm2423 = vcmp.le.f32.partialorder %v1399, 0.01
        %vm2424 = vcmp.le.f32.partialorder %v1400, 0.01
        %vm2425 = vcmp.le.f32.partialorder %v1401, 0.01
        %vm2426 = vcmp.le.f32.partialorder %v1402, 0.01
        %vm2427 = vcmp.le.f32.partialorder %v1403, 0.01
        %vm2428 = vcmp.le.f32.partialorder %v1404, 0.01
        %vm2429 = vcmp.le.f32.partialorder %v1405, 0.01
        %vm2430 = vcmp.le.f32.partialorder %v1406, 0.01
        %vm2431 = vcmp.le.f32.partialorder %v1407, 0.01
        %vm2432 = vcmp.le.f32.partialorder %v1408, 0.01
        %vm2433 = vcmp.le.f32.partialorder %v1409, 0.01
        %vm2434 = vcmp.le.f32.partialorder %v1410, 0.01
        %vm2435 = vcmp.le.f32.partialorder %v1411, 0.01
        %vm2436 = vcmp.le.f32.partialorder %v1412, 0.01
        %vm2437 = vcmp.le.f32.partialorder %v1413, 0.01
        %vm2438 = vcmp.le.f32.partialorder %v1414, 0.01
        %vm2439 = vcmp.le.f32.partialorder %v1415, 0.01
        %vm2440 = vcmp.le.f32.partialorder %v1416, 0.01
        %vm2441 = vcmp.le.f32.partialorder %v1417, 0.01
        %vm2442 = vcmp.le.f32.partialorder %v1418, 0.01
        %vm2443 = vcmp.le.f32.partialorder %v1419, 0.01
        %vm2444 = vcmp.le.f32.partialorder %v1420, 0.01
        %vm2445 = vcmp.le.f32.partialorder %v1421, 0.01
        %vm2446 = vcmp.le.f32.partialorder %v1422, 0.01
        %vm2447 = vcmp.le.f32.partialorder %v1423, 0.01
        %vm2448 = vcmp.le.f32.partialorder %v1424, 0.01
        %vm2449 = vcmp.le.f32.partialorder %v1425, 0.01
        %vm2450 = vcmp.le.f32.partialorder %v1426, 0.01
        %vm2451 = vcmp.le.f32.partialorder %v1427, 0.01
        %vm2452 = vcmp.le.f32.partialorder %v1428, 0.01
        %vm2453 = vcmp.le.f32.partialorder %v1429, 0.01
        %vm2454 = vcmp.le.f32.partialorder %v1430, 0.01
        %vm2455 = vcmp.le.f32.partialorder %v1431, 0.01
        %vm2456 = vcmp.le.f32.partialorder %v1432, 0.01
        %vm2457 = vcmp.le.f32.partialorder %v1433, 0.01
        %vm2458 = vcmp.le.f32.partialorder %v1434, 0.01
        %vm2459 = vcmp.le.f32.partialorder %v1435, 0.01
        %vm2460 = vcmp.le.f32.partialorder %v1436, 0.01
        %vm2461 = vcmp.le.f32.partialorder %v1437, 0.01
        %vm2462 = vcmp.le.f32.partialorder %v1438, 0.01
        %vm2463 = vcmp.le.f32.partialorder %v1439, 0.01
        %vm2464 = vcmp.le.f32.partialorder %v1440, 0.01
        %vm2465 = vcmp.le.f32.partialorder %v1441, 0.01
        %vm2466 = vcmp.le.f32.partialorder %v1442, 0.01
        %vm2467 = vcmp.le.f32.partialorder %v1443, 0.01
        %vm2468 = vcmp.le.f32.partialorder %v1444, 0.01
        %vm2469 = vcmp.le.f32.partialorder %v1445, 0.01
        %vm2470 = vcmp.le.f32.partialorder %v1446, 0.01
        %vm2471 = vcmp.le.f32.partialorder %v1447, 0.01
        %vm2472 = vcmp.le.f32.partialorder %v1448, 0.01
        %vm2473 = vcmp.le.f32.partialorder %v1449, 0.01
        %vm2474 = vcmp.le.f32.partialorder %v1450, 0.01
        %vm2475 = vcmp.le.f32.partialorder %v1451, 0.01
        %vm2476 = vcmp.le.f32.partialorder %v1452, 0.01
        %vm2477 = vcmp.le.f32.partialorder %v1453, 0.01
        %vm2478 = vcmp.le.f32.partialorder %v1454, 0.01
        %vm2479 = vcmp.le.f32.partialorder %v1455, 0.01
        %vm2480 = vcmp.le.f32.partialorder %v1456, 0.01
        %vm2481 = vcmp.le.f32.partialorder %v1457, 0.01
        %vm2482 = vcmp.le.f32.partialorder %v1458, 0.01
        %vm2483 = vcmp.le.f32.partialorder %v1459, 0.01
        %vm2484 = vcmp.le.f32.partialorder %v1460, 0.01
        %vm2485 = vcmp.le.f32.partialorder %v1461, 0.01
        %vm2486 = vcmp.le.f32.partialorder %v1462, 0.01
        %vm2487 = vcmp.le.f32.partialorder %v1463, 0.01
        %vm2488 = vcmp.le.f32.partialorder %v1464, 0.01
        %vm2489 = vcmp.le.f32.partialorder %v1465, 0.01
        %vm2490 = vcmp.le.f32.partialorder %v1466, 0.01
        %vm2491 = vcmp.le.f32.partialorder %v1467, 0.01
        %vm2492 = vcmp.le.f32.partialorder %v1468, 0.01
        %vm2493 = vcmp.le.f32.partialorder %v1469, 0.01
        %vm2494 = vcmp.le.f32.partialorder %v1470, 0.01
        %vm2495 = vcmp.le.f32.partialorder %v1471, 0.01
        %vm2496 = vcmp.le.f32.partialorder %v1472, 0.01
        %vm2497 = vcmp.le.f32.partialorder %v1473, 0.01
        %vm2498 = vcmp.le.f32.partialorder %v1474, 0.01
        %vm2499 = vcmp.le.f32.partialorder %v1475, 0.01
        %vm2500 = vcmp.le.f32.partialorder %v1476, 0.01
        %vm2501 = vcmp.le.f32.partialorder %v1477, 0.01
        %vm2502 = vcmp.le.f32.partialorder %v1478, 0.01
        %vm2503 = vcmp.le.f32.partialorder %v1479, 0.01
        %vm2504 = vcmp.le.f32.partialorder %v1480, 0.01
        %vm2505 = vcmp.le.f32.partialorder %v1481, 0.01
        %vm2506 = vcmp.le.f32.partialorder %v1482, 0.01
        %vm2507 = vcmp.le.f32.partialorder %v1483, 0.01
        %vm2508 = vcmp.le.f32.partialorder %v1484, 0.01
        %vm2509 = vcmp.le.f32.partialorder %v1485, 0.01
        %vm2510 = vcmp.le.f32.partialorder %v1486, 0.01
        %vm2511 = vcmp.le.f32.partialorder %v1487, 0.01
        %vm2512 = vcmp.le.f32.partialorder %v1488, 0.01
        %vm2513 = vcmp.le.f32.partialorder %v1489, 0.01
        %vm2514 = vcmp.le.f32.partialorder %v1490, 0.01
        %vm2515 = vcmp.le.f32.partialorder %v1491, 0.01
        %vm2516 = vcmp.le.f32.partialorder %v1492, 0.01
        %vm2517 = vcmp.le.f32.partialorder %v1493, 0.01
        %vm2518 = vcmp.le.f32.partialorder %v1494, 0.01
        %vm2519 = vcmp.le.f32.partialorder %v1495, 0.01
        %vm2520 = vcmp.le.f32.partialorder %v1496, 0.01
        %vm2521 = vcmp.le.f32.partialorder %v1497, 0.01
        %vm2522 = vcmp.le.f32.partialorder %v1498, 0.01
        %vm2523 = vcmp.le.f32.partialorder %v1499, 0.01
        %vm2524 = vcmp.le.f32.partialorder %v1500, 0.01
        %vm2525 = vcmp.le.f32.partialorder %v1501, 0.01
        %vm2526 = vcmp.le.f32.partialorder %v1502, 0.01
        %vm2527 = vcmp.le.f32.partialorder %v1503, 0.01
        %vm2528 = vcmp.le.f32.partialorder %v1504, 0.01
        %vm2529 = vcmp.le.f32.partialorder %v1505, 0.01
        %vm2530 = vcmp.le.f32.partialorder %v1506, 0.01
        %vm2531 = vcmp.le.f32.partialorder %v1507, 0.01
        %vm2532 = vcmp.le.f32.partialorder %v1508, 0.01
        %vm2533 = vcmp.le.f32.partialorder %v1509, 0.01
        %vm2534 = vcmp.le.f32.partialorder %v1510, 0.01
        %vm2535 = vcmp.le.f32.partialorder %v1511, 0.01
        %vm2536 = vcmp.le.f32.partialorder %v1512, 0.01
        %vm2537 = vcmp.le.f32.partialorder %v1513, 0.01
        %vm2538 = vcmp.le.f32.partialorder %v1514, 0.01
        %vm2539 = vcmp.le.f32.partialorder %v1515, 0.01
        %vm2540 = vcmp.le.f32.partialorder %v1516, 0.01
        %vm2541 = vcmp.le.f32.partialorder %v1517, 0.01
        %vm2542 = vcmp.le.f32.partialorder %v1518, 0.01
        %vm2543 = vcmp.le.f32.partialorder %v1519, 0.01
        %vm2544 = vcmp.le.f32.partialorder %v1520, 0.01
        %vm2545 = vcmp.le.f32.partialorder %v1521, 0.01
        %vm2546 = vcmp.le.f32.partialorder %v1522, 0.01
        %vm2547 = vcmp.le.f32.partialorder %v1523, 0.01
        %vm2548 = vcmp.le.f32.partialorder %v1524, 0.01
        %vm2549 = vcmp.le.f32.partialorder %v1525, 0.01
        %vm2550 = vcmp.le.f32.partialorder %v1526, 0.01
        %vm2551 = vcmp.le.f32.partialorder %v1527, 0.01
        %vm2552 = vcmp.le.f32.partialorder %v1528, 0.01
        %vm2553 = vcmp.le.f32.partialorder %v1529, 0.01
        %vm2554 = vcmp.le.f32.partialorder %v1530, 0.01
        %vm2555 = vcmp.le.f32.partialorder %v1531, 0.01
        %vm2556 = vcmp.le.f32.partialorder %v1532, 0.01
        %vm2557 = vcmp.le.f32.partialorder %v1533, 0.01
        %vm2558 = vcmp.le.f32.partialorder %v1534, 0.01
        %vm2559 = vcmp.le.f32.partialorder %v1535, 0.01
        %vm2560 = vcmp.le.f32.partialorder %v1536, 0.01
        %vm2561 = vcmp.le.f32.partialorder %v1537, 0.01
        %vm2562 = vcmp.le.f32.partialorder %v1538, 0.01
        %vm2563 = vcmp.le.f32.partialorder %v1539, 0.01
        %vm2564 = vcmp.le.f32.partialorder %v1540, 0.01
        %vm2565 = vcmp.le.f32.partialorder %v1541, 0.01
        %vm2566 = vcmp.le.f32.partialorder %v1542, 0.01
        %vm2567 = vcmp.le.f32.partialorder %v1543, 0.01
        %vm2568 = vcmp.le.f32.partialorder %v1544, 0.01
        %vm2569 = vcmp.le.f32.partialorder %v1545, 0.01
        %vm2570 = vcmp.le.f32.partialorder %v1546, 0.01
        %vm2571 = vcmp.le.f32.partialorder %v1547, 0.01
        %vm2572 = vcmp.le.f32.partialorder %v1548, 0.01
        %vm2573 = vcmp.le.f32.partialorder %v1549, 0.01
        %vm2574 = vcmp.le.f32.partialorder %v1550, 0.01
        %vm2575 = vcmp.le.f32.partialorder %v1551, 0.01
        %vm2576 = vcmp.le.f32.partialorder %v1552, 0.01
        %vm2577 = vcmp.le.f32.partialorder %v1553, 0.01
        %vm2578 = vcmp.le.f32.partialorder %v1554, 0.01
        %vm2579 = vcmp.le.f32.partialorder %v1555, 0.01
        %vm2580 = vcmp.le.f32.partialorder %v1556, 0.01
        %vm2581 = vcmp.le.f32.partialorder %v1557, 0.01
        %vm2582 = vcmp.le.f32.partialorder %v1558, 0.01
        %vm2583 = vcmp.le.f32.partialorder %v1559, 0.01
        %vm2584 = vcmp.le.f32.partialorder %v1560, 0.01
        %vm2585 = vcmp.le.f32.partialorder %v1561, 0.01
        %vm2586 = vcmp.le.f32.partialorder %v1562, 0.01
        %vm2587 = vcmp.le.f32.partialorder %v1563, 0.01
        %vm2588 = vcmp.le.f32.partialorder %v1564, 0.01
        %vm2589 = vcmp.le.f32.partialorder %v1565, 0.01
        %vm2590 = vcmp.le.f32.partialorder %v1566, 0.01
        %vm2591 = vcmp.le.f32.partialorder %v1567, 0.01
        %vm2592 = vcmp.le.f32.partialorder %v1568, 0.01
        %vm2593 = vcmp.le.f32.partialorder %v1569, 0.01
        %vm2594 = vcmp.le.f32.partialorder %v1570, 0.01
        %vm2595 = vcmp.le.f32.partialorder %v1571, 0.01
        %vm2596 = vcmp.le.f32.partialorder %v1572, 0.01
        %vm2597 = vcmp.le.f32.partialorder %v1573, 0.01
        %vm2598 = vcmp.le.f32.partialorder %v1574, 0.01
        %vm2599 = vcmp.le.f32.partialorder %v1575, 0.01
        %vm2600 = vcmp.le.f32.partialorder %v1576, 0.01
        %vm2601 = vcmp.le.f32.partialorder %v1577, 0.01
        %vm2602 = vcmp.le.f32.partialorder %v1578, 0.01
        %vm2603 = vcmp.le.f32.partialorder %v1579, 0.01
        %vm2604 = vcmp.le.f32.partialorder %v1580, 0.01
        %vm2605 = vcmp.le.f32.partialorder %v1581, 0.01
        %vm2606 = vcmp.le.f32.partialorder %v1582, 0.01
        %vm2607 = vcmp.le.f32.partialorder %v1583, 0.01
        %vm2608 = vcmp.le.f32.partialorder %v1584, 0.01
        %vm2609 = vcmp.le.f32.partialorder %v1585, 0.01
        %vm2610 = vcmp.le.f32.partialorder %v1586, 0.01
        %vm2611 = vcmp.le.f32.partialorder %v1587, 0.01
        %vm2612 = vcmp.le.f32.partialorder %v1588, 0.01
        %vm2613 = vcmp.le.f32.partialorder %v1589, 0.01
        %vm2614 = vcmp.le.f32.partialorder %v1590, 0.01
        %vm2615 = vcmp.le.f32.partialorder %v1591, 0.01
        %vm2616 = vcmp.le.f32.partialorder %v1592, 0.01
        %vm2617 = vcmp.le.f32.partialorder %v1593, 0.01
        %vm2618 = vcmp.le.f32.partialorder %v1594, 0.01
        %vm2619 = vcmp.le.f32.partialorder %v1595, 0.01
        %vm2620 = vcmp.le.f32.partialorder %v1596, 0.01
        %vm2621 = vcmp.le.f32.partialorder %v1597, 0.01
        %vm2622 = vcmp.le.f32.partialorder %v1598, 0.01
        %vm2623 = vcmp.le.f32.partialorder %v1599, 0.01
        %vm2624 = vcmp.le.f32.partialorder %v1600, 0.01
        %vm2625 = vcmp.le.f32.partialorder %v1601, 0.01
        %vm2626 = vcmp.le.f32.partialorder %v1602, 0.01
        %vm2627 = vcmp.le.f32.partialorder %v1603, 0.01
        %vm2628 = vcmp.le.f32.partialorder %v1604, 0.01
        %vm2629 = vcmp.le.f32.partialorder %v1605, 0.01
        %vm2630 = vcmp.le.f32.partialorder %v1606, 0.01
        %vm2631 = vcmp.le.f32.partialorder %v1607, 0.01
        %vm2632 = vcmp.le.f32.partialorder %v1608, 0.01
        %vm2633 = vcmp.le.f32.partialorder %v1609, 0.01
        %vm2634 = vcmp.le.f32.partialorder %v1610, 0.01
        %vm2635 = vcmp.le.f32.partialorder %v1611, 0.01
        %vm2636 = vcmp.le.f32.partialorder %v1612, 0.01
        %vm2637 = vcmp.le.f32.partialorder %v1613, 0.01
        %vm2638 = vcmp.le.f32.partialorder %v1614, 0.01
        %vm2639 = vcmp.le.f32.partialorder %v1615, 0.01
        %vm2640 = vcmp.le.f32.partialorder %v1616, 0.01
        %vm2641 = vcmp.le.f32.partialorder %v1617, 0.01
        %vm2642 = vcmp.le.f32.partialorder %v1618, 0.01
        %vm2643 = vcmp.le.f32.partialorder %v1619, 0.01
        %vm2644 = vcmp.le.f32.partialorder %v1620, 0.01
        %vm2645 = vcmp.le.f32.partialorder %v1621, 0.01
        %vm2646 = vcmp.le.f32.partialorder %v1622, 0.01
        %vm2647 = vcmp.le.f32.partialorder %v1623, 0.01
        %vm2648 = vcmp.le.f32.partialorder %v1624, 0.01
        %vm2649 = vcmp.le.f32.partialorder %v1625, 0.01
        %vm2650 = vcmp.le.f32.partialorder %v1626, 0.01
        %vm2651 = vcmp.le.f32.partialorder %v1627, 0.01
        %vm2652 = vcmp.le.f32.partialorder %v1628, 0.01
        %vm2653 = vcmp.le.f32.partialorder %v1629, 0.01
        %vm2654 = vcmp.le.f32.partialorder %v1630, 0.01
        %vm2655 = vcmp.le.f32.partialorder %v1631, 0.01
        %vm2656 = vcmp.le.f32.partialorder %v1632, 0.01
        %vm2657 = vcmp.le.f32.partialorder %v1633, 0.01
        %vm2658 = vcmp.le.f32.partialorder %v1634, 0.01
        %vm2659 = vcmp.le.f32.partialorder %v1635, 0.01
        %vm2660 = vcmp.le.f32.partialorder %v1636, 0.01
        %vm2661 = vcmp.le.f32.partialorder %v1637, 0.01
        %vm2662 = vcmp.le.f32.partialorder %v1638, 0.01
        %vm2663 = vcmp.le.f32.partialorder %v1639, 0.01
        %vm2664 = vcmp.le.f32.partialorder %v1640, 0.01
        %vm2665 = vcmp.le.f32.partialorder %v1641, 0.01
        %vm2666 = vcmp.le.f32.partialorder %v1642, 0.01
        %vm2667 = vcmp.le.f32.partialorder %v1643, 0.01
        %vm2668 = vcmp.le.f32.partialorder %v1644, 0.01
        %vm2669 = vcmp.le.f32.partialorder %v1645, 0.01
        %vm2670 = vcmp.le.f32.partialorder %v1646, 0.01
        %vm2671 = vcmp.le.f32.partialorder %v1647, 0.01
        %vm2672 = vcmp.le.f32.partialorder %v1648, 0.01
        %vm2673 = vcmp.le.f32.partialorder %v1649, 0.01
        %vm2674 = vcmp.le.f32.partialorder %v1650, 0.01
        %vm2675 = vcmp.le.f32.partialorder %v1651, 0.01
        %vm2676 = vcmp.le.f32.partialorder %v1652, 0.01
        %vm2677 = vcmp.le.f32.partialorder %v1653, 0.01
        %vm2678 = vcmp.le.f32.partialorder %v1654, 0.01
        %vm2679 = vcmp.le.f32.partialorder %v1655, 0.01
        %vm2680 = vcmp.le.f32.partialorder %v1656, 0.01
        %vm2681 = vcmp.le.f32.partialorder %v1657, 0.01
        %vm2682 = vcmp.le.f32.partialorder %v1658, 0.01
        %vm2683 = vcmp.le.f32.partialorder %v1659, 0.01
        %vm2684 = vcmp.le.f32.partialorder %v1660, 0.01
        %vm2685 = vcmp.le.f32.partialorder %v1661, 0.01
        %vm2686 = vcmp.le.f32.partialorder %v1662, 0.01
        %vm2687 = vcmp.le.f32.partialorder %v1663, 0.01
        %vm2688 = vcmp.le.f32.partialorder %v1664, 0.01
        %vm2689 = vcmp.le.f32.partialorder %v1665, 0.01
        %vm2690 = vcmp.le.f32.partialorder %v1666, 0.01
        %vm2691 = vcmp.le.f32.partialorder %v1667, 0.01
        %vm2692 = vcmp.le.f32.partialorder %v1668, 0.01
        %vm2693 = vcmp.le.f32.partialorder %v1669, 0.01
        %vm2694 = vcmp.le.f32.partialorder %v1670, 0.01
        %vm2695 = vcmp.le.f32.partialorder %v1671, 0.01
        %vm2696 = vcmp.le.f32.partialorder %v1672, 0.01
        %vm2697 = vcmp.le.f32.partialorder %v1673, 0.01
        %vm2698 = vcmp.le.f32.partialorder %v1674, 0.01
        %vm2699 = vcmp.le.f32.partialorder %v1675, 0.01
        %vm2700 = vcmp.le.f32.partialorder %v1676, 0.01
        %vm2701 = vcmp.le.f32.partialorder %v1677, 0.01
        %vm2702 = vcmp.le.f32.partialorder %v1678, 0.01
        %vm2703 = vcmp.le.f32.partialorder %v1679, 0.01
        %vm2704 = vcmp.le.f32.partialorder %v1680, 0.01
        %vm2705 = vcmp.le.f32.partialorder %v1681, 0.01
        %vm2706 = vcmp.le.f32.partialorder %v1682, 0.01
        %vm2707 = vcmp.le.f32.partialorder %v1683, 0.01
        %vm2708 = vcmp.le.f32.partialorder %v1684, 0.01
        %vm2709 = vcmp.le.f32.partialorder %v1685, 0.01
        %vm2710 = vcmp.le.f32.partialorder %v1686, 0.01
        %vm2711 = vcmp.le.f32.partialorder %v1687, 0.01
        %vm2712 = vcmp.le.f32.partialorder %v1688, 0.01
        %vm2713 = vcmp.le.f32.partialorder %v1689, 0.01
        %vm2714 = vcmp.le.f32.partialorder %v1690, 0.01
        %vm2715 = vcmp.le.f32.partialorder %v1691, 0.01
        %vm2716 = vcmp.le.f32.partialorder %v1692, 0.01
        %vm2717 = vcmp.le.f32.partialorder %v1693, 0.01
        %vm2718 = vcmp.le.f32.partialorder %v1694, 0.01
        %vm2719 = vcmp.le.f32.partialorder %v1695, 0.01
        %vm2720 = vcmp.le.f32.partialorder %v1696, 0.01
        %vm2721 = vcmp.le.f32.partialorder %v1697, 0.01
        %vm2722 = vcmp.le.f32.partialorder %v1698, 0.01
        %vm2723 = vcmp.le.f32.partialorder %v1699, 0.01
        %vm2724 = vcmp.le.f32.partialorder %v1700, 0.01
        %vm2725 = vcmp.le.f32.partialorder %v1701, 0.01
        %vm2726 = vcmp.le.f32.partialorder %v1702, 0.01
        %vm2727 = vcmp.le.f32.partialorder %v1703, 0.01
        %vm2728 = vcmp.le.f32.partialorder %v1704, 0.01
        %vm2729 = vcmp.le.f32.partialorder %v1705, 0.01
        %vm2730 = vcmp.le.f32.partialorder %v1706, 0.01
        %vm2731 = vcmp.le.f32.partialorder %v1707, 0.01
        %vm2732 = vcmp.le.f32.partialorder %v1708, 0.01
        %vm2733 = vcmp.le.f32.partialorder %v1709, 0.01
        %vm2734 = vcmp.le.f32.partialorder %v1710, 0.01
        %vm2735 = vcmp.le.f32.partialorder %v1711, 0.01
        %vm2736 = vcmp.le.f32.partialorder %v1712, 0.01
        %vm2737 = vcmp.le.f32.partialorder %v1713, 0.01
        %vm2738 = vcmp.le.f32.partialorder %v1714, 0.01
        %vm2739 = vcmp.le.f32.partialorder %v1715, 0.01
        %vm2740 = vcmp.le.f32.partialorder %v1716, 0.01
        %vm2741 = vcmp.le.f32.partialorder %v1717, 0.01
        %vm2742 = vcmp.le.f32.partialorder %v1718, 0.01
        %vm2743 = vcmp.le.f32.partialorder %v1719, 0.01
        %vm2744 = vcmp.le.f32.partialorder %v1720, 0.01
        %vm2745 = vcmp.le.f32.partialorder %v1721, 0.01
        %vm2746 = vcmp.le.f32.partialorder %v1722, 0.01
        %vm2747 = vcmp.le.f32.partialorder %v1723, 0.01
        %vm2748 = vcmp.le.f32.partialorder %v1724, 0.01
        %vm2749 = vcmp.le.f32.partialorder %v1725, 0.01
        %vm2750 = vcmp.le.f32.partialorder %v1726, 0.01
        %vm2751 = vcmp.le.f32.partialorder %v1727, 0.01
        %vm2752 = vcmp.le.f32.partialorder %v1728, 0.01
        %vm2753 = vcmp.le.f32.partialorder %v1729, 0.01
        %vm2754 = vcmp.le.f32.partialorder %v1730, 0.01
        %vm2755 = vcmp.le.f32.partialorder %v1731, 0.01
        %vm2756 = vcmp.le.f32.partialorder %v1732, 0.01
        %vm2757 = vcmp.le.f32.partialorder %v1733, 0.01
        %vm2758 = vcmp.le.f32.partialorder %v1734, 0.01
        %vm2759 = vcmp.le.f32.partialorder %v1735, 0.01
        %vm2760 = vcmp.le.f32.partialorder %v1736, 0.01
        %vm2761 = vcmp.le.f32.partialorder %v1737, 0.01
        %vm2762 = vcmp.le.f32.partialorder %v1738, 0.01
        %vm2763 = vcmp.le.f32.partialorder %v1739, 0.01
        %vm2764 = vcmp.le.f32.partialorder %v1740, 0.01
        %vm2765 = vcmp.le.f32.partialorder %v1741, 0.01
        %vm2766 = vcmp.le.f32.partialorder %v1742, 0.01
        %vm2767 = vcmp.le.f32.partialorder %v1743, 0.01
        %vm2768 = vcmp.le.f32.partialorder %v1744, 0.01
        %vm2769 = vcmp.le.f32.partialorder %v1745, 0.01
        %vm2770 = vcmp.le.f32.partialorder %v1746, 0.01
        %vm2771 = vcmp.le.f32.partialorder %v1747, 0.01
        %vm2772 = vcmp.le.f32.partialorder %v1748, 0.01
        %vm2773 = vcmp.le.f32.partialorder %v1749, 0.01
        %vm2774 = vcmp.le.f32.partialorder %v1750, 0.01
        %vm2775 = vcmp.le.f32.partialorder %v1751, 0.01
        %vm2776 = vcmp.le.f32.partialorder %v1752, 0.01
        %vm2777 = vcmp.le.f32.partialorder %v1753, 0.01
        %vm2778 = vcmp.le.f32.partialorder %v1754, 0.01
        %vm2779 = vcmp.le.f32.partialorder %v1755, 0.01
        %vm2780 = vcmp.le.f32.partialorder %v1756, 0.01
        %vm2781 = vcmp.le.f32.partialorder %v1757, 0.01
        %vm2782 = vcmp.le.f32.partialorder %v1758, 0.01
        %vm2783 = vcmp.le.f32.partialorder %v1759, 0.01
        %vm2784 = vcmp.le.f32.partialorder %v1760, 0.01
        %vm2785 = vcmp.le.f32.partialorder %v1761, 0.01
        %vm2786 = vcmp.le.f32.partialorder %v1762, 0.01
        %vm2787 = vcmp.le.f32.partialorder %v1763, 0.01
        %vm2788 = vcmp.le.f32.partialorder %v1764, 0.01
        %vm2789 = vcmp.le.f32.partialorder %v1765, 0.01
        %vm2790 = vcmp.le.f32.partialorder %v1766, 0.01
        %vm2791 = vcmp.le.f32.partialorder %v1767, 0.01
        %vm2792 = vcmp.le.f32.partialorder %v1768, 0.01
        %vm2793 = vcmp.le.f32.partialorder %v1769, 0.01
        %vm2794 = vcmp.le.f32.partialorder %v1770, 0.01
        %vm2795 = vcmp.le.f32.partialorder %v1771, 0.01
        %vm2796 = vcmp.le.f32.partialorder %v1772, 0.01
        %vm2797 = vcmp.le.f32.partialorder %v1773, 0.01
        %vm2798 = vcmp.le.f32.partialorder %v1774, 0.01
        %vm2799 = vcmp.le.f32.partialorder %v1775, 0.01
        %vm2800 = vcmp.le.f32.partialorder %v1776, 0.01
        %vm2801 = vcmp.le.f32.partialorder %v1777, 0.01
        %vm2802 = vcmp.le.f32.partialorder %v1778, 0.01
        %vm2803 = vcmp.le.f32.partialorder %v1779, 0.01
        %vm2804 = vcmp.le.f32.partialorder %v1780, 0.01
        %vm2805 = vcmp.le.f32.partialorder %v1781, 0.01
        %vm2806 = vcmp.le.f32.partialorder %v1782, 0.01
        %vm2807 = vcmp.le.f32.partialorder %v1783, 0.01
        %vm2808 = vcmp.le.f32.partialorder %v1784, 0.01
        %vm2809 = vcmp.le.f32.partialorder %v1785, 0.01
        %vm2810 = vcmp.le.f32.partialorder %v1786, 0.01
        %vm2811 = vcmp.le.f32.partialorder %v1787, 0.01
        %vm2812 = vcmp.le.f32.partialorder %v1788, 0.01
        %vm2813 = vcmp.le.f32.partialorder %v1789, 0.01
        %vm2814 = vcmp.le.f32.partialorder %v1790, 0.01
        %vm2815 = vcmp.le.f32.partialorder %v1791, 0.01
        %vm2816 = vcmp.le.f32.partialorder %v1792, 0.01
        %vm2817 = vcmp.le.f32.partialorder %v1793, 0.01
        %vm2818 = vcmp.le.f32.partialorder %v1794, 0.01
        %vm2819 = vcmp.le.f32.partialorder %v1795, 0.01
        %vm2820 = vcmp.le.f32.partialorder %v1796, 0.01
        %vm2821 = vcmp.le.f32.partialorder %v1797, 0.01
        %vm2822 = vcmp.le.f32.partialorder %v1798, 0.01
        %vm2823 = vcmp.le.f32.partialorder %v1799, 0.01
        %vm2824 = vcmp.le.f32.partialorder %v1800, 0.01
        %vm2825 = vcmp.le.f32.partialorder %v1801, 0.01
        %vm2826 = vcmp.le.f32.partialorder %v1802, 0.01
        %vm2827 = vcmp.le.f32.partialorder %v1803, 0.01
        %vm2828 = vcmp.le.f32.partialorder %v1804, 0.01
        %vm2829 = vcmp.le.f32.partialorder %v1805, 0.01
        %vm2830 = vcmp.le.f32.partialorder %v1806, 0.01
        %vm2831 = vcmp.le.f32.partialorder %v1807, 0.01
        %vm2832 = vcmp.le.f32.partialorder %v1808, 0.01
        %vm2833 = vcmp.le.f32.partialorder %v1809, 0.01
        %vm2834 = vcmp.le.f32.partialorder %v1810, 0.01
        %vm2835 = vcmp.le.f32.partialorder %v1811, 0.01
        %vm2836 = vcmp.le.f32.partialorder %v1812, 0.01
        %vm2837 = vcmp.le.f32.partialorder %v1813, 0.01
        %vm2838 = vcmp.le.f32.partialorder %v1814, 0.01
        %vm2839 = vcmp.le.f32.partialorder %v1815, 0.01
        %vm2840 = vcmp.le.f32.partialorder %v1816, 0.01
        %vm2841 = vcmp.le.f32.partialorder %v1817, 0.01
        %vm2842 = vcmp.le.f32.partialorder %v1818, 0.01
        %vm2843 = vcmp.le.f32.partialorder %v1819, 0.01
        %vm2844 = vcmp.le.f32.partialorder %v1820, 0.01
        %vm2845 = vcmp.le.f32.partialorder %v1821, 0.01
        %vm2846 = vcmp.le.f32.partialorder %v1822, 0.01
        %vm2847 = vcmp.le.f32.partialorder %v1823, 0.01
        %vm2848 = vcmp.le.f32.partialorder %v1824, 0.01
        %vm2849 = vcmp.le.f32.partialorder %v1825, 0.01
        %vm2850 = vcmp.le.f32.partialorder %v1826, 0.01
        %vm2851 = vcmp.le.f32.partialorder %v1827, 0.01
        %vm2852 = vcmp.le.f32.partialorder %v1828, 0.01
        %vm2853 = vcmp.le.f32.partialorder %v1829, 0.01
        %vm2854 = vcmp.le.f32.partialorder %v1830, 0.01
        %vm2855 = vcmp.le.f32.partialorder %v1831, 0.01
        %vm2856 = vcmp.le.f32.partialorder %v1832, 0.01
        %vm2857 = vcmp.le.f32.partialorder %v1833, 0.01
        %vm2858 = vcmp.le.f32.partialorder %v1834, 0.01
        %vm2859 = vcmp.le.f32.partialorder %v1835, 0.01
        %vm2860 = vcmp.le.f32.partialorder %v1836, 0.01
        %vm2861 = vcmp.le.f32.partialorder %v1837, 0.01
        %vm2862 = vcmp.le.f32.partialorder %v1838, 0.01
        %vm2863 = vcmp.le.f32.partialorder %v1839, 0.01
        %vm2864 = vcmp.le.f32.partialorder %v1840, 0.01
        %vm2865 = vcmp.le.f32.partialorder %v1841, 0.01
        %vm2866 = vcmp.le.f32.partialorder %v1842, 0.01
        %vm2867 = vcmp.le.f32.partialorder %v1843, 0.01
        %vm2868 = vcmp.le.f32.partialorder %v1844, 0.01
        %vm2869 = vcmp.le.f32.partialorder %v1845, 0.01
        %vm2870 = vcmp.le.f32.partialorder %v1846, 0.01
        %vm2871 = vcmp.le.f32.partialorder %v1847, 0.01
        %vm2872 = vcmp.le.f32.partialorder %v1848, 0.01
        %vm2873 = vcmp.le.f32.partialorder %v1849, 0.01
        %vm2874 = vcmp.le.f32.partialorder %v1850, 0.01
        %vm2875 = vcmp.le.f32.partialorder %v1851, 0.01
        %vm2876 = vcmp.le.f32.partialorder %v1852, 0.01
        %vm2877 = vcmp.le.f32.partialorder %v1853, 0.01
        %vm2878 = vcmp.le.f32.partialorder %v1854, 0.01
        %vm2879 = vcmp.le.f32.partialorder %v1855, 0.01
        %vm2880 = vcmp.le.f32.partialorder %v1856, 0.01
        %vm2881 = vcmp.le.f32.partialorder %v1857, 0.01
        %vm2882 = vcmp.le.f32.partialorder %v1858, 0.01
        %vm2883 = vcmp.le.f32.partialorder %v1859, 0.01
        %vm2884 = vcmp.le.f32.partialorder %v1860, 0.01
        %vm2885 = vcmp.le.f32.partialorder %v1861, 0.01
        %vm2886 = vcmp.le.f32.partialorder %v1862, 0.01
        %vm2887 = vcmp.le.f32.partialorder %v1863, 0.01
        %vm2888 = vcmp.le.f32.partialorder %v1864, 0.01
        %vm2889 = vcmp.le.f32.partialorder %v1865, 0.01
        %vm2890 = vcmp.le.f32.partialorder %v1866, 0.01
        %vm2891 = vcmp.le.f32.partialorder %v1867, 0.01
        %vm2892 = vcmp.le.f32.partialorder %v1868, 0.01
        %vm2893 = vcmp.le.f32.partialorder %v1869, 0.01
        %vm2894 = vcmp.le.f32.partialorder %v1870, 0.01
        %vm2895 = vcmp.le.f32.partialorder %v1871, 0.01
        %vm2896 = vcmp.le.f32.partialorder %v1872, 0.01
        %vm2897 = vcmp.le.f32.partialorder %v1873, 0.01
        %vm2898 = vcmp.le.f32.partialorder %v1874, 0.01
        %vm2899 = vcmp.le.f32.partialorder %v1875, 0.01
        %vm2900 = vcmp.le.f32.partialorder %v1876, 0.01
        %vm2901 = vcmp.le.f32.partialorder %v1877, 0.01
        %vm2902 = vcmp.le.f32.partialorder %v1878, 0.01
        %vm2903 = vcmp.le.f32.partialorder %v1879, 0.01
        %vm2904 = vcmp.le.f32.partialorder %v1880, 0.01
        %vm2905 = vcmp.le.f32.partialorder %v1881, 0.01
        %vm2906 = vcmp.le.f32.partialorder %v1882, 0.01
        %vm2907 = vcmp.le.f32.partialorder %v1883, 0.01
        %vm2908 = vcmp.le.f32.partialorder %v1884, 0.01
        %vm2909 = vcmp.le.f32.partialorder %v1885, 0.01
        %vm2910 = vcmp.le.f32.partialorder %v1886, 0.01
        %vm2911 = vcmp.le.f32.partialorder %v1887, 0.01
        %vm2912 = vcmp.le.f32.partialorder %v1888, 0.01
        %vm2913 = vcmp.le.f32.partialorder %v1889, 0.01
        %vm2914 = vcmp.le.f32.partialorder %v1890, 0.01
        %vm2915 = vcmp.le.f32.partialorder %v1891, 0.01
        %vm2916 = vcmp.le.f32.partialorder %v1892, 0.01
        %vm2917 = vcmp.le.f32.partialorder %v1893, 0.01
        %vm2918 = vcmp.le.f32.partialorder %v1894, 0.01
        %vm2919 = vcmp.le.f32.partialorder %v1895, 0.01
        %vm2920 = vcmp.le.f32.partialorder %v1896, 0.01
        %vm2921 = vcmp.le.f32.partialorder %v1897, 0.01
        %vm2922 = vcmp.le.f32.partialorder %v1898, 0.01
        %vm2923 = vcmp.le.f32.partialorder %v1899, 0.01
        %vm2924 = vcmp.le.f32.partialorder %v1900, 0.01
        %vm2925 = vcmp.le.f32.partialorder %v1901, 0.01
        %vm2926 = vcmp.le.f32.partialorder %v1902, 0.01
        %vm2927 = vcmp.le.f32.partialorder %v1903, 0.01
        %vm2928 = vcmp.le.f32.partialorder %v1904, 0.01
        %vm2929 = vcmp.le.f32.partialorder %v1905, 0.01
        %vm2930 = vcmp.le.f32.partialorder %v1906, 0.01
        %vm2931 = vcmp.le.f32.partialorder %v1907, 0.01
        %vm2932 = vcmp.le.f32.partialorder %v1908, 0.01
        %vm2933 = vcmp.le.f32.partialorder %v1909, 0.01
        %vm2934 = vcmp.le.f32.partialorder %v1910, 0.01
        %vm2935 = vcmp.le.f32.partialorder %v1911, 0.01
        %vm2936 = vcmp.le.f32.partialorder %v1912, 0.01
        %vm2937 = vcmp.le.f32.partialorder %v1913, 0.01
        %vm2938 = vcmp.le.f32.partialorder %v1914, 0.01
        %vm2939 = vcmp.le.f32.partialorder %v1915, 0.01
        %vm2940 = vcmp.le.f32.partialorder %v1916, 0.01
        %vm2941 = vcmp.le.f32.partialorder %v1917, 0.01
        %vm2942 = vcmp.le.f32.partialorder %v1918, 0.01
        %vm2943 = vcmp.le.f32.partialorder %v1919, 0.01
        %vm2944 = vcmp.le.f32.partialorder %v1920, 0.01
        %vm2945 = vcmp.le.f32.partialorder %v1921, 0.01
        %vm2946 = vcmp.le.f32.partialorder %v1922, 0.01
        %vm2947 = vcmp.le.f32.partialorder %v1923, 0.01
        %vm2948 = vcmp.le.f32.partialorder %v1924, 0.01
        %vm2949 = vcmp.le.f32.partialorder %v1925, 0.01
        %vm2950 = vcmp.le.f32.partialorder %v1926, 0.01
        %vm2951 = vcmp.le.f32.partialorder %v1927, 0.01
        %vm2952 = vcmp.le.f32.partialorder %v1928, 0.01
        %vm2953 = vcmp.le.f32.partialorder %v1929, 0.01
        %vm2954 = vcmp.le.f32.partialorder %v1930, 0.01
        %vm2955 = vcmp.le.f32.partialorder %v1931, 0.01
        %vm2956 = vcmp.le.f32.partialorder %v1932, 0.01
        %vm2957 = vcmp.le.f32.partialorder %v1933, 0.01
        %vm2958 = vcmp.le.f32.partialorder %v1934, 0.01
        %vm2959 = vcmp.le.f32.partialorder %v1935, 0.01
        %vm2960 = vcmp.le.f32.partialorder %v1936, 0.01
        %vm2961 = vcmp.le.f32.partialorder %v1937, 0.01
        %vm2962 = vcmp.le.f32.partialorder %v1938, 0.01
        %vm2963 = vcmp.le.f32.partialorder %v1939, 0.01
        %vm2964 = vcmp.le.f32.partialorder %v1940, 0.01
        %vm2965 = vcmp.le.f32.partialorder %v1941, 0.01
        %vm2966 = vcmp.le.f32.partialorder %v1942, 0.01
        %vm2967 = vcmp.le.f32.partialorder %v1943, 0.01
        %vm2968 = vcmp.le.f32.partialorder %v1944, 0.01
        %vm2969 = vcmp.le.f32.partialorder %v1945, 0.01
        %vm2970 = vcmp.le.f32.partialorder %v1946, 0.01
        %vm2971 = vcmp.le.f32.partialorder %v1947, 0.01
        %vm2972 = vcmp.le.f32.partialorder %v1948, 0.01
        %vm2973 = vcmp.le.f32.partialorder %v1949, 0.01
        %vm2974 = vcmp.le.f32.partialorder %v1950, 0.01
        %vm2975 = vcmp.le.f32.partialorder %v1951, 0.01
        %vm2976 = vcmp.le.f32.partialorder %v1952, 0.01
        %vm2977 = vcmp.le.f32.partialorder %v1953, 0.01
        %vm2978 = vcmp.le.f32.partialorder %v1954, 0.01
        %vm2979 = vcmp.le.f32.partialorder %v1955, 0.01
        %vm2980 = vcmp.le.f32.partialorder %v1956, 0.01
        %vm2981 = vcmp.le.f32.partialorder %v1957, 0.01
        %vm2982 = vcmp.le.f32.partialorder %v1958, 0.01
        %vm2983 = vcmp.le.f32.partialorder %v1959, 0.01
        %vm2984 = vcmp.le.f32.partialorder %v1960, 0.01
        %vm2985 = vcmp.le.f32.partialorder %v1961, 0.01
        %vm2986 = vcmp.le.f32.partialorder %v1962, 0.01
        %vm2987 = vcmp.le.f32.partialorder %v1963, 0.01
        %vm2988 = vcmp.le.f32.partialorder %v1964, 0.01
        %vm2989 = vcmp.le.f32.partialorder %v1965, 0.01
        %vm2990 = vcmp.le.f32.partialorder %v1966, 0.01
        %vm2991 = vcmp.le.f32.partialorder %v1967, 0.01
        %vm2992 = vcmp.le.f32.partialorder %v1968, 0.01
        %vm2993 = vcmp.le.f32.partialorder %v1969, 0.01
        %vm2994 = vcmp.le.f32.partialorder %v1970, 0.01
        %vm2995 = vcmp.le.f32.partialorder %v1971, 0.01
        %vm2996 = vcmp.le.f32.partialorder %v1972, 0.01
        %vm2997 = vcmp.le.f32.partialorder %v1973, 0.01
        %vm2998 = vcmp.le.f32.partialorder %v1974, 0.01
        %vm2999 = vcmp.le.f32.partialorder %v1975, 0.01
        %vm3000 = vcmp.le.f32.partialorder %v1976, 0.01
        %vm3001 = vcmp.le.f32.partialorder %v1977, 0.01
        %vm3002 = vcmp.le.f32.partialorder %v1978, 0.01
        %vm3003 = vcmp.le.f32.partialorder %v1979, 0.01
        %vm3004 = vcmp.le.f32.partialorder %v1980, 0.01
        %vm3005 = vcmp.le.f32.partialorder %v1981, 0.01
        %vm3006 = vcmp.le.f32.partialorder %v1982, 0.01
        %vm3007 = vcmp.le.f32.partialorder %v1983, 0.01
        %vm3008 = vcmp.le.f32.partialorder %v1984, 0.01
        %vm3009 = vcmp.le.f32.partialorder %v1985, 0.01
        %vm3010 = vcmp.le.f32.partialorder %v1986, 0.01
        %vm3011 = vcmp.le.f32.partialorder %v1987, 0.01
        %vm3012 = vcmp.le.f32.partialorder %v1988, 0.01
        %vm3013 = vcmp.le.f32.partialorder %v1989, 0.01
        %vm3014 = vcmp.le.f32.partialorder %v1990, 0.01
        %vm3015 = vcmp.le.f32.partialorder %v1991, 0.01
        %vm3016 = vcmp.le.f32.partialorder %v1992, 0.01
        %vm3017 = vcmp.le.f32.partialorder %v1993, 0.01
        %vm3018 = vcmp.le.f32.partialorder %v1994, 0.01
        %vm3019 = vcmp.le.f32.partialorder %v1995, 0.01
        %vm3020 = vcmp.le.f32.partialorder %v1996, 0.01
        %vm3021 = vcmp.le.f32.partialorder %v1997, 0.01
        %vm3022 = vcmp.le.f32.partialorder %v1998, 0.01
        %vm3023 = vcmp.le.f32.partialorder %v1999, 0.01
        %vm3024 = vcmp.le.f32.partialorder %v2000, 0.01
        %vm3025 = vcmp.le.f32.partialorder %v2001, 0.01
        %vm3026 = vcmp.le.f32.partialorder %v2002, 0.01
        %vm3027 = vcmp.le.f32.partialorder %v2003, 0.01
        %vm3028 = vcmp.le.f32.partialorder %v2004, 0.01
        %vm3029 = vcmp.le.f32.partialorder %v2005, 0.01
        %vm3030 = vcmp.le.f32.partialorder %v2006, 0.01
        %vm3031 = vcmp.le.f32.partialorder %v2007, 0.01
        %vm3032 = vcmp.le.f32.partialorder %v2008, 0.01
        %vm3033 = vcmp.le.f32.partialorder %v2009, 0.01
        %vm3034 = vcmp.le.f32.partialorder %v2010, 0.01
        %vm3035 = vcmp.le.f32.partialorder %v2011, 0.01
        %vm3036 = vcmp.le.f32.partialorder %v2012, 0.01
        %vm3037 = vcmp.le.f32.partialorder %v2013, 0.01
        %vm3038 = vcmp.le.f32.partialorder %v2014, 0.01
        %vm3039 = vcmp.le.f32.partialorder %v2015, 0.01
        %vm3040 = vcmp.le.f32.partialorder %v2016, 0.01
        %vm3041 = vcmp.le.f32.partialorder %v2017, 0.01
        %vm3042 = vcmp.le.f32.partialorder %v2018, 0.01
        %vm3043 = vcmp.le.f32.partialorder %v2019, 0.01
        %vm3044 = vcmp.le.f32.partialorder %v2020, 0.01
        %vm3045 = vcmp.le.f32.partialorder %v2021, 0.01
        %vm3046 = vcmp.le.f32.partialorder %v2022, 0.01
        %vm3047 = vcmp.le.f32.partialorder %v2023, 0.01
        %vm3048 = vcmp.le.f32.partialorder %v2024, 0.01
        %vm3049 = vcmp.le.f32.partialorder %v2025, 0.01
        %vm3050 = vcmp.le.f32.partialorder %v2026, 0.01
        %vm3051 = vcmp.le.f32.partialorder %v2027, 0.01
        %vm3052 = vcmp.le.f32.partialorder %v2028, 0.01
        %vm3053 = vcmp.le.f32.partialorder %v2029, 0.01
        %vm3054 = vcmp.le.f32.partialorder %v2030, 0.01
        %vm3055 = vcmp.le.f32.partialorder %v2031, 0.01
        %vm3056 = vcmp.le.f32.partialorder %v2032, 0.01
        %vm3057 = vcmp.le.f32.partialorder %v2033, 0.01
        %vm3058 = vcmp.le.f32.partialorder %v2034, 0.01
        %vm3059 = vcmp.le.f32.partialorder %v2035, 0.01
        %vm3060 = vcmp.le.f32.partialorder %v2036, 0.01
        %vm3061 = vcmp.le.f32.partialorder %v2037, 0.01
        %vm3062 = vcmp.le.f32.partialorder %v2038, 0.01
        %vm3063 = vcmp.le.f32.partialorder %v2039, 0.01
        %vm3064 = vcmp.le.f32.partialorder %v2040, 0.01
        %vm3065 = vcmp.le.f32.partialorder %v2041, 0.01
        %vm3066 = vcmp.le.f32.partialorder %v2042, 0.01
        %vm3067 = vcmp.le.f32.partialorder %v2043, 0.01
        %vm3068 = vcmp.le.f32.partialorder %v2044, 0.01
        %vm3069 = vcmp.le.f32.partialorder %v2045, 0.01
        %vm3070 = vcmp.le.f32.partialorder %v2046, 0.01
        %vm3071 = vcmp.le.f32.partialorder %v2047, 0.01
        %vm3072 = vcmp.le.f32.partialorder %v2048, 0.01
        %vm3073 = vcmp.le.f32.partialorder %v2049, 0.01
        %vm3074 = vcmp.le.f32.partialorder %v2050, 0.01
        %vm3075 = vcmp.le.f32.partialorder %v2051, 0.01
        %vm3076 = vcmp.le.f32.partialorder %v2052, 0.01
        %vm3077 = vcmp.le.f32.partialorder %v2053, 0.01
        %vm3078 = vcmp.le.f32.partialorder %v2054, 0.01
        %vm3079 = vcmp.le.f32.partialorder %v2055, 0.01
        %vm3080 = vcmp.le.f32.partialorder %v2056, 0.01
        %vm3081 = vcmp.le.f32.partialorder %v2057, 0.01
        %vm3082 = vcmp.le.f32.partialorder %v2058, 0.01
        %vm3083 = vcmp.le.f32.partialorder %v2059, 0.01
        %vm3084 = vcmp.le.f32.partialorder %v2060, 0.01
        %vm3085 = vcmp.le.f32.partialorder %v2061, 0.01
        %vm3086 = vcmp.le.f32.partialorder %v2062, 0.01
        %vm3087 = vcmp.le.f32.partialorder %v2063, 0.01
        %vm3088 = vcmp.le.f32.partialorder %v2064, 0.01
        %vm3089 = vcmp.le.f32.partialorder %v2065, 0.01
        %vm3090 = vcmp.le.f32.partialorder %v2066, 0.01
        %vm3091 = vcmp.le.f32.partialorder %v2067, 0.01
        %vm3092 = vcmp.le.f32.partialorder %v2068, 0.01
        %vm3093 = vcmp.le.f32.partialorder %v2069, 0.01
        %vm3094 = vcmp.le.f32.partialorder %v2070, 0.01
        %vm3095 = vcmp.le.f32.partialorder %v2071, 0.01
        %vm3096 = vcmp.le.f32.partialorder %v2072, 0.01
        %vm3097 = vcmp.le.f32.partialorder %v2073, 0.01
        %vm3098 = vcmp.le.f32.partialorder %v2074, 0.01
        %vm3099 = vcmp.le.f32.partialorder %v2075, 0.01
        %vm3100 = vcmp.le.f32.partialorder %v2076, 0.01
        %vm3101 = vcmp.le.f32.partialorder %v2077, 0.01
        %vm3102 = vcmp.le.f32.partialorder %v2078, 0.01
        %vm3103 = vcmp.le.f32.partialorder %v2079, 0.01
        %vm3104 = vcmp.le.f32.partialorder %v2080, 0.01
        %vm3105 = vcmp.le.f32.partialorder %v2081, 0.01
        %vm3106 = vcmp.le.f32.partialorder %v2082, 0.01
        %vm3107 = vcmp.le.f32.partialorder %v2083, 0.01
        %vm3108 = vcmp.le.f32.partialorder %v2084, 0.01
        %vm3109 = vcmp.le.f32.partialorder %v2085, 0.01
        %vm3110 = vcmp.le.f32.partialorder %v2086, 0.01
        %vm3111 = vcmp.le.f32.partialorder %v2087, 0.01
        %vm3112 = vcmp.le.f32.partialorder %v2088, 0.01
        %vm3113 = vcmp.le.f32.partialorder %v2089, 0.01
        %vm3114 = vcmp.le.f32.partialorder %v2090, 0.01
        %vm3115 = vcmp.le.f32.partialorder %v2091, 0.01
        %vm3116 = vcmp.le.f32.partialorder %v2092, 0.01
        %vm3117 = vcmp.le.f32.partialorder %v2093, 0.01
        %vm3118 = vcmp.le.f32.partialorder %v2094, 0.01
        %vm3119 = vcmp.le.f32.partialorder %v2095, 0.01
        %vm3120 = vcmp.le.f32.partialorder %v2096, 0.01
        %vm3121 = vcmp.le.f32.partialorder %v2097, 0.01
        %vm3122 = vcmp.le.f32.partialorder %v2098, 0.01
        %vm3123 = vcmp.le.f32.partialorder %v2099, 0.01
        %vm3124 = vcmp.le.f32.partialorder %v2100, 0.01
        %vm3125 = vcmp.le.f32.partialorder %v2101, 0.01
        %vm3126 = vcmp.le.f32.partialorder %v2102, 0.01
        %vm3127 = vcmp.le.f32.partialorder %v2103, 0.01
        %vm3128 = vcmp.le.f32.partialorder %v2104, 0.01
        %vm3129 = vcmp.le.f32.partialorder %v2105, 0.01
        %vm3130 = vcmp.le.f32.partialorder %v2106, 0.01
        %vm3131 = vcmp.le.f32.partialorder %v2107, 0.01
        %vm3132 = vcmp.le.f32.partialorder %v2108, 0.01
        %vm3133 = vcmp.le.f32.partialorder %v2109, 0.01
        %vm3134 = vcmp.le.f32.partialorder %v2110, 0.01
        %vm3135 = vcmp.le.f32.partialorder %v2111, 0.01
        %vm3136 = vcmp.le.f32.partialorder %v2112, 0.01
        %vm3137 = vcmp.le.f32.partialorder %v2113, 0.01
        %vm3138 = vcmp.le.f32.partialorder %v2114, 0.01
        %vm3139 = vcmp.le.f32.partialorder %v2115, 0.01
        %vm3140 = vcmp.le.f32.partialorder %v2116, 0.01
        %vm3141 = vcmp.le.f32.partialorder %v2117, 0.01
        %vm3142 = vcmp.le.f32.partialorder %v2118, 0.01
        %vm3143 = vcmp.le.f32.partialorder %v2119, 0.01
        %vm3144 = vcmp.le.f32.partialorder %v2120, 0.01
        %vm3145 = vcmp.le.f32.partialorder %v2121, 0.01
        %vm3146 = vcmp.le.f32.partialorder %v2122, 0.01
        %vm3147 = vcmp.le.f32.partialorder %v2123, 0.01
        %vm3148 = vcmp.le.f32.partialorder %v2124, 0.01
        %vm3149 = vcmp.le.f32.partialorder %v2125, 0.01
        %vm3150 = vcmp.le.f32.partialorder %v2126, 0.01
        %vm3151 = vcmp.le.f32.partialorder %v2127, 0.01
        %vm3152 = vcmp.le.f32.partialorder %v2128, 0.01
        %vm3153 = vcmp.le.f32.partialorder %v2129, 0.01
        %vm3154 = vcmp.le.f32.partialorder %v2130, 0.01
        %vm3155 = vcmp.le.f32.partialorder %v2131, 0.01
        %vm3156 = vcmp.le.f32.partialorder %v2132, 0.01
        %vm3157 = vcmp.le.f32.partialorder %v2133, 0.01
        %vm3158 = vcmp.le.f32.partialorder %v2134, 0.01
        %vm3159 = vcmp.le.f32.partialorder %v2135, 0.01
        %vm3160 = vcmp.le.f32.partialorder %v2136, 0.01
        %vm3161 = vcmp.le.f32.partialorder %v2137, 0.01
        %vm3162 = vcmp.le.f32.partialorder %v2138, 0.01
        %vm3163 = vcmp.le.f32.partialorder %v2139, 0.01
        %vm3164 = vcmp.le.f32.partialorder %v2140, 0.01
        %vm3165 = vcmp.le.f32.partialorder %v2141, 0.01
        %vm3166 = vcmp.le.f32.partialorder %v2142, 0.01
        %vm3167 = vcmp.le.f32.partialorder %v2143, 0.01
        %vm3168 = vcmp.le.f32.partialorder %v2144, 0.01
        %vm3169 = vcmp.le.f32.partialorder %v2145, 0.01
        %vm3170 = vcmp.le.f32.partialorder %v2146, 0.01
        %vm3171 = vcmp.le.f32.partialorder %v2147, 0.01
        %vm3172 = vcmp.le.f32.partialorder %v2148, 0.01
        %vm3173 = vcmp.le.f32.partialorder %v2149, 0.01
        %vm3174 = vcmp.le.f32.partialorder %v2150, 0.01
        %vm3175 = vcmp.le.f32.partialorder %v2151, 0.01
        %vm3176 = vcmp.le.f32.partialorder %v2152, 0.01
        %vm3177 = vcmp.le.f32.partialorder %v2153, 0.01
        %vm3178 = vcmp.le.f32.partialorder %v2154, 0.01
        %vm3179 = vcmp.le.f32.partialorder %v2155, 0.01
        %vm3180 = vcmp.le.f32.partialorder %v2156, 0.01
        %vm3181 = vcmp.le.f32.partialorder %v2157, 0.01
        %vm3182 = vcmp.le.f32.partialorder %v2158, 0.01
        %vm3183 = vcmp.le.f32.partialorder %v2159, 0.01
        %vm3184 = vcmp.le.f32.partialorder %v2160, 0.01
        %vm3185 = vcmp.le.f32.partialorder %v2161, 0.01
        %vm3186 = vcmp.le.f32.partialorder %v2162, 0.01
        %vm3187 = vcmp.le.f32.partialorder %v2163, 0.01
        %vm3188 = vcmp.le.f32.partialorder %v2164, 0.01
        %vm3189 = vcmp.le.f32.partialorder %v2165, 0.01
        %vm3190 = vcmp.le.f32.partialorder %v2166, 0.01
        %vm3191 = vcmp.le.f32.partialorder %v2167, 0.01
        %vm3192 = vcmp.le.f32.partialorder %v2168, 0.01
        %vm3193 = vcmp.le.f32.partialorder %v2169, 0.01
        %vm3194 = vcmp.le.f32.partialorder %v2170, 0.01
        %vm3195 = vcmp.le.f32.partialorder %v2171, 0.01
        %vm3196 = vcmp.le.f32.partialorder %v2172, 0.01
        %vm3197 = vcmp.le.f32.partialorder %v2173, 0.01
        %vm3198 = vcmp.le.f32.partialorder %v2174, 0.01
        %vm3199 = vcmp.le.f32.partialorder %v2175, 0.01
        %vm3200 = vcmp.le.f32.partialorder %v2176, 0.01
        %vm3201 = vcmp.le.f32.partialorder %v2177, 0.01
        %vm3202 = vcmp.le.f32.partialorder %v2178, 0.01
        %vm3203 = vcmp.le.f32.partialorder %v2179, 0.01
        %vm3204 = vcmp.le.f32.partialorder %v2180, 0.01
        %vm3205 = vcmp.le.f32.partialorder %v2181, 0.01
        %vm3206 = vcmp.le.f32.partialorder %v2182, 0.01
        %vm3207 = vcmp.le.f32.partialorder %v2183, 0.01
        %vm3208 = vcmp.le.f32.partialorder %v2184, 0.01
        %vm3209 = vcmp.le.f32.partialorder %v2185, 0.01
        %v3210 = vsel %vm2186, %v138, 0.0
        %v3211 = vsel %vm2187, %v139, 0.0
        %v3212 = vsel %vm2188, %v140, 0.0
        %v3213 = vsel %vm2189, %v141, 0.0
        %v3214 = vsel %vm2190, %v142, 0.0
        %v3215 = vsel %vm2191, %v143, 0.0
        %v3216 = vsel %vm2192, %v144, 0.0
        %v3217 = vsel %vm2193, %v145, 0.0
        %v3218 = vsel %vm2194, %v146, 0.0
        %v3219 = vsel %vm2195, %v147, 0.0
        %v3220 = vsel %vm2196, %v148, 0.0
        %v3221 = vsel %vm2197, %v149, 0.0
        %v3222 = vsel %vm2198, %v150, 0.0
        %v3223 = vsel %vm2199, %v151, 0.0
        %v3224 = vsel %vm2200, %v152, 0.0
        %v3225 = vsel %vm2201, %v153, 0.0
        %v3226 = vsel %vm2202, %v154, 0.0
        %v3227 = vsel %vm2203, %v155, 0.0
        %v3228 = vsel %vm2204, %v156, 0.0
        %v3229 = vsel %vm2205, %v157, 0.0
        %v3230 = vsel %vm2206, %v158, 0.0
        %v3231 = vsel %vm2207, %v159, 0.0
        %v3232 = vsel %vm2208, %v160, 0.0
        %v3233 = vsel %vm2209, %v161, 0.0
        %v3234 = vsel %vm2210, %v162, 0.0
        %v3235 = vsel %vm2211, %v163, 0.0
        %v3236 = vsel %vm2212, %v164, 0.0
        %v3237 = vsel %vm2213, %v165, 0.0
        %v3238 = vsel %vm2214, %v166, 0.0
        %v3239 = vsel %vm2215, %v167, 0.0
        %v3240 = vsel %vm2216, %v168, 0.0
        %v3241 = vsel %vm2217, %v169, 0.0
        %v3242 = vsel %vm2218, %v170, 0.0
        %v3243 = vsel %vm2219, %v171, 0.0
        %v3244 = vsel %vm2220, %v172, 0.0
        %v3245 = vsel %vm2221, %v173, 0.0
        %v3246 = vsel %vm2222, %v174, 0.0
        %v3247 = vsel %vm2223, %v175, 0.0
        %v3248 = vsel %vm2224, %v176, 0.0
        %v3249 = vsel %vm2225, %v177, 0.0
        %v3250 = vsel %vm2226, %v178, 0.0
        %v3251 = vsel %vm2227, %v179, 0.0
        %v3252 = vsel %vm2228, %v180, 0.0
        %v3253 = vsel %vm2229, %v181, 0.0
        %v3254 = vsel %vm2230, %v182, 0.0
        %v3255 = vsel %vm2231, %v183, 0.0
        %v3256 = vsel %vm2232, %v184, 0.0
        %v3257 = vsel %vm2233, %v185, 0.0
        %v3258 = vsel %vm2234, %v186, 0.0
        %v3259 = vsel %vm2235, %v187, 0.0
        %v3260 = vsel %vm2236, %v188, 0.0
        %v3261 = vsel %vm2237, %v189, 0.0
        %v3262 = vsel %vm2238, %v190, 0.0
        %v3263 = vsel %vm2239, %v191, 0.0
        %v3264 = vsel %vm2240, %v192, 0.0
        %v3265 = vsel %vm2241, %v193, 0.0
        %v3266 = vsel %vm2242, %v194, 0.0
        %v3267 = vsel %vm2243, %v195, 0.0
        %v3268 = vsel %vm2244, %v196, 0.0
        %v3269 = vsel %vm2245, %v197, 0.0
        %v3270 = vsel %vm2246, %v198, 0.0
        %v3271 = vsel %vm2247, %v199, 0.0
        %v3272 = vsel %vm2248, %v200, 0.0
        %v3273 = vsel %vm2249, %v201, 0.0
        %v3274 = vsel %vm2250, %v202, 0.0
        %v3275 = vsel %vm2251, %v203, 0.0
        %v3276 = vsel %vm2252, %v204, 0.0
        %v3277 = vsel %vm2253, %v205, 0.0
        %v3278 = vsel %vm2254, %v206, 0.0
        %v3279 = vsel %vm2255, %v207, 0.0
        %v3280 = vsel %vm2256, %v208, 0.0
        %v3281 = vsel %vm2257, %v209, 0.0
        %v3282 = vsel %vm2258, %v210, 0.0
        %v3283 = vsel %vm2259, %v211, 0.0
        %v3284 = vsel %vm2260, %v212, 0.0
        %v3285 = vsel %vm2261, %v213, 0.0
        %v3286 = vsel %vm2262, %v214, 0.0
        %v3287 = vsel %vm2263, %v215, 0.0
        %v3288 = vsel %vm2264, %v216, 0.0
        %v3289 = vsel %vm2265, %v217, 0.0
        %v3290 = vsel %vm2266, %v218, 0.0
        %v3291 = vsel %vm2267, %v219, 0.0
        %v3292 = vsel %vm2268, %v220, 0.0
        %v3293 = vsel %vm2269, %v221, 0.0
        %v3294 = vsel %vm2270, %v222, 0.0
        %v3295 = vsel %vm2271, %v223, 0.0
        %v3296 = vsel %vm2272, %v224, 0.0
        %v3297 = vsel %vm2273, %v225, 0.0
        %v3298 = vsel %vm2274, %v226, 0.0
        %v3299 = vsel %vm2275, %v227, 0.0
        %v3300 = vsel %vm2276, %v228, 0.0
        %v3301 = vsel %vm2277, %v229, 0.0
        %v3302 = vsel %vm2278, %v230, 0.0
        %v3303 = vsel %vm2279, %v231, 0.0
        %v3304 = vsel %vm2280, %v232, 0.0
        %v3305 = vsel %vm2281, %v233, 0.0
        %v3306 = vsel %vm2282, %v234, 0.0
        %v3307 = vsel %vm2283, %v235, 0.0
        %v3308 = vsel %vm2284, %v236, 0.0
        %v3309 = vsel %vm2285, %v237, 0.0
        %v3310 = vsel %vm2286, %v238, 0.0
        %v3311 = vsel %vm2287, %v239, 0.0
        %v3312 = vsel %vm2288, %v240, 0.0
        %v3313 = vsel %vm2289, %v241, 0.0
        %v3314 = vsel %vm2290, %v242, 0.0
        %v3315 = vsel %vm2291, %v243, 0.0
        %v3316 = vsel %vm2292, %v244, 0.0
        %v3317 = vsel %vm2293, %v245, 0.0
        %v3318 = vsel %vm2294, %v246, 0.0
        %v3319 = vsel %vm2295, %v247, 0.0
        %v3320 = vsel %vm2296, %v248, 0.0
        %v3321 = vsel %vm2297, %v249, 0.0
        %v3322 = vsel %vm2298, %v250, 0.0
        %v3323 = vsel %vm2299, %v251, 0.0
        %v3324 = vsel %vm2300, %v252, 0.0
        %v3325 = vsel %vm2301, %v253, 0.0
        %v3326 = vsel %vm2302, %v254, 0.0
        %v3327 = vsel %vm2303, %v255, 0.0
        %v3328 = vsel %vm2304, %v256, 0.0
        %v3329 = vsel %vm2305, %v257, 0.0
        %v3330 = vsel %vm2306, %v258, 0.0
        %v3331 = vsel %vm2307, %v259, 0.0
        %v3332 = vsel %vm2308, %v260, 0.0
        %v3333 = vsel %vm2309, %v261, 0.0
        %v3334 = vsel %vm2310, %v262, 0.0
        %v3335 = vsel %vm2311, %v263, 0.0
        %v3336 = vsel %vm2312, %v264, 0.0
        %v3337 = vsel %vm2313, %v265, 0.0
        %v3338 = vsel %vm2314, %v266, 0.0
        %v3339 = vsel %vm2315, %v267, 0.0
        %v3340 = vsel %vm2316, %v268, 0.0
        %v3341 = vsel %vm2317, %v269, 0.0
        %v3342 = vsel %vm2318, %v270, 0.0
        %v3343 = vsel %vm2319, %v271, 0.0
        %v3344 = vsel %vm2320, %v272, 0.0
        %v3345 = vsel %vm2321, %v273, 0.0
        %v3346 = vsel %vm2322, %v274, 0.0
        %v3347 = vsel %vm2323, %v275, 0.0
        %v3348 = vsel %vm2324, %v276, 0.0
        %v3349 = vsel %vm2325, %v277, 0.0
        %v3350 = vsel %vm2326, %v278, 0.0
        %v3351 = vsel %vm2327, %v279, 0.0
        %v3352 = vsel %vm2328, %v280, 0.0
        %v3353 = vsel %vm2329, %v281, 0.0
        %v3354 = vsel %vm2330, %v282, 0.0
        %v3355 = vsel %vm2331, %v283, 0.0
        %v3356 = vsel %vm2332, %v284, 0.0
        %v3357 = vsel %vm2333, %v285, 0.0
        %v3358 = vsel %vm2334, %v286, 0.0
        %v3359 = vsel %vm2335, %v287, 0.0
        %v3360 = vsel %vm2336, %v288, 0.0
        %v3361 = vsel %vm2337, %v289, 0.0
        %v3362 = vsel %vm2338, %v290, 0.0
        %v3363 = vsel %vm2339, %v291, 0.0
        %v3364 = vsel %vm2340, %v292, 0.0
        %v3365 = vsel %vm2341, %v293, 0.0
        %v3366 = vsel %vm2342, %v294, 0.0
        %v3367 = vsel %vm2343, %v295, 0.0
        %v3368 = vsel %vm2344, %v296, 0.0
        %v3369 = vsel %vm2345, %v297, 0.0
        %v3370 = vsel %vm2346, %v298, 0.0
        %v3371 = vsel %vm2347, %v299, 0.0
        %v3372 = vsel %vm2348, %v300, 0.0
        %v3373 = vsel %vm2349, %v301, 0.0
        %v3374 = vsel %vm2350, %v302, 0.0
        %v3375 = vsel %vm2351, %v303, 0.0
        %v3376 = vsel %vm2352, %v304, 0.0
        %v3377 = vsel %vm2353, %v305, 0.0
        %v3378 = vsel %vm2354, %v306, 0.0
        %v3379 = vsel %vm2355, %v307, 0.0
        %v3380 = vsel %vm2356, %v308, 0.0
        %v3381 = vsel %vm2357, %v309, 0.0
        %v3382 = vsel %vm2358, %v310, 0.0
        %v3383 = vsel %vm2359, %v311, 0.0
        %v3384 = vsel %vm2360, %v312, 0.0
        %v3385 = vsel %vm2361, %v313, 0.0
        %v3386 = vsel %vm2362, %v314, 0.0
        %v3387 = vsel %vm2363, %v315, 0.0
        %v3388 = vsel %vm2364, %v316, 0.0
        %v3389 = vsel %vm2365, %v317, 0.0
        %v3390 = vsel %vm2366, %v318, 0.0
        %v3391 = vsel %vm2367, %v319, 0.0
        %v3392 = vsel %vm2368, %v320, 0.0
        %v3393 = vsel %vm2369, %v321, 0.0
        %v3394 = vsel %vm2370, %v322, 0.0
        %v3395 = vsel %vm2371, %v323, 0.0
        %v3396 = vsel %vm2372, %v324, 0.0
        %v3397 = vsel %vm2373, %v325, 0.0
        %v3398 = vsel %vm2374, %v326, 0.0
        %v3399 = vsel %vm2375, %v327, 0.0
        %v3400 = vsel %vm2376, %v328, 0.0
        %v3401 = vsel %vm2377, %v329, 0.0
        %v3402 = vsel %vm2378, %v330, 0.0
        %v3403 = vsel %vm2379, %v331, 0.0
        %v3404 = vsel %vm2380, %v332, 0.0
        %v3405 = vsel %vm2381, %v333, 0.0
        %v3406 = vsel %vm2382, %v334, 0.0
        %v3407 = vsel %vm2383, %v335, 0.0
        %v3408 = vsel %vm2384, %v336, 0.0
        %v3409 = vsel %vm2385, %v337, 0.0
        %v3410 = vsel %vm2386, %v338, 0.0
        %v3411 = vsel %vm2387, %v339, 0.0
        %v3412 = vsel %vm2388, %v340, 0.0
        %v3413 = vsel %vm2389, %v341, 0.0
        %v3414 = vsel %vm2390, %v342, 0.0
        %v3415 = vsel %vm2391, %v343, 0.0
        %v3416 = vsel %vm2392, %v344, 0.0
        %v3417 = vsel %vm2393, %v345, 0.0
        %v3418 = vsel %vm2394, %v346, 0.0
        %v3419 = vsel %vm2395, %v347, 0.0
        %v3420 = vsel %vm2396, %v348, 0.0
        %v3421 = vsel %vm2397, %v349, 0.0
        %v3422 = vsel %vm2398, %v350, 0.0
        %v3423 = vsel %vm2399, %v351, 0.0
        %v3424 = vsel %vm2400, %v352, 0.0
        %v3425 = vsel %vm2401, %v353, 0.0
        %v3426 = vsel %vm2402, %v354, 0.0
        %v3427 = vsel %vm2403, %v355, 0.0
        %v3428 = vsel %vm2404, %v356, 0.0
        %v3429 = vsel %vm2405, %v357, 0.0
        %v3430 = vsel %vm2406, %v358, 0.0
        %v3431 = vsel %vm2407, %v359, 0.0
        %v3432 = vsel %vm2408, %v360, 0.0
        %v3433 = vsel %vm2409, %v361, 0.0
        %v3434 = vsel %vm2410, %v362, 0.0
        %v3435 = vsel %vm2411, %v363, 0.0
        %v3436 = vsel %vm2412, %v364, 0.0
        %v3437 = vsel %vm2413, %v365, 0.0
        %v3438 = vsel %vm2414, %v366, 0.0
        %v3439 = vsel %vm2415, %v367, 0.0
        %v3440 = vsel %vm2416, %v368, 0.0
        %v3441 = vsel %vm2417, %v369, 0.0
        %v3442 = vsel %vm2418, %v370, 0.0
        %v3443 = vsel %vm2419, %v371, 0.0
        %v3444 = vsel %vm2420, %v372, 0.0
        %v3445 = vsel %vm2421, %v373, 0.0
        %v3446 = vsel %vm2422, %v374, 0.0
        %v3447 = vsel %vm2423, %v375, 0.0
        %v3448 = vsel %vm2424, %v376, 0.0
        %v3449 = vsel %vm2425, %v377, 0.0
        %v3450 = vsel %vm2426, %v378, 0.0
        %v3451 = vsel %vm2427, %v379, 0.0
        %v3452 = vsel %vm2428, %v380, 0.0
        %v3453 = vsel %vm2429, %v381, 0.0
        %v3454 = vsel %vm2430, %v382, 0.0
        %v3455 = vsel %vm2431, %v383, 0.0
        %v3456 = vsel %vm2432, %v384, 0.0
        %v3457 = vsel %vm2433, %v385, 0.0
        %v3458 = vsel %vm2434, %v386, 0.0
        %v3459 = vsel %vm2435, %v387, 0.0
        %v3460 = vsel %vm2436, %v388, 0.0
        %v3461 = vsel %vm2437, %v389, 0.0
        %v3462 = vsel %vm2438, %v390, 0.0
        %v3463 = vsel %vm2439, %v391, 0.0
        %v3464 = vsel %vm2440, %v392, 0.0
        %v3465 = vsel %vm2441, %v393, 0.0
        %v3466 = vsel %vm2442, %v394, 0.0
        %v3467 = vsel %vm2443, %v395, 0.0
        %v3468 = vsel %vm2444, %v396, 0.0
        %v3469 = vsel %vm2445, %v397, 0.0
        %v3470 = vsel %vm2446, %v398, 0.0
        %v3471 = vsel %vm2447, %v399, 0.0
        %v3472 = vsel %vm2448, %v400, 0.0
        %v3473 = vsel %vm2449, %v401, 0.0
        %v3474 = vsel %vm2450, %v402, 0.0
        %v3475 = vsel %vm2451, %v403, 0.0
        %v3476 = vsel %vm2452, %v404, 0.0
        %v3477 = vsel %vm2453, %v405, 0.0
        %v3478 = vsel %vm2454, %v406, 0.0
        %v3479 = vsel %vm2455, %v407, 0.0
        %v3480 = vsel %vm2456, %v408, 0.0
        %v3481 = vsel %vm2457, %v409, 0.0
        %v3482 = vsel %vm2458, %v410, 0.0
        %v3483 = vsel %vm2459, %v411, 0.0
        %v3484 = vsel %vm2460, %v412, 0.0
        %v3485 = vsel %vm2461, %v413, 0.0
        %v3486 = vsel %vm2462, %v414, 0.0
        %v3487 = vsel %vm2463, %v415, 0.0
        %v3488 = vsel %vm2464, %v416, 0.0
        %v3489 = vsel %vm2465, %v417, 0.0
        %v3490 = vsel %vm2466, %v418, 0.0
        %v3491 = vsel %vm2467, %v419, 0.0
        %v3492 = vsel %vm2468, %v420, 0.0
        %v3493 = vsel %vm2469, %v421, 0.0
        %v3494 = vsel %vm2470, %v422, 0.0
        %v3495 = vsel %vm2471, %v423, 0.0
        %v3496 = vsel %vm2472, %v424, 0.0
        %v3497 = vsel %vm2473, %v425, 0.0
        %v3498 = vsel %vm2474, %v426, 0.0
        %v3499 = vsel %vm2475, %v427, 0.0
        %v3500 = vsel %vm2476, %v428, 0.0
        %v3501 = vsel %vm2477, %v429, 0.0
        %v3502 = vsel %vm2478, %v430, 0.0
        %v3503 = vsel %vm2479, %v431, 0.0
        %v3504 = vsel %vm2480, %v432, 0.0
        %v3505 = vsel %vm2481, %v433, 0.0
        %v3506 = vsel %vm2482, %v434, 0.0
        %v3507 = vsel %vm2483, %v435, 0.0
        %v3508 = vsel %vm2484, %v436, 0.0
        %v3509 = vsel %vm2485, %v437, 0.0
        %v3510 = vsel %vm2486, %v438, 0.0
        %v3511 = vsel %vm2487, %v439, 0.0
        %v3512 = vsel %vm2488, %v440, 0.0
        %v3513 = vsel %vm2489, %v441, 0.0
        %v3514 = vsel %vm2490, %v442, 0.0
        %v3515 = vsel %vm2491, %v443, 0.0
        %v3516 = vsel %vm2492, %v444, 0.0
        %v3517 = vsel %vm2493, %v445, 0.0
        %v3518 = vsel %vm2494, %v446, 0.0
        %v3519 = vsel %vm2495, %v447, 0.0
        %v3520 = vsel %vm2496, %v448, 0.0
        %v3521 = vsel %vm2497, %v449, 0.0
        %v3522 = vsel %vm2498, %v450, 0.0
        %v3523 = vsel %vm2499, %v451, 0.0
        %v3524 = vsel %vm2500, %v452, 0.0
        %v3525 = vsel %vm2501, %v453, 0.0
        %v3526 = vsel %vm2502, %v454, 0.0
        %v3527 = vsel %vm2503, %v455, 0.0
        %v3528 = vsel %vm2504, %v456, 0.0
        %v3529 = vsel %vm2505, %v457, 0.0
        %v3530 = vsel %vm2506, %v458, 0.0
        %v3531 = vsel %vm2507, %v459, 0.0
        %v3532 = vsel %vm2508, %v460, 0.0
        %v3533 = vsel %vm2509, %v461, 0.0
        %v3534 = vsel %vm2510, %v462, 0.0
        %v3535 = vsel %vm2511, %v463, 0.0
        %v3536 = vsel %vm2512, %v464, 0.0
        %v3537 = vsel %vm2513, %v465, 0.0
        %v3538 = vsel %vm2514, %v466, 0.0
        %v3539 = vsel %vm2515, %v467, 0.0
        %v3540 = vsel %vm2516, %v468, 0.0
        %v3541 = vsel %vm2517, %v469, 0.0
        %v3542 = vsel %vm2518, %v470, 0.0
        %v3543 = vsel %vm2519, %v471, 0.0
        %v3544 = vsel %vm2520, %v472, 0.0
        %v3545 = vsel %vm2521, %v473, 0.0
        %v3546 = vsel %vm2522, %v474, 0.0
        %v3547 = vsel %vm2523, %v475, 0.0
        %v3548 = vsel %vm2524, %v476, 0.0
        %v3549 = vsel %vm2525, %v477, 0.0
        %v3550 = vsel %vm2526, %v478, 0.0
        %v3551 = vsel %vm2527, %v479, 0.0
        %v3552 = vsel %vm2528, %v480, 0.0
        %v3553 = vsel %vm2529, %v481, 0.0
        %v3554 = vsel %vm2530, %v482, 0.0
        %v3555 = vsel %vm2531, %v483, 0.0
        %v3556 = vsel %vm2532, %v484, 0.0
        %v3557 = vsel %vm2533, %v485, 0.0
        %v3558 = vsel %vm2534, %v486, 0.0
        %v3559 = vsel %vm2535, %v487, 0.0
        %v3560 = vsel %vm2536, %v488, 0.0
        %v3561 = vsel %vm2537, %v489, 0.0
        %v3562 = vsel %vm2538, %v490, 0.0
        %v3563 = vsel %vm2539, %v491, 0.0
        %v3564 = vsel %vm2540, %v492, 0.0
        %v3565 = vsel %vm2541, %v493, 0.0
        %v3566 = vsel %vm2542, %v494, 0.0
        %v3567 = vsel %vm2543, %v495, 0.0
        %v3568 = vsel %vm2544, %v496, 0.0
        %v3569 = vsel %vm2545, %v497, 0.0
        %v3570 = vsel %vm2546, %v498, 0.0
        %v3571 = vsel %vm2547, %v499, 0.0
        %v3572 = vsel %vm2548, %v500, 0.0
        %v3573 = vsel %vm2549, %v501, 0.0
        %v3574 = vsel %vm2550, %v502, 0.0
        %v3575 = vsel %vm2551, %v503, 0.0
        %v3576 = vsel %vm2552, %v504, 0.0
        %v3577 = vsel %vm2553, %v505, 0.0
        %v3578 = vsel %vm2554, %v506, 0.0
        %v3579 = vsel %vm2555, %v507, 0.0
        %v3580 = vsel %vm2556, %v508, 0.0
        %v3581 = vsel %vm2557, %v509, 0.0
        %v3582 = vsel %vm2558, %v510, 0.0
        %v3583 = vsel %vm2559, %v511, 0.0
        %v3584 = vsel %vm2560, %v512, 0.0
        %v3585 = vsel %vm2561, %v513, 0.0
        %v3586 = vsel %vm2562, %v514, 0.0
        %v3587 = vsel %vm2563, %v515, 0.0
        %v3588 = vsel %vm2564, %v516, 0.0
        %v3589 = vsel %vm2565, %v517, 0.0
        %v3590 = vsel %vm2566, %v518, 0.0
        %v3591 = vsel %vm2567, %v519, 0.0
        %v3592 = vsel %vm2568, %v520, 0.0
        %v3593 = vsel %vm2569, %v521, 0.0
        %v3594 = vsel %vm2570, %v522, 0.0
        %v3595 = vsel %vm2571, %v523, 0.0
        %v3596 = vsel %vm2572, %v524, 0.0
        %v3597 = vsel %vm2573, %v525, 0.0
        %v3598 = vsel %vm2574, %v526, 0.0
        %v3599 = vsel %vm2575, %v527, 0.0
        %v3600 = vsel %vm2576, %v528, 0.0
        %v3601 = vsel %vm2577, %v529, 0.0
        %v3602 = vsel %vm2578, %v530, 0.0
        %v3603 = vsel %vm2579, %v531, 0.0
        %v3604 = vsel %vm2580, %v532, 0.0
        %v3605 = vsel %vm2581, %v533, 0.0
        %v3606 = vsel %vm2582, %v534, 0.0
        %v3607 = vsel %vm2583, %v535, 0.0
        %v3608 = vsel %vm2584, %v536, 0.0
        %v3609 = vsel %vm2585, %v537, 0.0
        %v3610 = vsel %vm2586, %v538, 0.0
        %v3611 = vsel %vm2587, %v539, 0.0
        %v3612 = vsel %vm2588, %v540, 0.0
        %v3613 = vsel %vm2589, %v541, 0.0
        %v3614 = vsel %vm2590, %v542, 0.0
        %v3615 = vsel %vm2591, %v543, 0.0
        %v3616 = vsel %vm2592, %v544, 0.0
        %v3617 = vsel %vm2593, %v545, 0.0
        %v3618 = vsel %vm2594, %v546, 0.0
        %v3619 = vsel %vm2595, %v547, 0.0
        %v3620 = vsel %vm2596, %v548, 0.0
        %v3621 = vsel %vm2597, %v549, 0.0
        %v3622 = vsel %vm2598, %v550, 0.0
        %v3623 = vsel %vm2599, %v551, 0.0
        %v3624 = vsel %vm2600, %v552, 0.0
        %v3625 = vsel %vm2601, %v553, 0.0
        %v3626 = vsel %vm2602, %v554, 0.0
        %v3627 = vsel %vm2603, %v555, 0.0
        %v3628 = vsel %vm2604, %v556, 0.0
        %v3629 = vsel %vm2605, %v557, 0.0
        %v3630 = vsel %vm2606, %v558, 0.0
        %v3631 = vsel %vm2607, %v559, 0.0
        %v3632 = vsel %vm2608, %v560, 0.0
        %v3633 = vsel %vm2609, %v561, 0.0
        %v3634 = vsel %vm2610, %v562, 0.0
        %v3635 = vsel %vm2611, %v563, 0.0
        %v3636 = vsel %vm2612, %v564, 0.0
        %v3637 = vsel %vm2613, %v565, 0.0
        %v3638 = vsel %vm2614, %v566, 0.0
        %v3639 = vsel %vm2615, %v567, 0.0
        %v3640 = vsel %vm2616, %v568, 0.0
        %v3641 = vsel %vm2617, %v569, 0.0
        %v3642 = vsel %vm2618, %v570, 0.0
        %v3643 = vsel %vm2619, %v571, 0.0
        %v3644 = vsel %vm2620, %v572, 0.0
        %v3645 = vsel %vm2621, %v573, 0.0
        %v3646 = vsel %vm2622, %v574, 0.0
        %v3647 = vsel %vm2623, %v575, 0.0
        %v3648 = vsel %vm2624, %v576, 0.0
        %v3649 = vsel %vm2625, %v577, 0.0
        %v3650 = vsel %vm2626, %v578, 0.0
        %v3651 = vsel %vm2627, %v579, 0.0
        %v3652 = vsel %vm2628, %v580, 0.0
        %v3653 = vsel %vm2629, %v581, 0.0
        %v3654 = vsel %vm2630, %v582, 0.0
        %v3655 = vsel %vm2631, %v583, 0.0
        %v3656 = vsel %vm2632, %v584, 0.0
        %v3657 = vsel %vm2633, %v585, 0.0
        %v3658 = vsel %vm2634, %v586, 0.0
        %v3659 = vsel %vm2635, %v587, 0.0
        %v3660 = vsel %vm2636, %v588, 0.0
        %v3661 = vsel %vm2637, %v589, 0.0
        %v3662 = vsel %vm2638, %v590, 0.0
        %v3663 = vsel %vm2639, %v591, 0.0
        %v3664 = vsel %vm2640, %v592, 0.0
        %v3665 = vsel %vm2641, %v593, 0.0
        %v3666 = vsel %vm2642, %v594, 0.0
        %v3667 = vsel %vm2643, %v595, 0.0
        %v3668 = vsel %vm2644, %v596, 0.0
        %v3669 = vsel %vm2645, %v597, 0.0
        %v3670 = vsel %vm2646, %v598, 0.0
        %v3671 = vsel %vm2647, %v599, 0.0
        %v3672 = vsel %vm2648, %v600, 0.0
        %v3673 = vsel %vm2649, %v601, 0.0
        %v3674 = vsel %vm2650, %v602, 0.0
        %v3675 = vsel %vm2651, %v603, 0.0
        %v3676 = vsel %vm2652, %v604, 0.0
        %v3677 = vsel %vm2653, %v605, 0.0
        %v3678 = vsel %vm2654, %v606, 0.0
        %v3679 = vsel %vm2655, %v607, 0.0
        %v3680 = vsel %vm2656, %v608, 0.0
        %v3681 = vsel %vm2657, %v609, 0.0
        %v3682 = vsel %vm2658, %v610, 0.0
        %v3683 = vsel %vm2659, %v611, 0.0
        %v3684 = vsel %vm2660, %v612, 0.0
        %v3685 = vsel %vm2661, %v613, 0.0
        %v3686 = vsel %vm2662, %v614, 0.0
        %v3687 = vsel %vm2663, %v615, 0.0
        %v3688 = vsel %vm2664, %v616, 0.0
        %v3689 = vsel %vm2665, %v617, 0.0
        %v3690 = vsel %vm2666, %v618, 0.0
        %v3691 = vsel %vm2667, %v619, 0.0
        %v3692 = vsel %vm2668, %v620, 0.0
        %v3693 = vsel %vm2669, %v621, 0.0
        %v3694 = vsel %vm2670, %v622, 0.0
        %v3695 = vsel %vm2671, %v623, 0.0
        %v3696 = vsel %vm2672, %v624, 0.0
        %v3697 = vsel %vm2673, %v625, 0.0
        %v3698 = vsel %vm2674, %v626, 0.0
        %v3699 = vsel %vm2675, %v627, 0.0
        %v3700 = vsel %vm2676, %v628, 0.0
        %v3701 = vsel %vm2677, %v629, 0.0
        %v3702 = vsel %vm2678, %v630, 0.0
        %v3703 = vsel %vm2679, %v631, 0.0
        %v3704 = vsel %vm2680, %v632, 0.0
        %v3705 = vsel %vm2681, %v633, 0.0
        %v3706 = vsel %vm2682, %v634, 0.0
        %v3707 = vsel %vm2683, %v635, 0.0
        %v3708 = vsel %vm2684, %v636, 0.0
        %v3709 = vsel %vm2685, %v637, 0.0
        %v3710 = vsel %vm2686, %v638, 0.0
        %v3711 = vsel %vm2687, %v639, 0.0
        %v3712 = vsel %vm2688, %v640, 0.0
        %v3713 = vsel %vm2689, %v641, 0.0
        %v3714 = vsel %vm2690, %v642, 0.0
        %v3715 = vsel %vm2691, %v643, 0.0
        %v3716 = vsel %vm2692, %v644, 0.0
        %v3717 = vsel %vm2693, %v645, 0.0
        %v3718 = vsel %vm2694, %v646, 0.0
        %v3719 = vsel %vm2695, %v647, 0.0
        %v3720 = vsel %vm2696, %v648, 0.0
        %v3721 = vsel %vm2697, %v649, 0.0
        %v3722 = vsel %vm2698, %v650, 0.0
        %v3723 = vsel %vm2699, %v651, 0.0
        %v3724 = vsel %vm2700, %v652, 0.0
        %v3725 = vsel %vm2701, %v653, 0.0
        %v3726 = vsel %vm2702, %v654, 0.0
        %v3727 = vsel %vm2703, %v655, 0.0
        %v3728 = vsel %vm2704, %v656, 0.0
        %v3729 = vsel %vm2705, %v657, 0.0
        %v3730 = vsel %vm2706, %v658, 0.0
        %v3731 = vsel %vm2707, %v659, 0.0
        %v3732 = vsel %vm2708, %v660, 0.0
        %v3733 = vsel %vm2709, %v661, 0.0
        %v3734 = vsel %vm2710, %v662, 0.0
        %v3735 = vsel %vm2711, %v663, 0.0
        %v3736 = vsel %vm2712, %v664, 0.0
        %v3737 = vsel %vm2713, %v665, 0.0
        %v3738 = vsel %vm2714, %v666, 0.0
        %v3739 = vsel %vm2715, %v667, 0.0
        %v3740 = vsel %vm2716, %v668, 0.0
        %v3741 = vsel %vm2717, %v669, 0.0
        %v3742 = vsel %vm2718, %v670, 0.0
        %v3743 = vsel %vm2719, %v671, 0.0
        %v3744 = vsel %vm2720, %v672, 0.0
        %v3745 = vsel %vm2721, %v673, 0.0
        %v3746 = vsel %vm2722, %v674, 0.0
        %v3747 = vsel %vm2723, %v675, 0.0
        %v3748 = vsel %vm2724, %v676, 0.0
        %v3749 = vsel %vm2725, %v677, 0.0
        %v3750 = vsel %vm2726, %v678, 0.0
        %v3751 = vsel %vm2727, %v679, 0.0
        %v3752 = vsel %vm2728, %v680, 0.0
        %v3753 = vsel %vm2729, %v681, 0.0
        %v3754 = vsel %vm2730, %v682, 0.0
        %v3755 = vsel %vm2731, %v683, 0.0
        %v3756 = vsel %vm2732, %v684, 0.0
        %v3757 = vsel %vm2733, %v685, 0.0
        %v3758 = vsel %vm2734, %v686, 0.0
        %v3759 = vsel %vm2735, %v687, 0.0
        %v3760 = vsel %vm2736, %v688, 0.0
        %v3761 = vsel %vm2737, %v689, 0.0
        %v3762 = vsel %vm2738, %v690, 0.0
        %v3763 = vsel %vm2739, %v691, 0.0
        %v3764 = vsel %vm2740, %v692, 0.0
        %v3765 = vsel %vm2741, %v693, 0.0
        %v3766 = vsel %vm2742, %v694, 0.0
        %v3767 = vsel %vm2743, %v695, 0.0
        %v3768 = vsel %vm2744, %v696, 0.0
        %v3769 = vsel %vm2745, %v697, 0.0
        %v3770 = vsel %vm2746, %v698, 0.0
        %v3771 = vsel %vm2747, %v699, 0.0
        %v3772 = vsel %vm2748, %v700, 0.0
        %v3773 = vsel %vm2749, %v701, 0.0
        %v3774 = vsel %vm2750, %v702, 0.0
        %v3775 = vsel %vm2751, %v703, 0.0
        %v3776 = vsel %vm2752, %v704, 0.0
        %v3777 = vsel %vm2753, %v705, 0.0
        %v3778 = vsel %vm2754, %v706, 0.0
        %v3779 = vsel %vm2755, %v707, 0.0
        %v3780 = vsel %vm2756, %v708, 0.0
        %v3781 = vsel %vm2757, %v709, 0.0
        %v3782 = vsel %vm2758, %v710, 0.0
        %v3783 = vsel %vm2759, %v711, 0.0
        %v3784 = vsel %vm2760, %v712, 0.0
        %v3785 = vsel %vm2761, %v713, 0.0
        %v3786 = vsel %vm2762, %v714, 0.0
        %v3787 = vsel %vm2763, %v715, 0.0
        %v3788 = vsel %vm2764, %v716, 0.0
        %v3789 = vsel %vm2765, %v717, 0.0
        %v3790 = vsel %vm2766, %v718, 0.0
        %v3791 = vsel %vm2767, %v719, 0.0
        %v3792 = vsel %vm2768, %v720, 0.0
        %v3793 = vsel %vm2769, %v721, 0.0
        %v3794 = vsel %vm2770, %v722, 0.0
        %v3795 = vsel %vm2771, %v723, 0.0
        %v3796 = vsel %vm2772, %v724, 0.0
        %v3797 = vsel %vm2773, %v725, 0.0
        %v3798 = vsel %vm2774, %v726, 0.0
        %v3799 = vsel %vm2775, %v727, 0.0
        %v3800 = vsel %vm2776, %v728, 0.0
        %v3801 = vsel %vm2777, %v729, 0.0
        %v3802 = vsel %vm2778, %v730, 0.0
        %v3803 = vsel %vm2779, %v731, 0.0
        %v3804 = vsel %vm2780, %v732, 0.0
        %v3805 = vsel %vm2781, %v733, 0.0
        %v3806 = vsel %vm2782, %v734, 0.0
        %v3807 = vsel %vm2783, %v735, 0.0
        %v3808 = vsel %vm2784, %v736, 0.0
        %v3809 = vsel %vm2785, %v737, 0.0
        %v3810 = vsel %vm2786, %v738, 0.0
        %v3811 = vsel %vm2787, %v739, 0.0
        %v3812 = vsel %vm2788, %v740, 0.0
        %v3813 = vsel %vm2789, %v741, 0.0
        %v3814 = vsel %vm2790, %v742, 0.0
        %v3815 = vsel %vm2791, %v743, 0.0
        %v3816 = vsel %vm2792, %v744, 0.0
        %v3817 = vsel %vm2793, %v745, 0.0
        %v3818 = vsel %vm2794, %v746, 0.0
        %v3819 = vsel %vm2795, %v747, 0.0
        %v3820 = vsel %vm2796, %v748, 0.0
        %v3821 = vsel %vm2797, %v749, 0.0
        %v3822 = vsel %vm2798, %v750, 0.0
        %v3823 = vsel %vm2799, %v751, 0.0
        %v3824 = vsel %vm2800, %v752, 0.0
        %v3825 = vsel %vm2801, %v753, 0.0
        %v3826 = vsel %vm2802, %v754, 0.0
        %v3827 = vsel %vm2803, %v755, 0.0
        %v3828 = vsel %vm2804, %v756, 0.0
        %v3829 = vsel %vm2805, %v757, 0.0
        %v3830 = vsel %vm2806, %v758, 0.0
        %v3831 = vsel %vm2807, %v759, 0.0
        %v3832 = vsel %vm2808, %v760, 0.0
        %v3833 = vsel %vm2809, %v761, 0.0
        %v3834 = vsel %vm2810, %v762, 0.0
        %v3835 = vsel %vm2811, %v763, 0.0
        %v3836 = vsel %vm2812, %v764, 0.0
        %v3837 = vsel %vm2813, %v765, 0.0
        %v3838 = vsel %vm2814, %v766, 0.0
        %v3839 = vsel %vm2815, %v767, 0.0
        %v3840 = vsel %vm2816, %v768, 0.0
        %v3841 = vsel %vm2817, %v769, 0.0
        %v3842 = vsel %vm2818, %v770, 0.0
        %v3843 = vsel %vm2819, %v771, 0.0
        %v3844 = vsel %vm2820, %v772, 0.0
        %v3845 = vsel %vm2821, %v773, 0.0
        %v3846 = vsel %vm2822, %v774, 0.0
        %v3847 = vsel %vm2823, %v775, 0.0
        %v3848 = vsel %vm2824, %v776, 0.0
        %v3849 = vsel %vm2825, %v777, 0.0
        %v3850 = vsel %vm2826, %v778, 0.0
        %v3851 = vsel %vm2827, %v779, 0.0
        %v3852 = vsel %vm2828, %v780, 0.0
        %v3853 = vsel %vm2829, %v781, 0.0
        %v3854 = vsel %vm2830, %v782, 0.0
        %v3855 = vsel %vm2831, %v783, 0.0
        %v3856 = vsel %vm2832, %v784, 0.0
        %v3857 = vsel %vm2833, %v785, 0.0
        %v3858 = vsel %vm2834, %v786, 0.0
        %v3859 = vsel %vm2835, %v787, 0.0
        %v3860 = vsel %vm2836, %v788, 0.0
        %v3861 = vsel %vm2837, %v789, 0.0
        %v3862 = vsel %vm2838, %v790, 0.0
        %v3863 = vsel %vm2839, %v791, 0.0
        %v3864 = vsel %vm2840, %v792, 0.0
        %v3865 = vsel %vm2841, %v793, 0.0
        %v3866 = vsel %vm2842, %v794, 0.0
        %v3867 = vsel %vm2843, %v795, 0.0
        %v3868 = vsel %vm2844, %v796, 0.0
        %v3869 = vsel %vm2845, %v797, 0.0
        %v3870 = vsel %vm2846, %v798, 0.0
        %v3871 = vsel %vm2847, %v799, 0.0
        %v3872 = vsel %vm2848, %v800, 0.0
        %v3873 = vsel %vm2849, %v801, 0.0
        %v3874 = vsel %vm2850, %v802, 0.0
        %v3875 = vsel %vm2851, %v803, 0.0
        %v3876 = vsel %vm2852, %v804, 0.0
        %v3877 = vsel %vm2853, %v805, 0.0
        %v3878 = vsel %vm2854, %v806, 0.0
        %v3879 = vsel %vm2855, %v807, 0.0
        %v3880 = vsel %vm2856, %v808, 0.0
        %v3881 = vsel %vm2857, %v809, 0.0
        %v3882 = vsel %vm2858, %v810, 0.0
        %v3883 = vsel %vm2859, %v811, 0.0
        %v3884 = vsel %vm2860, %v812, 0.0
        %v3885 = vsel %vm2861, %v813, 0.0
        %v3886 = vsel %vm2862, %v814, 0.0
        %v3887 = vsel %vm2863, %v815, 0.0
        %v3888 = vsel %vm2864, %v816, 0.0
        %v3889 = vsel %vm2865, %v817, 0.0
        %v3890 = vsel %vm2866, %v818, 0.0
        %v3891 = vsel %vm2867, %v819, 0.0
        %v3892 = vsel %vm2868, %v820, 0.0
        %v3893 = vsel %vm2869, %v821, 0.0
        %v3894 = vsel %vm2870, %v822, 0.0
        %v3895 = vsel %vm2871, %v823, 0.0
        %v3896 = vsel %vm2872, %v824, 0.0
        %v3897 = vsel %vm2873, %v825, 0.0
        %v3898 = vsel %vm2874, %v826, 0.0
        %v3899 = vsel %vm2875, %v827, 0.0
        %v3900 = vsel %vm2876, %v828, 0.0
        %v3901 = vsel %vm2877, %v829, 0.0
        %v3902 = vsel %vm2878, %v830, 0.0
        %v3903 = vsel %vm2879, %v831, 0.0
        %v3904 = vsel %vm2880, %v832, 0.0
        %v3905 = vsel %vm2881, %v833, 0.0
        %v3906 = vsel %vm2882, %v834, 0.0
        %v3907 = vsel %vm2883, %v835, 0.0
        %v3908 = vsel %vm2884, %v836, 0.0
        %v3909 = vsel %vm2885, %v837, 0.0
        %v3910 = vsel %vm2886, %v838, 0.0
        %v3911 = vsel %vm2887, %v839, 0.0
        %v3912 = vsel %vm2888, %v840, 0.0
        %v3913 = vsel %vm2889, %v841, 0.0
        %v3914 = vsel %vm2890, %v842, 0.0
        %v3915 = vsel %vm2891, %v843, 0.0
        %v3916 = vsel %vm2892, %v844, 0.0
        %v3917 = vsel %vm2893, %v845, 0.0
        %v3918 = vsel %vm2894, %v846, 0.0
        %v3919 = vsel %vm2895, %v847, 0.0
        %v3920 = vsel %vm2896, %v848, 0.0
        %v3921 = vsel %vm2897, %v849, 0.0
        %v3922 = vsel %vm2898, %v850, 0.0
        %v3923 = vsel %vm2899, %v851, 0.0
        %v3924 = vsel %vm2900, %v852, 0.0
        %v3925 = vsel %vm2901, %v853, 0.0
        %v3926 = vsel %vm2902, %v854, 0.0
        %v3927 = vsel %vm2903, %v855, 0.0
        %v3928 = vsel %vm2904, %v856, 0.0
        %v3929 = vsel %vm2905, %v857, 0.0
        %v3930 = vsel %vm2906, %v858, 0.0
        %v3931 = vsel %vm2907, %v859, 0.0
        %v3932 = vsel %vm2908, %v860, 0.0
        %v3933 = vsel %vm2909, %v861, 0.0
        %v3934 = vsel %vm2910, %v862, 0.0
        %v3935 = vsel %vm2911, %v863, 0.0
        %v3936 = vsel %vm2912, %v864, 0.0
        %v3937 = vsel %vm2913, %v865, 0.0
        %v3938 = vsel %vm2914, %v866, 0.0
        %v3939 = vsel %vm2915, %v867, 0.0
        %v3940 = vsel %vm2916, %v868, 0.0
        %v3941 = vsel %vm2917, %v869, 0.0
        %v3942 = vsel %vm2918, %v870, 0.0
        %v3943 = vsel %vm2919, %v871, 0.0
        %v3944 = vsel %vm2920, %v872, 0.0
        %v3945 = vsel %vm2921, %v873, 0.0
        %v3946 = vsel %vm2922, %v874, 0.0
        %v3947 = vsel %vm2923, %v875, 0.0
        %v3948 = vsel %vm2924, %v876, 0.0
        %v3949 = vsel %vm2925, %v877, 0.0
        %v3950 = vsel %vm2926, %v878, 0.0
        %v3951 = vsel %vm2927, %v879, 0.0
        %v3952 = vsel %vm2928, %v880, 0.0
        %v3953 = vsel %vm2929, %v881, 0.0
        %v3954 = vsel %vm2930, %v882, 0.0
        %v3955 = vsel %vm2931, %v883, 0.0
        %v3956 = vsel %vm2932, %v884, 0.0
        %v3957 = vsel %vm2933, %v885, 0.0
        %v3958 = vsel %vm2934, %v886, 0.0
        %v3959 = vsel %vm2935, %v887, 0.0
        %v3960 = vsel %vm2936, %v888, 0.0
        %v3961 = vsel %vm2937, %v889, 0.0
        %v3962 = vsel %vm2938, %v890, 0.0
        %v3963 = vsel %vm2939, %v891, 0.0
        %v3964 = vsel %vm2940, %v892, 0.0
        %v3965 = vsel %vm2941, %v893, 0.0
        %v3966 = vsel %vm2942, %v894, 0.0
        %v3967 = vsel %vm2943, %v895, 0.0
        %v3968 = vsel %vm2944, %v896, 0.0
        %v3969 = vsel %vm2945, %v897, 0.0
        %v3970 = vsel %vm2946, %v898, 0.0
        %v3971 = vsel %vm2947, %v899, 0.0
        %v3972 = vsel %vm2948, %v900, 0.0
        %v3973 = vsel %vm2949, %v901, 0.0
        %v3974 = vsel %vm2950, %v902, 0.0
        %v3975 = vsel %vm2951, %v903, 0.0
        %v3976 = vsel %vm2952, %v904, 0.0
        %v3977 = vsel %vm2953, %v905, 0.0
        %v3978 = vsel %vm2954, %v906, 0.0
        %v3979 = vsel %vm2955, %v907, 0.0
        %v3980 = vsel %vm2956, %v908, 0.0
        %v3981 = vsel %vm2957, %v909, 0.0
        %v3982 = vsel %vm2958, %v910, 0.0
        %v3983 = vsel %vm2959, %v911, 0.0
        %v3984 = vsel %vm2960, %v912, 0.0
        %v3985 = vsel %vm2961, %v913, 0.0
        %v3986 = vsel %vm2962, %v914, 0.0
        %v3987 = vsel %vm2963, %v915, 0.0
        %v3988 = vsel %vm2964, %v916, 0.0
        %v3989 = vsel %vm2965, %v917, 0.0
        %v3990 = vsel %vm2966, %v918, 0.0
        %v3991 = vsel %vm2967, %v919, 0.0
        %v3992 = vsel %vm2968, %v920, 0.0
        %v3993 = vsel %vm2969, %v921, 0.0
        %v3994 = vsel %vm2970, %v922, 0.0
        %v3995 = vsel %vm2971, %v923, 0.0
        %v3996 = vsel %vm2972, %v924, 0.0
        %v3997 = vsel %vm2973, %v925, 0.0
        %v3998 = vsel %vm2974, %v926, 0.0
        %v3999 = vsel %vm2975, %v927, 0.0
        %v4000 = vsel %vm2976, %v928, 0.0
        %v4001 = vsel %vm2977, %v929, 0.0
        %v4002 = vsel %vm2978, %v930, 0.0
        %v4003 = vsel %vm2979, %v931, 0.0
        %v4004 = vsel %vm2980, %v932, 0.0
        %v4005 = vsel %vm2981, %v933, 0.0
        %v4006 = vsel %vm2982, %v934, 0.0
        %v4007 = vsel %vm2983, %v935, 0.0
        %v4008 = vsel %vm2984, %v936, 0.0
        %v4009 = vsel %vm2985, %v937, 0.0
        %v4010 = vsel %vm2986, %v938, 0.0
        %v4011 = vsel %vm2987, %v939, 0.0
        %v4012 = vsel %vm2988, %v940, 0.0
        %v4013 = vsel %vm2989, %v941, 0.0
        %v4014 = vsel %vm2990, %v942, 0.0
        %v4015 = vsel %vm2991, %v943, 0.0
        %v4016 = vsel %vm2992, %v944, 0.0
        %v4017 = vsel %vm2993, %v945, 0.0
        %v4018 = vsel %vm2994, %v946, 0.0
        %v4019 = vsel %vm2995, %v947, 0.0
        %v4020 = vsel %vm2996, %v948, 0.0
        %v4021 = vsel %vm2997, %v949, 0.0
        %v4022 = vsel %vm2998, %v950, 0.0
        %v4023 = vsel %vm2999, %v951, 0.0
        %v4024 = vsel %vm3000, %v952, 0.0
        %v4025 = vsel %vm3001, %v953, 0.0
        %v4026 = vsel %vm3002, %v954, 0.0
        %v4027 = vsel %vm3003, %v955, 0.0
        %v4028 = vsel %vm3004, %v956, 0.0
        %v4029 = vsel %vm3005, %v957, 0.0
        %v4030 = vsel %vm3006, %v958, 0.0
        %v4031 = vsel %vm3007, %v959, 0.0
        %v4032 = vsel %vm3008, %v960, 0.0
        %v4033 = vsel %vm3009, %v961, 0.0
        %v4034 = vsel %vm3010, %v962, 0.0
        %v4035 = vsel %vm3011, %v963, 0.0
        %v4036 = vsel %vm3012, %v964, 0.0
        %v4037 = vsel %vm3013, %v965, 0.0
        %v4038 = vsel %vm3014, %v966, 0.0
        %v4039 = vsel %vm3015, %v967, 0.0
        %v4040 = vsel %vm3016, %v968, 0.0
        %v4041 = vsel %vm3017, %v969, 0.0
        %v4042 = vsel %vm3018, %v970, 0.0
        %v4043 = vsel %vm3019, %v971, 0.0
        %v4044 = vsel %vm3020, %v972, 0.0
        %v4045 = vsel %vm3021, %v973, 0.0
        %v4046 = vsel %vm3022, %v974, 0.0
        %v4047 = vsel %vm3023, %v975, 0.0
        %v4048 = vsel %vm3024, %v976, 0.0
        %v4049 = vsel %vm3025, %v977, 0.0
        %v4050 = vsel %vm3026, %v978, 0.0
        %v4051 = vsel %vm3027, %v979, 0.0
        %v4052 = vsel %vm3028, %v980, 0.0
        %v4053 = vsel %vm3029, %v981, 0.0
        %v4054 = vsel %vm3030, %v982, 0.0
        %v4055 = vsel %vm3031, %v983, 0.0
        %v4056 = vsel %vm3032, %v984, 0.0
        %v4057 = vsel %vm3033, %v985, 0.0
        %v4058 = vsel %vm3034, %v986, 0.0
        %v4059 = vsel %vm3035, %v987, 0.0
        %v4060 = vsel %vm3036, %v988, 0.0
        %v4061 = vsel %vm3037, %v989, 0.0
        %v4062 = vsel %vm3038, %v990, 0.0
        %v4063 = vsel %vm3039, %v991, 0.0
        %v4064 = vsel %vm3040, %v992, 0.0
        %v4065 = vsel %vm3041, %v993, 0.0
        %v4066 = vsel %vm3042, %v994, 0.0
        %v4067 = vsel %vm3043, %v995, 0.0
        %v4068 = vsel %vm3044, %v996, 0.0
        %v4069 = vsel %vm3045, %v997, 0.0
        %v4070 = vsel %vm3046, %v998, 0.0
        %v4071 = vsel %vm3047, %v999, 0.0
        %v4072 = vsel %vm3048, %v1000, 0.0
        %v4073 = vsel %vm3049, %v1001, 0.0
        %v4074 = vsel %vm3050, %v1002, 0.0
        %v4075 = vsel %vm3051, %v1003, 0.0
        %v4076 = vsel %vm3052, %v1004, 0.0
        %v4077 = vsel %vm3053, %v1005, 0.0
        %v4078 = vsel %vm3054, %v1006, 0.0
        %v4079 = vsel %vm3055, %v1007, 0.0
        %v4080 = vsel %vm3056, %v1008, 0.0
        %v4081 = vsel %vm3057, %v1009, 0.0
        %v4082 = vsel %vm3058, %v1010, 0.0
        %v4083 = vsel %vm3059, %v1011, 0.0
        %v4084 = vsel %vm3060, %v1012, 0.0
        %v4085 = vsel %vm3061, %v1013, 0.0
        %v4086 = vsel %vm3062, %v1014, 0.0
        %v4087 = vsel %vm3063, %v1015, 0.0
        %v4088 = vsel %vm3064, %v1016, 0.0
        %v4089 = vsel %vm3065, %v1017, 0.0
        %v4090 = vsel %vm3066, %v1018, 0.0
        %v4091 = vsel %vm3067, %v1019, 0.0
        %v4092 = vsel %vm3068, %v1020, 0.0
        %v4093 = vsel %vm3069, %v1021, 0.0
        %v4094 = vsel %vm3070, %v1022, 0.0
        %v4095 = vsel %vm3071, %v1023, 0.0
        %v4096 = vsel %vm3072, %v1024, 0.0
        %v4097 = vsel %vm3073, %v1025, 0.0
        %v4098 = vsel %vm3074, %v1026, 0.0
        %v4099 = vsel %vm3075, %v1027, 0.0
        %v4100 = vsel %vm3076, %v1028, 0.0
        %v4101 = vsel %vm3077, %v1029, 0.0
        %v4102 = vsel %vm3078, %v1030, 0.0
        %v4103 = vsel %vm3079, %v1031, 0.0
        %v4104 = vsel %vm3080, %v1032, 0.0
        %v4105 = vsel %vm3081, %v1033, 0.0
        %v4106 = vsel %vm3082, %v1034, 0.0
        %v4107 = vsel %vm3083, %v1035, 0.0
        %v4108 = vsel %vm3084, %v1036, 0.0
        %v4109 = vsel %vm3085, %v1037, 0.0
        %v4110 = vsel %vm3086, %v1038, 0.0
        %v4111 = vsel %vm3087, %v1039, 0.0
        %v4112 = vsel %vm3088, %v1040, 0.0
        %v4113 = vsel %vm3089, %v1041, 0.0
        %v4114 = vsel %vm3090, %v1042, 0.0
        %v4115 = vsel %vm3091, %v1043, 0.0
        %v4116 = vsel %vm3092, %v1044, 0.0
        %v4117 = vsel %vm3093, %v1045, 0.0
        %v4118 = vsel %vm3094, %v1046, 0.0
        %v4119 = vsel %vm3095, %v1047, 0.0
        %v4120 = vsel %vm3096, %v1048, 0.0
        %v4121 = vsel %vm3097, %v1049, 0.0
        %v4122 = vsel %vm3098, %v1050, 0.0
        %v4123 = vsel %vm3099, %v1051, 0.0
        %v4124 = vsel %vm3100, %v1052, 0.0
        %v4125 = vsel %vm3101, %v1053, 0.0
        %v4126 = vsel %vm3102, %v1054, 0.0
        %v4127 = vsel %vm3103, %v1055, 0.0
        %v4128 = vsel %vm3104, %v1056, 0.0
        %v4129 = vsel %vm3105, %v1057, 0.0
        %v4130 = vsel %vm3106, %v1058, 0.0
        %v4131 = vsel %vm3107, %v1059, 0.0
        %v4132 = vsel %vm3108, %v1060, 0.0
        %v4133 = vsel %vm3109, %v1061, 0.0
        %v4134 = vsel %vm3110, %v1062, 0.0
        %v4135 = vsel %vm3111, %v1063, 0.0
        %v4136 = vsel %vm3112, %v1064, 0.0
        %v4137 = vsel %vm3113, %v1065, 0.0
        %v4138 = vsel %vm3114, %v1066, 0.0
        %v4139 = vsel %vm3115, %v1067, 0.0
        %v4140 = vsel %vm3116, %v1068, 0.0
        %v4141 = vsel %vm3117, %v1069, 0.0
        %v4142 = vsel %vm3118, %v1070, 0.0
        %v4143 = vsel %vm3119, %v1071, 0.0
        %v4144 = vsel %vm3120, %v1072, 0.0
        %v4145 = vsel %vm3121, %v1073, 0.0
        %v4146 = vsel %vm3122, %v1074, 0.0
        %v4147 = vsel %vm3123, %v1075, 0.0
        %v4148 = vsel %vm3124, %v1076, 0.0
        %v4149 = vsel %vm3125, %v1077, 0.0
        %v4150 = vsel %vm3126, %v1078, 0.0
        %v4151 = vsel %vm3127, %v1079, 0.0
        %v4152 = vsel %vm3128, %v1080, 0.0
        %v4153 = vsel %vm3129, %v1081, 0.0
        %v4154 = vsel %vm3130, %v1082, 0.0
        %v4155 = vsel %vm3131, %v1083, 0.0
        %v4156 = vsel %vm3132, %v1084, 0.0
        %v4157 = vsel %vm3133, %v1085, 0.0
        %v4158 = vsel %vm3134, %v1086, 0.0
        %v4159 = vsel %vm3135, %v1087, 0.0
        %v4160 = vsel %vm3136, %v1088, 0.0
        %v4161 = vsel %vm3137, %v1089, 0.0
        %v4162 = vsel %vm3138, %v1090, 0.0
        %v4163 = vsel %vm3139, %v1091, 0.0
        %v4164 = vsel %vm3140, %v1092, 0.0
        %v4165 = vsel %vm3141, %v1093, 0.0
        %v4166 = vsel %vm3142, %v1094, 0.0
        %v4167 = vsel %vm3143, %v1095, 0.0
        %v4168 = vsel %vm3144, %v1096, 0.0
        %v4169 = vsel %vm3145, %v1097, 0.0
        %v4170 = vsel %vm3146, %v1098, 0.0
        %v4171 = vsel %vm3147, %v1099, 0.0
        %v4172 = vsel %vm3148, %v1100, 0.0
        %v4173 = vsel %vm3149, %v1101, 0.0
        %v4174 = vsel %vm3150, %v1102, 0.0
        %v4175 = vsel %vm3151, %v1103, 0.0
        %v4176 = vsel %vm3152, %v1104, 0.0
        %v4177 = vsel %vm3153, %v1105, 0.0
        %v4178 = vsel %vm3154, %v1106, 0.0
        %v4179 = vsel %vm3155, %v1107, 0.0
        %v4180 = vsel %vm3156, %v1108, 0.0
        %v4181 = vsel %vm3157, %v1109, 0.0
        %v4182 = vsel %vm3158, %v1110, 0.0
        %v4183 = vsel %vm3159, %v1111, 0.0
        %v4184 = vsel %vm3160, %v1112, 0.0
        %v4185 = vsel %vm3161, %v1113, 0.0
        %v4186 = vsel %vm3162, %v1114, 0.0
        %v4187 = vsel %vm3163, %v1115, 0.0
        %v4188 = vsel %vm3164, %v1116, 0.0
        %v4189 = vsel %vm3165, %v1117, 0.0
        %v4190 = vsel %vm3166, %v1118, 0.0
        %v4191 = vsel %vm3167, %v1119, 0.0
        %v4192 = vsel %vm3168, %v1120, 0.0
        %v4193 = vsel %vm3169, %v1121, 0.0
        %v4194 = vsel %vm3170, %v1122, 0.0
        %v4195 = vsel %vm3171, %v1123, 0.0
        %v4196 = vsel %vm3172, %v1124, 0.0
        %v4197 = vsel %vm3173, %v1125, 0.0
        %v4198 = vsel %vm3174, %v1126, 0.0
        %v4199 = vsel %vm3175, %v1127, 0.0
        %v4200 = vsel %vm3176, %v1128, 0.0
        %v4201 = vsel %vm3177, %v1129, 0.0
        %v4202 = vsel %vm3178, %v1130, 0.0
        %v4203 = vsel %vm3179, %v1131, 0.0
        %v4204 = vsel %vm3180, %v1132, 0.0
        %v4205 = vsel %vm3181, %v1133, 0.0
        %v4206 = vsel %vm3182, %v1134, 0.0
        %v4207 = vsel %vm3183, %v1135, 0.0
        %v4208 = vsel %vm3184, %v1136, 0.0
        %v4209 = vsel %vm3185, %v1137, 0.0
        %v4210 = vsel %vm3186, %v1138, 0.0
        %v4211 = vsel %vm3187, %v1139, 0.0
        %v4212 = vsel %vm3188, %v1140, 0.0
        %v4213 = vsel %vm3189, %v1141, 0.0
        %v4214 = vsel %vm3190, %v1142, 0.0
        %v4215 = vsel %vm3191, %v1143, 0.0
        %v4216 = vsel %vm3192, %v1144, 0.0
        %v4217 = vsel %vm3193, %v1145, 0.0
        %v4218 = vsel %vm3194, %v1146, 0.0
        %v4219 = vsel %vm3195, %v1147, 0.0
        %v4220 = vsel %vm3196, %v1148, 0.0
        %v4221 = vsel %vm3197, %v1149, 0.0
        %v4222 = vsel %vm3198, %v1150, 0.0
        %v4223 = vsel %vm3199, %v1151, 0.0
        %v4224 = vsel %vm3200, %v1152, 0.0
        %v4225 = vsel %vm3201, %v1153, 0.0
        %v4226 = vsel %vm3202, %v1154, 0.0
        %v4227 = vsel %vm3203, %v1155, 0.0
        %v4228 = vsel %vm3204, %v1156, 0.0
        %v4229 = vsel %vm3205, %v1157, 0.0
        %v4230 = vsel %vm3206, %v1158, 0.0
        %v4231 = vsel %vm3207, %v1159, 0.0
        %v4232 = vsel %vm3208, %v1160, 0.0
        %v4233 = vsel %vm3209, %v1161, 0.0
        %4234 = vst [vmem:[%s135] sm:$0xff] %v3210
        %4235 = vst [vmem:[%s135 + $0x8] sm:$0xff] %v3211
        %4236 = vst [vmem:[%s135 + $0x10] sm:$0xff] %v3212
        %4237 = vst [vmem:[%s135 + $0x18] sm:$0xff] %v3213
        %4238 = vst [vmem:[%s135 + $0x20] sm:$0xff] %v3214
        %4239 = vst [vmem:[%s135 + $0x28] sm:$0xff] %v3215
        %4240 = vst [vmem:[%s135 + $0x30] sm:$0xff] %v3216
        %4241 = vst [vmem:[%s135 + $0x38] sm:$0xff] %v3217
        %4242 = vst [vmem:[%s135 + $0x40] sm:$0xff] %v3218
        %4243 = vst [vmem:[%s135 + $0x48] sm:$0xff] %v3219
        %4244 = vst [vmem:[%s135 + $0x50] sm:$0xff] %v3220
        %4245 = vst [vmem:[%s135 + $0x58] sm:$0xff] %v3221
        %4246 = vst [vmem:[%s135 + $0x60] sm:$0xff] %v3222
        %4247 = vst [vmem:[%s135 + $0x68] sm:$0xff] %v3223
        %4248 = vst [vmem:[%s135 + $0x70] sm:$0xff] %v3224
        %4249 = vst [vmem:[%s135 + $0x78] sm:$0xff] %v3225
        %4250 = vst [vmem:[%s135 + $0x80] sm:$0xff] %v3226
        %4251 = vst [vmem:[%s135 + $0x88] sm:$0xff] %v3227
        %4252 = vst [vmem:[%s135 + $0x90] sm:$0xff] %v3228
        %4253 = vst [vmem:[%s135 + $0x98] sm:$0xff] %v3229
        %4254 = vst [vmem:[%s135 + $0xa0] sm:$0xff] %v3230
        %4255 = vst [vmem:[%s135 + $0xa8] sm:$0xff] %v3231
        %4256 = vst [vmem:[%s135 + $0xb0] sm:$0xff] %v3232
        %4257 = vst [vmem:[%s135 + $0xb8] sm:$0xff] %v3233
        %4258 = vst [vmem:[%s135 + $0xc0] sm:$0xff] %v3234
        %4259 = vst [vmem:[%s135 + $0xc8] sm:$0xff] %v3235
        %4260 = vst [vmem:[%s135 + $0xd0] sm:$0xff] %v3236
        %4261 = vst [vmem:[%s135 + $0xd8] sm:$0xff] %v3237
        %4262 = vst [vmem:[%s135 + $0xe0] sm:$0xff] %v3238
        %4263 = vst [vmem:[%s135 + $0xe8] sm:$0xff] %v3239
        %4264 = vst [vmem:[%s135 + $0xf0] sm:$0xff] %v3240
        %4265 = vst [vmem:[%s135 + $0xf8] sm:$0xff] %v3241
        %4266 = vst [vmem:[%s135 + $0x100] sm:$0xff] %v3242
        %4267 = vst [vmem:[%s135 + $0x108] sm:$0xff] %v3243
        %4268 = vst [vmem:[%s135 + $0x110] sm:$0xff] %v3244
        %4269 = vst [vmem:[%s135 + $0x118] sm:$0xff] %v3245
        %4270 = vst [vmem:[%s135 + $0x120] sm:$0xff] %v3246
        %4271 = vst [vmem:[%s135 + $0x128] sm:$0xff] %v3247
        %4272 = vst [vmem:[%s135 + $0x130] sm:$0xff] %v3248
        %4273 = vst [vmem:[%s135 + $0x138] sm:$0xff] %v3249
        %4274 = vst [vmem:[%s135 + $0x140] sm:$0xff] %v3250
        %4275 = vst [vmem:[%s135 + $0x148] sm:$0xff] %v3251
        %4276 = vst [vmem:[%s135 + $0x150] sm:$0xff] %v3252
        %4277 = vst [vmem:[%s135 + $0x158] sm:$0xff] %v3253
        %4278 = vst [vmem:[%s135 + $0x160] sm:$0xff] %v3254
        %4279 = vst [vmem:[%s135 + $0x168] sm:$0xff] %v3255
        %4280 = vst [vmem:[%s135 + $0x170] sm:$0xff] %v3256
        %4281 = vst [vmem:[%s135 + $0x178] sm:$0xff] %v3257
        %4282 = vst [vmem:[%s135 + $0x180] sm:$0xff] %v3258
        %4283 = vst [vmem:[%s135 + $0x188] sm:$0xff] %v3259
        %4284 = vst [vmem:[%s135 + $0x190] sm:$0xff] %v3260
        %4285 = vst [vmem:[%s135 + $0x198] sm:$0xff] %v3261
        %4286 = vst [vmem:[%s135 + $0x1a0] sm:$0xff] %v3262
        %4287 = vst [vmem:[%s135 + $0x1a8] sm:$0xff] %v3263
        %4288 = vst [vmem:[%s135 + $0x1b0] sm:$0xff] %v3264
        %4289 = vst [vmem:[%s135 + $0x1b8] sm:$0xff] %v3265
        %4290 = vst [vmem:[%s135 + $0x1c0] sm:$0xff] %v3266
        %4291 = vst [vmem:[%s135 + $0x1c8] sm:$0xff] %v3267
        %4292 = vst [vmem:[%s135 + $0x1d0] sm:$0xff] %v3268
        %4293 = vst [vmem:[%s135 + $0x1d8] sm:$0xff] %v3269
        %4294 = vst [vmem:[%s135 + $0x1e0] sm:$0xff] %v3270
        %4295 = vst [vmem:[%s135 + $0x1e8] sm:$0xff] %v3271
        %4296 = vst [vmem:[%s135 + $0x1f0] sm:$0xff] %v3272
        %4297 = vst [vmem:[%s135 + $0x1f8] sm:$0xff] %v3273
        %4298 = vst [vmem:[%s135 + $0x200] sm:$0xff] %v3274
        %4299 = vst [vmem:[%s135 + $0x208] sm:$0xff] %v3275
        %4300 = vst [vmem:[%s135 + $0x210] sm:$0xff] %v3276
        %4301 = vst [vmem:[%s135 + $0x218] sm:$0xff] %v3277
        %4302 = vst [vmem:[%s135 + $0x220] sm:$0xff] %v3278
        %4303 = vst [vmem:[%s135 + $0x228] sm:$0xff] %v3279
        %4304 = vst [vmem:[%s135 + $0x230] sm:$0xff] %v3280
        %4305 = vst [vmem:[%s135 + $0x238] sm:$0xff] %v3281
        %4306 = vst [vmem:[%s135 + $0x240] sm:$0xff] %v3282
        %4307 = vst [vmem:[%s135 + $0x248] sm:$0xff] %v3283
        %4308 = vst [vmem:[%s135 + $0x250] sm:$0xff] %v3284
        %4309 = vst [vmem:[%s135 + $0x258] sm:$0xff] %v3285
        %4310 = vst [vmem:[%s135 + $0x260] sm:$0xff] %v3286
        %4311 = vst [vmem:[%s135 + $0x268] sm:$0xff] %v3287
        %4312 = vst [vmem:[%s135 + $0x270] sm:$0xff] %v3288
        %4313 = vst [vmem:[%s135 + $0x278] sm:$0xff] %v3289
        %4314 = vst [vmem:[%s135 + $0x280] sm:$0xff] %v3290
        %4315 = vst [vmem:[%s135 + $0x288] sm:$0xff] %v3291
        %4316 = vst [vmem:[%s135 + $0x290] sm:$0xff] %v3292
        %4317 = vst [vmem:[%s135 + $0x298] sm:$0xff] %v3293
        %4318 = vst [vmem:[%s135 + $0x2a0] sm:$0xff] %v3294
        %4319 = vst [vmem:[%s135 + $0x2a8] sm:$0xff] %v3295
        %4320 = vst [vmem:[%s135 + $0x2b0] sm:$0xff] %v3296
        %4321 = vst [vmem:[%s135 + $0x2b8] sm:$0xff] %v3297
        %4322 = vst [vmem:[%s135 + $0x2c0] sm:$0xff] %v3298
        %4323 = vst [vmem:[%s135 + $0x2c8] sm:$0xff] %v3299
        %4324 = vst [vmem:[%s135 + $0x2d0] sm:$0xff] %v3300
        %4325 = vst [vmem:[%s135 + $0x2d8] sm:$0xff] %v3301
        %4326 = vst [vmem:[%s135 + $0x2e0] sm:$0xff] %v3302
        %4327 = vst [vmem:[%s135 + $0x2e8] sm:$0xff] %v3303
        %4328 = vst [vmem:[%s135 + $0x2f0] sm:$0xff] %v3304
        %4329 = vst [vmem:[%s135 + $0x2f8] sm:$0xff] %v3305
        %4330 = vst [vmem:[%s135 + $0x300] sm:$0xff] %v3306
        %4331 = vst [vmem:[%s135 + $0x308] sm:$0xff] %v3307
        %4332 = vst [vmem:[%s135 + $0x310] sm:$0xff] %v3308
        %4333 = vst [vmem:[%s135 + $0x318] sm:$0xff] %v3309
        %4334 = vst [vmem:[%s135 + $0x320] sm:$0xff] %v3310
        %4335 = vst [vmem:[%s135 + $0x328] sm:$0xff] %v3311
        %4336 = vst [vmem:[%s135 + $0x330] sm:$0xff] %v3312
        %4337 = vst [vmem:[%s135 + $0x338] sm:$0xff] %v3313
        %4338 = vst [vmem:[%s135 + $0x340] sm:$0xff] %v3314
        %4339 = vst [vmem:[%s135 + $0x348] sm:$0xff] %v3315
        %4340 = vst [vmem:[%s135 + $0x350] sm:$0xff] %v3316
        %4341 = vst [vmem:[%s135 + $0x358] sm:$0xff] %v3317
        %4342 = vst [vmem:[%s135 + $0x360] sm:$0xff] %v3318
        %4343 = vst [vmem:[%s135 + $0x368] sm:$0xff] %v3319
        %4344 = vst [vmem:[%s135 + $0x370] sm:$0xff] %v3320
        %4345 = vst [vmem:[%s135 + $0x378] sm:$0xff] %v3321
        %4346 = vst [vmem:[%s135 + $0x380] sm:$0xff] %v3322
        %4347 = vst [vmem:[%s135 + $0x388] sm:$0xff] %v3323
        %4348 = vst [vmem:[%s135 + $0x390] sm:$0xff] %v3324
        %4349 = vst [vmem:[%s135 + $0x398] sm:$0xff] %v3325
        %4350 = vst [vmem:[%s135 + $0x3a0] sm:$0xff] %v3326
        %4351 = vst [vmem:[%s135 + $0x3a8] sm:$0xff] %v3327
        %4352 = vst [vmem:[%s135 + $0x3b0] sm:$0xff] %v3328
        %4353 = vst [vmem:[%s135 + $0x3b8] sm:$0xff] %v3329
        %4354 = vst [vmem:[%s135 + $0x3c0] sm:$0xff] %v3330
        %4355 = vst [vmem:[%s135 + $0x3c8] sm:$0xff] %v3331
        %4356 = vst [vmem:[%s135 + $0x3d0] sm:$0xff] %v3332
        %4357 = vst [vmem:[%s135 + $0x3d8] sm:$0xff] %v3333
        %4358 = vst [vmem:[%s135 + $0x3e0] sm:$0xff] %v3334
        %4359 = vst [vmem:[%s135 + $0x3e8] sm:$0xff] %v3335
        %4360 = vst [vmem:[%s135 + $0x3f0] sm:$0xff] %v3336
        %4361 = vst [vmem:[%s135 + $0x3f8] sm:$0xff] %v3337
        %4362 = vst [vmem:[%s135 + $0x400] sm:$0xff] %v3338
        %4363 = vst [vmem:[%s135 + $0x408] sm:$0xff] %v3339
        %4364 = vst [vmem:[%s135 + $0x410] sm:$0xff] %v3340
        %4365 = vst [vmem:[%s135 + $0x418] sm:$0xff] %v3341
        %4366 = vst [vmem:[%s135 + $0x420] sm:$0xff] %v3342
        %4367 = vst [vmem:[%s135 + $0x428] sm:$0xff] %v3343
        %4368 = vst [vmem:[%s135 + $0x430] sm:$0xff] %v3344
        %4369 = vst [vmem:[%s135 + $0x438] sm:$0xff] %v3345
        %4370 = vst [vmem:[%s135 + $0x440] sm:$0xff] %v3346
        %4371 = vst [vmem:[%s135 + $0x448] sm:$0xff] %v3347
        %4372 = vst [vmem:[%s135 + $0x450] sm:$0xff] %v3348
        %4373 = vst [vmem:[%s135 + $0x458] sm:$0xff] %v3349
        %4374 = vst [vmem:[%s135 + $0x460] sm:$0xff] %v3350
        %4375 = vst [vmem:[%s135 + $0x468] sm:$0xff] %v3351
        %4376 = vst [vmem:[%s135 + $0x470] sm:$0xff] %v3352
        %4377 = vst [vmem:[%s135 + $0x478] sm:$0xff] %v3353
        %4378 = vst [vmem:[%s135 + $0x480] sm:$0xff] %v3354
        %4379 = vst [vmem:[%s135 + $0x488] sm:$0xff] %v3355
        %4380 = vst [vmem:[%s135 + $0x490] sm:$0xff] %v3356
        %4381 = vst [vmem:[%s135 + $0x498] sm:$0xff] %v3357
        %4382 = vst [vmem:[%s135 + $0x4a0] sm:$0xff] %v3358
        %4383 = vst [vmem:[%s135 + $0x4a8] sm:$0xff] %v3359
        %4384 = vst [vmem:[%s135 + $0x4b0] sm:$0xff] %v3360
        %4385 = vst [vmem:[%s135 + $0x4b8] sm:$0xff] %v3361
        %4386 = vst [vmem:[%s135 + $0x4c0] sm:$0xff] %v3362
        %4387 = vst [vmem:[%s135 + $0x4c8] sm:$0xff] %v3363
        %4388 = vst [vmem:[%s135 + $0x4d0] sm:$0xff] %v3364
        %4389 = vst [vmem:[%s135 + $0x4d8] sm:$0xff] %v3365
        %4390 = vst [vmem:[%s135 + $0x4e0] sm:$0xff] %v3366
        %4391 = vst [vmem:[%s135 + $0x4e8] sm:$0xff] %v3367
        %4392 = vst [vmem:[%s135 + $0x4f0] sm:$0xff] %v3368
        %4393 = vst [vmem:[%s135 + $0x4f8] sm:$0xff] %v3369
        %4394 = vst [vmem:[%s135 + $0x500] sm:$0xff] %v3370
        %4395 = vst [vmem:[%s135 + $0x508] sm:$0xff] %v3371
        %4396 = vst [vmem:[%s135 + $0x510] sm:$0xff] %v3372
        %4397 = vst [vmem:[%s135 + $0x518] sm:$0xff] %v3373
        %4398 = vst [vmem:[%s135 + $0x520] sm:$0xff] %v3374
        %4399 = vst [vmem:[%s135 + $0x528] sm:$0xff] %v3375
        %4400 = vst [vmem:[%s135 + $0x530] sm:$0xff] %v3376
        %4401 = vst [vmem:[%s135 + $0x538] sm:$0xff] %v3377
        %4402 = vst [vmem:[%s135 + $0x540] sm:$0xff] %v3378
        %4403 = vst [vmem:[%s135 + $0x548] sm:$0xff] %v3379
        %4404 = vst [vmem:[%s135 + $0x550] sm:$0xff] %v3380
        %4405 = vst [vmem:[%s135 + $0x558] sm:$0xff] %v3381
        %4406 = vst [vmem:[%s135 + $0x560] sm:$0xff] %v3382
        %4407 = vst [vmem:[%s135 + $0x568] sm:$0xff] %v3383
        %4408 = vst [vmem:[%s135 + $0x570] sm:$0xff] %v3384
        %4409 = vst [vmem:[%s135 + $0x578] sm:$0xff] %v3385
        %4410 = vst [vmem:[%s135 + $0x580] sm:$0xff] %v3386
        %4411 = vst [vmem:[%s135 + $0x588] sm:$0xff] %v3387
        %4412 = vst [vmem:[%s135 + $0x590] sm:$0xff] %v3388
        %4413 = vst [vmem:[%s135 + $0x598] sm:$0xff] %v3389
        %4414 = vst [vmem:[%s135 + $0x5a0] sm:$0xff] %v3390
        %4415 = vst [vmem:[%s135 + $0x5a8] sm:$0xff] %v3391
        %4416 = vst [vmem:[%s135 + $0x5b0] sm:$0xff] %v3392
        %4417 = vst [vmem:[%s135 + $0x5b8] sm:$0xff] %v3393
        %4418 = vst [vmem:[%s135 + $0x5c0] sm:$0xff] %v3394
        %4419 = vst [vmem:[%s135 + $0x5c8] sm:$0xff] %v3395
        %4420 = vst [vmem:[%s135 + $0x5d0] sm:$0xff] %v3396
        %4421 = vst [vmem:[%s135 + $0x5d8] sm:$0xff] %v3397
        %4422 = vst [vmem:[%s135 + $0x5e0] sm:$0xff] %v3398
        %4423 = vst [vmem:[%s135 + $0x5e8] sm:$0xff] %v3399
        %4424 = vst [vmem:[%s135 + $0x5f0] sm:$0xff] %v3400
        %4425 = vst [vmem:[%s135 + $0x5f8] sm:$0xff] %v3401
        %4426 = vst [vmem:[%s135 + $0x600] sm:$0xff] %v3402
        %4427 = vst [vmem:[%s135 + $0x608] sm:$0xff] %v3403
        %4428 = vst [vmem:[%s135 + $0x610] sm:$0xff] %v3404
        %4429 = vst [vmem:[%s135 + $0x618] sm:$0xff] %v3405
        %4430 = vst [vmem:[%s135 + $0x620] sm:$0xff] %v3406
        %4431 = vst [vmem:[%s135 + $0x628] sm:$0xff] %v3407
        %4432 = vst [vmem:[%s135 + $0x630] sm:$0xff] %v3408
        %4433 = vst [vmem:[%s135 + $0x638] sm:$0xff] %v3409
        %4434 = vst [vmem:[%s135 + $0x640] sm:$0xff] %v3410
        %4435 = vst [vmem:[%s135 + $0x648] sm:$0xff] %v3411
        %4436 = vst [vmem:[%s135 + $0x650] sm:$0xff] %v3412
        %4437 = vst [vmem:[%s135 + $0x658] sm:$0xff] %v3413
        %4438 = vst [vmem:[%s135 + $0x660] sm:$0xff] %v3414
        %4439 = vst [vmem:[%s135 + $0x668] sm:$0xff] %v3415
        %4440 = vst [vmem:[%s135 + $0x670] sm:$0xff] %v3416
        %4441 = vst [vmem:[%s135 + $0x678] sm:$0xff] %v3417
        %4442 = vst [vmem:[%s135 + $0x680] sm:$0xff] %v3418
        %4443 = vst [vmem:[%s135 + $0x688] sm:$0xff] %v3419
        %4444 = vst [vmem:[%s135 + $0x690] sm:$0xff] %v3420
        %4445 = vst [vmem:[%s135 + $0x698] sm:$0xff] %v3421
        %4446 = vst [vmem:[%s135 + $0x6a0] sm:$0xff] %v3422
        %4447 = vst [vmem:[%s135 + $0x6a8] sm:$0xff] %v3423
        %4448 = vst [vmem:[%s135 + $0x6b0] sm:$0xff] %v3424
        %4449 = vst [vmem:[%s135 + $0x6b8] sm:$0xff] %v3425
        %4450 = vst [vmem:[%s135 + $0x6c0] sm:$0xff] %v3426
        %4451 = vst [vmem:[%s135 + $0x6c8] sm:$0xff] %v3427
        %4452 = vst [vmem:[%s135 + $0x6d0] sm:$0xff] %v3428
        %4453 = vst [vmem:[%s135 + $0x6d8] sm:$0xff] %v3429
        %4454 = vst [vmem:[%s135 + $0x6e0] sm:$0xff] %v3430
        %4455 = vst [vmem:[%s135 + $0x6e8] sm:$0xff] %v3431
        %4456 = vst [vmem:[%s135 + $0x6f0] sm:$0xff] %v3432
        %4457 = vst [vmem:[%s135 + $0x6f8] sm:$0xff] %v3433
        %4458 = vst [vmem:[%s135 + $0x700] sm:$0xff] %v3434
        %4459 = vst [vmem:[%s135 + $0x708] sm:$0xff] %v3435
        %4460 = vst [vmem:[%s135 + $0x710] sm:$0xff] %v3436
        %4461 = vst [vmem:[%s135 + $0x718] sm:$0xff] %v3437
        %4462 = vst [vmem:[%s135 + $0x720] sm:$0xff] %v3438
        %4463 = vst [vmem:[%s135 + $0x728] sm:$0xff] %v3439
        %4464 = vst [vmem:[%s135 + $0x730] sm:$0xff] %v3440
        %4465 = vst [vmem:[%s135 + $0x738] sm:$0xff] %v3441
        %4466 = vst [vmem:[%s135 + $0x740] sm:$0xff] %v3442
        %4467 = vst [vmem:[%s135 + $0x748] sm:$0xff] %v3443
        %4468 = vst [vmem:[%s135 + $0x750] sm:$0xff] %v3444
        %4469 = vst [vmem:[%s135 + $0x758] sm:$0xff] %v3445
        %4470 = vst [vmem:[%s135 + $0x760] sm:$0xff] %v3446
        %4471 = vst [vmem:[%s135 + $0x768] sm:$0xff] %v3447
        %4472 = vst [vmem:[%s135 + $0x770] sm:$0xff] %v3448
        %4473 = vst [vmem:[%s135 + $0x778] sm:$0xff] %v3449
        %4474 = vst [vmem:[%s135 + $0x780] sm:$0xff] %v3450
        %4475 = vst [vmem:[%s135 + $0x788] sm:$0xff] %v3451
        %4476 = vst [vmem:[%s135 + $0x790] sm:$0xff] %v3452
        %4477 = vst [vmem:[%s135 + $0x798] sm:$0xff] %v3453
        %4478 = vst [vmem:[%s135 + $0x7a0] sm:$0xff] %v3454
        %4479 = vst [vmem:[%s135 + $0x7a8] sm:$0xff] %v3455
        %4480 = vst [vmem:[%s135 + $0x7b0] sm:$0xff] %v3456
        %4481 = vst [vmem:[%s135 + $0x7b8] sm:$0xff] %v3457
        %4482 = vst [vmem:[%s135 + $0x7c0] sm:$0xff] %v3458
        %4483 = vst [vmem:[%s135 + $0x7c8] sm:$0xff] %v3459
        %4484 = vst [vmem:[%s135 + $0x7d0] sm:$0xff] %v3460
        %4485 = vst [vmem:[%s135 + $0x7d8] sm:$0xff] %v3461
        %4486 = vst [vmem:[%s135 + $0x7e0] sm:$0xff] %v3462
        %4487 = vst [vmem:[%s135 + $0x7e8] sm:$0xff] %v3463
        %4488 = vst [vmem:[%s135 + $0x7f0] sm:$0xff] %v3464
        %4489 = vst [vmem:[%s135 + $0x7f8] sm:$0xff] %v3465
        %4490 = vst [vmem:[%s135 + $0x800] sm:$0xff] %v3466
        %4491 = vst [vmem:[%s135 + $0x808] sm:$0xff] %v3467
        %4492 = vst [vmem:[%s135 + $0x810] sm:$0xff] %v3468
        %4493 = vst [vmem:[%s135 + $0x818] sm:$0xff] %v3469
        %4494 = vst [vmem:[%s135 + $0x820] sm:$0xff] %v3470
        %4495 = vst [vmem:[%s135 + $0x828] sm:$0xff] %v3471
        %4496 = vst [vmem:[%s135 + $0x830] sm:$0xff] %v3472
        %4497 = vst [vmem:[%s135 + $0x838] sm:$0xff] %v3473
        %4498 = vst [vmem:[%s135 + $0x840] sm:$0xff] %v3474
        %4499 = vst [vmem:[%s135 + $0x848] sm:$0xff] %v3475
        %4500 = vst [vmem:[%s135 + $0x850] sm:$0xff] %v3476
        %4501 = vst [vmem:[%s135 + $0x858] sm:$0xff] %v3477
        %4502 = vst [vmem:[%s135 + $0x860] sm:$0xff] %v3478
        %4503 = vst [vmem:[%s135 + $0x868] sm:$0xff] %v3479
        %4504 = vst [vmem:[%s135 + $0x870] sm:$0xff] %v3480
        %4505 = vst [vmem:[%s135 + $0x878] sm:$0xff] %v3481
        %4506 = vst [vmem:[%s135 + $0x880] sm:$0xff] %v3482
        %4507 = vst [vmem:[%s135 + $0x888] sm:$0xff] %v3483
        %4508 = vst [vmem:[%s135 + $0x890] sm:$0xff] %v3484
        %4509 = vst [vmem:[%s135 + $0x898] sm:$0xff] %v3485
        %4510 = vst [vmem:[%s135 + $0x8a0] sm:$0xff] %v3486
        %4511 = vst [vmem:[%s135 + $0x8a8] sm:$0xff] %v3487
        %4512 = vst [vmem:[%s135 + $0x8b0] sm:$0xff] %v3488
        %4513 = vst [vmem:[%s135 + $0x8b8] sm:$0xff] %v3489
        %4514 = vst [vmem:[%s135 + $0x8c0] sm:$0xff] %v3490
        %4515 = vst [vmem:[%s135 + $0x8c8] sm:$0xff] %v3491
        %4516 = vst [vmem:[%s135 + $0x8d0] sm:$0xff] %v3492
        %4517 = vst [vmem:[%s135 + $0x8d8] sm:$0xff] %v3493
        %4518 = vst [vmem:[%s135 + $0x8e0] sm:$0xff] %v3494
        %4519 = vst [vmem:[%s135 + $0x8e8] sm:$0xff] %v3495
        %4520 = vst [vmem:[%s135 + $0x8f0] sm:$0xff] %v3496
        %4521 = vst [vmem:[%s135 + $0x8f8] sm:$0xff] %v3497
        %4522 = vst [vmem:[%s135 + $0x900] sm:$0xff] %v3498
        %4523 = vst [vmem:[%s135 + $0x908] sm:$0xff] %v3499
        %4524 = vst [vmem:[%s135 + $0x910] sm:$0xff] %v3500
        %4525 = vst [vmem:[%s135 + $0x918] sm:$0xff] %v3501
        %4526 = vst [vmem:[%s135 + $0x920] sm:$0xff] %v3502
        %4527 = vst [vmem:[%s135 + $0x928] sm:$0xff] %v3503
        %4528 = vst [vmem:[%s135 + $0x930] sm:$0xff] %v3504
        %4529 = vst [vmem:[%s135 + $0x938] sm:$0xff] %v3505
        %4530 = vst [vmem:[%s135 + $0x940] sm:$0xff] %v3506
        %4531 = vst [vmem:[%s135 + $0x948] sm:$0xff] %v3507
        %4532 = vst [vmem:[%s135 + $0x950] sm:$0xff] %v3508
        %4533 = vst [vmem:[%s135 + $0x958] sm:$0xff] %v3509
        %4534 = vst [vmem:[%s135 + $0x960] sm:$0xff] %v3510
        %4535 = vst [vmem:[%s135 + $0x968] sm:$0xff] %v3511
        %4536 = vst [vmem:[%s135 + $0x970] sm:$0xff] %v3512
        %4537 = vst [vmem:[%s135 + $0x978] sm:$0xff] %v3513
        %4538 = vst [vmem:[%s135 + $0x980] sm:$0xff] %v3514
        %4539 = vst [vmem:[%s135 + $0x988] sm:$0xff] %v3515
        %4540 = vst [vmem:[%s135 + $0x990] sm:$0xff] %v3516
        %4541 = vst [vmem:[%s135 + $0x998] sm:$0xff] %v3517
        %4542 = vst [vmem:[%s135 + $0x9a0] sm:$0xff] %v3518
        %4543 = vst [vmem:[%s135 + $0x9a8] sm:$0xff] %v3519
        %4544 = vst [vmem:[%s135 + $0x9b0] sm:$0xff] %v3520
        %4545 = vst [vmem:[%s135 + $0x9b8] sm:$0xff] %v3521
        %4546 = vst [vmem:[%s135 + $0x9c0] sm:$0xff] %v3522
        %4547 = vst [vmem:[%s135 + $0x9c8] sm:$0xff] %v3523
        %4548 = vst [vmem:[%s135 + $0x9d0] sm:$0xff] %v3524
        %4549 = vst [vmem:[%s135 + $0x9d8] sm:$0xff] %v3525
        %4550 = vst [vmem:[%s135 + $0x9e0] sm:$0xff] %v3526
        %4551 = vst [vmem:[%s135 + $0x9e8] sm:$0xff] %v3527
        %4552 = vst [vmem:[%s135 + $0x9f0] sm:$0xff] %v3528
        %4553 = vst [vmem:[%s135 + $0x9f8] sm:$0xff] %v3529
        %4554 = vst [vmem:[%s135 + $0xa00] sm:$0xff] %v3530
        %4555 = vst [vmem:[%s135 + $0xa08] sm:$0xff] %v3531
        %4556 = vst [vmem:[%s135 + $0xa10] sm:$0xff] %v3532
        %4557 = vst [vmem:[%s135 + $0xa18] sm:$0xff] %v3533
        %4558 = vst [vmem:[%s135 + $0xa20] sm:$0xff] %v3534
        %4559 = vst [vmem:[%s135 + $0xa28] sm:$0xff] %v3535
        %4560 = vst [vmem:[%s135 + $0xa30] sm:$0xff] %v3536
        %4561 = vst [vmem:[%s135 + $0xa38] sm:$0xff] %v3537
        %4562 = vst [vmem:[%s135 + $0xa40] sm:$0xff] %v3538
        %4563 = vst [vmem:[%s135 + $0xa48] sm:$0xff] %v3539
        %4564 = vst [vmem:[%s135 + $0xa50] sm:$0xff] %v3540
        %4565 = vst [vmem:[%s135 + $0xa58] sm:$0xff] %v3541
        %4566 = vst [vmem:[%s135 + $0xa60] sm:$0xff] %v3542
        %4567 = vst [vmem:[%s135 + $0xa68] sm:$0xff] %v3543
        %4568 = vst [vmem:[%s135 + $0xa70] sm:$0xff] %v3544
        %4569 = vst [vmem:[%s135 + $0xa78] sm:$0xff] %v3545
        %4570 = vst [vmem:[%s135 + $0xa80] sm:$0xff] %v3546
        %4571 = vst [vmem:[%s135 + $0xa88] sm:$0xff] %v3547
        %4572 = vst [vmem:[%s135 + $0xa90] sm:$0xff] %v3548
        %4573 = vst [vmem:[%s135 + $0xa98] sm:$0xff] %v3549
        %4574 = vst [vmem:[%s135 + $0xaa0] sm:$0xff] %v3550
        %4575 = vst [vmem:[%s135 + $0xaa8] sm:$0xff] %v3551
        %4576 = vst [vmem:[%s135 + $0xab0] sm:$0xff] %v3552
        %4577 = vst [vmem:[%s135 + $0xab8] sm:$0xff] %v3553
        %4578 = vst [vmem:[%s135 + $0xac0] sm:$0xff] %v3554
        %4579 = vst [vmem:[%s135 + $0xac8] sm:$0xff] %v3555
        %4580 = vst [vmem:[%s135 + $0xad0] sm:$0xff] %v3556
        %4581 = vst [vmem:[%s135 + $0xad8] sm:$0xff] %v3557
        %4582 = vst [vmem:[%s135 + $0xae0] sm:$0xff] %v3558
        %4583 = vst [vmem:[%s135 + $0xae8] sm:$0xff] %v3559
        %4584 = vst [vmem:[%s135 + $0xaf0] sm:$0xff] %v3560
        %4585 = vst [vmem:[%s135 + $0xaf8] sm:$0xff] %v3561
        %4586 = vst [vmem:[%s135 + $0xb00] sm:$0xff] %v3562
        %4587 = vst [vmem:[%s135 + $0xb08] sm:$0xff] %v3563
        %4588 = vst [vmem:[%s135 + $0xb10] sm:$0xff] %v3564
        %4589 = vst [vmem:[%s135 + $0xb18] sm:$0xff] %v3565
        %4590 = vst [vmem:[%s135 + $0xb20] sm:$0xff] %v3566
        %4591 = vst [vmem:[%s135 + $0xb28] sm:$0xff] %v3567
        %4592 = vst [vmem:[%s135 + $0xb30] sm:$0xff] %v3568
        %4593 = vst [vmem:[%s135 + $0xb38] sm:$0xff] %v3569
        %4594 = vst [vmem:[%s135 + $0xb40] sm:$0xff] %v3570
        %4595 = vst [vmem:[%s135 + $0xb48] sm:$0xff] %v3571
        %4596 = vst [vmem:[%s135 + $0xb50] sm:$0xff] %v3572
        %4597 = vst [vmem:[%s135 + $0xb58] sm:$0xff] %v3573
        %4598 = vst [vmem:[%s135 + $0xb60] sm:$0xff] %v3574
        %4599 = vst [vmem:[%s135 + $0xb68] sm:$0xff] %v3575
        %4600 = vst [vmem:[%s135 + $0xb70] sm:$0xff] %v3576
        %4601 = vst [vmem:[%s135 + $0xb78] sm:$0xff] %v3577
        %4602 = vst [vmem:[%s135 + $0xb80] sm:$0xff] %v3578
        %4603 = vst [vmem:[%s135 + $0xb88] sm:$0xff] %v3579
        %4604 = vst [vmem:[%s135 + $0xb90] sm:$0xff] %v3580
        %4605 = vst [vmem:[%s135 + $0xb98] sm:$0xff] %v3581
        %4606 = vst [vmem:[%s135 + $0xba0] sm:$0xff] %v3582
        %4607 = vst [vmem:[%s135 + $0xba8] sm:$0xff] %v3583
        %4608 = vst [vmem:[%s135 + $0xbb0] sm:$0xff] %v3584
        %4609 = vst [vmem:[%s135 + $0xbb8] sm:$0xff] %v3585
        %4610 = vst [vmem:[%s135 + $0xbc0] sm:$0xff] %v3586
        %4611 = vst [vmem:[%s135 + $0xbc8] sm:$0xff] %v3587
        %4612 = vst [vmem:[%s135 + $0xbd0] sm:$0xff] %v3588
        %4613 = vst [vmem:[%s135 + $0xbd8] sm:$0xff] %v3589
        %4614 = vst [vmem:[%s135 + $0xbe0] sm:$0xff] %v3590
        %4615 = vst [vmem:[%s135 + $0xbe8] sm:$0xff] %v3591
        %4616 = vst [vmem:[%s135 + $0xbf0] sm:$0xff] %v3592
        %4617 = vst [vmem:[%s135 + $0xbf8] sm:$0xff] %v3593
        %4618 = vst [vmem:[%s135 + $0xc00] sm:$0xff] %v3594
        %4619 = vst [vmem:[%s135 + $0xc08] sm:$0xff] %v3595
        %4620 = vst [vmem:[%s135 + $0xc10] sm:$0xff] %v3596
        %4621 = vst [vmem:[%s135 + $0xc18] sm:$0xff] %v3597
        %4622 = vst [vmem:[%s135 + $0xc20] sm:$0xff] %v3598
        %4623 = vst [vmem:[%s135 + $0xc28] sm:$0xff] %v3599
        %4624 = vst [vmem:[%s135 + $0xc30] sm:$0xff] %v3600
        %4625 = vst [vmem:[%s135 + $0xc38] sm:$0xff] %v3601
        %4626 = vst [vmem:[%s135 + $0xc40] sm:$0xff] %v3602
        %4627 = vst [vmem:[%s135 + $0xc48] sm:$0xff] %v3603
        %4628 = vst [vmem:[%s135 + $0xc50] sm:$0xff] %v3604
        %4629 = vst [vmem:[%s135 + $0xc58] sm:$0xff] %v3605
        %4630 = vst [vmem:[%s135 + $0xc60] sm:$0xff] %v3606
        %4631 = vst [vmem:[%s135 + $0xc68] sm:$0xff] %v3607
        %4632 = vst [vmem:[%s135 + $0xc70] sm:$0xff] %v3608
        %4633 = vst [vmem:[%s135 + $0xc78] sm:$0xff] %v3609
        %4634 = vst [vmem:[%s135 + $0xc80] sm:$0xff] %v3610
        %4635 = vst [vmem:[%s135 + $0xc88] sm:$0xff] %v3611
        %4636 = vst [vmem:[%s135 + $0xc90] sm:$0xff] %v3612
        %4637 = vst [vmem:[%s135 + $0xc98] sm:$0xff] %v3613
        %4638 = vst [vmem:[%s135 + $0xca0] sm:$0xff] %v3614
        %4639 = vst [vmem:[%s135 + $0xca8] sm:$0xff] %v3615
        %4640 = vst [vmem:[%s135 + $0xcb0] sm:$0xff] %v3616
        %4641 = vst [vmem:[%s135 + $0xcb8] sm:$0xff] %v3617
        %4642 = vst [vmem:[%s135 + $0xcc0] sm:$0xff] %v3618
        %4643 = vst [vmem:[%s135 + $0xcc8] sm:$0xff] %v3619
        %4644 = vst [vmem:[%s135 + $0xcd0] sm:$0xff] %v3620
        %4645 = vst [vmem:[%s135 + $0xcd8] sm:$0xff] %v3621
        %4646 = vst [vmem:[%s135 + $0xce0] sm:$0xff] %v3622
        %4647 = vst [vmem:[%s135 + $0xce8] sm:$0xff] %v3623
        %4648 = vst [vmem:[%s135 + $0xcf0] sm:$0xff] %v3624
        %4649 = vst [vmem:[%s135 + $0xcf8] sm:$0xff] %v3625
        %4650 = vst [vmem:[%s135 + $0xd00] sm:$0xff] %v3626
        %4651 = vst [vmem:[%s135 + $0xd08] sm:$0xff] %v3627
        %4652 = vst [vmem:[%s135 + $0xd10] sm:$0xff] %v3628
        %4653 = vst [vmem:[%s135 + $0xd18] sm:$0xff] %v3629
        %4654 = vst [vmem:[%s135 + $0xd20] sm:$0xff] %v3630
        %4655 = vst [vmem:[%s135 + $0xd28] sm:$0xff] %v3631
        %4656 = vst [vmem:[%s135 + $0xd30] sm:$0xff] %v3632
        %4657 = vst [vmem:[%s135 + $0xd38] sm:$0xff] %v3633
        %4658 = vst [vmem:[%s135 + $0xd40] sm:$0xff] %v3634
        %4659 = vst [vmem:[%s135 + $0xd48] sm:$0xff] %v3635
        %4660 = vst [vmem:[%s135 + $0xd50] sm:$0xff] %v3636
        %4661 = vst [vmem:[%s135 + $0xd58] sm:$0xff] %v3637
        %4662 = vst [vmem:[%s135 + $0xd60] sm:$0xff] %v3638
        %4663 = vst [vmem:[%s135 + $0xd68] sm:$0xff] %v3639
        %4664 = vst [vmem:[%s135 + $0xd70] sm:$0xff] %v3640
        %4665 = vst [vmem:[%s135 + $0xd78] sm:$0xff] %v3641
        %4666 = vst [vmem:[%s135 + $0xd80] sm:$0xff] %v3642
        %4667 = vst [vmem:[%s135 + $0xd88] sm:$0xff] %v3643
        %4668 = vst [vmem:[%s135 + $0xd90] sm:$0xff] %v3644
        %4669 = vst [vmem:[%s135 + $0xd98] sm:$0xff] %v3645
        %4670 = vst [vmem:[%s135 + $0xda0] sm:$0xff] %v3646
        %4671 = vst [vmem:[%s135 + $0xda8] sm:$0xff] %v3647
        %4672 = vst [vmem:[%s135 + $0xdb0] sm:$0xff] %v3648
        %4673 = vst [vmem:[%s135 + $0xdb8] sm:$0xff] %v3649
        %4674 = vst [vmem:[%s135 + $0xdc0] sm:$0xff] %v3650
        %4675 = vst [vmem:[%s135 + $0xdc8] sm:$0xff] %v3651
        %4676 = vst [vmem:[%s135 + $0xdd0] sm:$0xff] %v3652
        %4677 = vst [vmem:[%s135 + $0xdd8] sm:$0xff] %v3653
        %4678 = vst [vmem:[%s135 + $0xde0] sm:$0xff] %v3654
        %4679 = vst [vmem:[%s135 + $0xde8] sm:$0xff] %v3655
        %4680 = vst [vmem:[%s135 + $0xdf0] sm:$0xff] %v3656
        %4681 = vst [vmem:[%s135 + $0xdf8] sm:$0xff] %v3657
        %4682 = vst [vmem:[%s135 + $0xe00] sm:$0xff] %v3658
        %4683 = vst [vmem:[%s135 + $0xe08] sm:$0xff] %v3659
        %4684 = vst [vmem:[%s135 + $0xe10] sm:$0xff] %v3660
        %4685 = vst [vmem:[%s135 + $0xe18] sm:$0xff] %v3661
        %4686 = vst [vmem:[%s135 + $0xe20] sm:$0xff] %v3662
        %4687 = vst [vmem:[%s135 + $0xe28] sm:$0xff] %v3663
        %4688 = vst [vmem:[%s135 + $0xe30] sm:$0xff] %v3664
        %4689 = vst [vmem:[%s135 + $0xe38] sm:$0xff] %v3665
        %4690 = vst [vmem:[%s135 + $0xe40] sm:$0xff] %v3666
        %4691 = vst [vmem:[%s135 + $0xe48] sm:$0xff] %v3667
        %4692 = vst [vmem:[%s135 + $0xe50] sm:$0xff] %v3668
        %4693 = vst [vmem:[%s135 + $0xe58] sm:$0xff] %v3669
        %4694 = vst [vmem:[%s135 + $0xe60] sm:$0xff] %v3670
        %4695 = vst [vmem:[%s135 + $0xe68] sm:$0xff] %v3671
        %4696 = vst [vmem:[%s135 + $0xe70] sm:$0xff] %v3672
        %4697 = vst [vmem:[%s135 + $0xe78] sm:$0xff] %v3673
        %4698 = vst [vmem:[%s135 + $0xe80] sm:$0xff] %v3674
        %4699 = vst [vmem:[%s135 + $0xe88] sm:$0xff] %v3675
        %4700 = vst [vmem:[%s135 + $0xe90] sm:$0xff] %v3676
        %4701 = vst [vmem:[%s135 + $0xe98] sm:$0xff] %v3677
        %4702 = vst [vmem:[%s135 + $0xea0] sm:$0xff] %v3678
        %4703 = vst [vmem:[%s135 + $0xea8] sm:$0xff] %v3679
        %4704 = vst [vmem:[%s135 + $0xeb0] sm:$0xff] %v3680
        %4705 = vst [vmem:[%s135 + $0xeb8] sm:$0xff] %v3681
        %4706 = vst [vmem:[%s135 + $0xec0] sm:$0xff] %v3682
        %4707 = vst [vmem:[%s135 + $0xec8] sm:$0xff] %v3683
        %4708 = vst [vmem:[%s135 + $0xed0] sm:$0xff] %v3684
        %4709 = vst [vmem:[%s135 + $0xed8] sm:$0xff] %v3685
        %4710 = vst [vmem:[%s135 + $0xee0] sm:$0xff] %v3686
        %4711 = vst [vmem:[%s135 + $0xee8] sm:$0xff] %v3687
        %4712 = vst [vmem:[%s135 + $0xef0] sm:$0xff] %v3688
        %4713 = vst [vmem:[%s135 + $0xef8] sm:$0xff] %v3689
        %4714 = vst [vmem:[%s135 + $0xf00] sm:$0xff] %v3690
        %4715 = vst [vmem:[%s135 + $0xf08] sm:$0xff] %v3691
        %4716 = vst [vmem:[%s135 + $0xf10] sm:$0xff] %v3692
        %4717 = vst [vmem:[%s135 + $0xf18] sm:$0xff] %v3693
        %4718 = vst [vmem:[%s135 + $0xf20] sm:$0xff] %v3694
        %4719 = vst [vmem:[%s135 + $0xf28] sm:$0xff] %v3695
        %4720 = vst [vmem:[%s135 + $0xf30] sm:$0xff] %v3696
        %4721 = vst [vmem:[%s135 + $0xf38] sm:$0xff] %v3697
        %4722 = vst [vmem:[%s135 + $0xf40] sm:$0xff] %v3698
        %4723 = vst [vmem:[%s135 + $0xf48] sm:$0xff] %v3699
        %4724 = vst [vmem:[%s135 + $0xf50] sm:$0xff] %v3700
        %4725 = vst [vmem:[%s135 + $0xf58] sm:$0xff] %v3701
        %4726 = vst [vmem:[%s135 + $0xf60] sm:$0xff] %v3702
        %4727 = vst [vmem:[%s135 + $0xf68] sm:$0xff] %v3703
        %4728 = vst [vmem:[%s135 + $0xf70] sm:$0xff] %v3704
        %4729 = vst [vmem:[%s135 + $0xf78] sm:$0xff] %v3705
        %4730 = vst [vmem:[%s135 + $0xf80] sm:$0xff] %v3706
        %4731 = vst [vmem:[%s135 + $0xf88] sm:$0xff] %v3707
        %4732 = vst [vmem:[%s135 + $0xf90] sm:$0xff] %v3708
        %4733 = vst [vmem:[%s135 + $0xf98] sm:$0xff] %v3709
        %4734 = vst [vmem:[%s135 + $0xfa0] sm:$0xff] %v3710
        %4735 = vst [vmem:[%s135 + $0xfa8] sm:$0xff] %v3711
        %4736 = vst [vmem:[%s135 + $0xfb0] sm:$0xff] %v3712
        %4737 = vst [vmem:[%s135 + $0xfb8] sm:$0xff] %v3713
        %4738 = vst [vmem:[%s135 + $0xfc0] sm:$0xff] %v3714
        %4739 = vst [vmem:[%s135 + $0xfc8] sm:$0xff] %v3715
        %4740 = vst [vmem:[%s135 + $0xfd0] sm:$0xff] %v3716
        %4741 = vst [vmem:[%s135 + $0xfd8] sm:$0xff] %v3717
        %4742 = vst [vmem:[%s135 + $0xfe0] sm:$0xff] %v3718
        %4743 = vst [vmem:[%s135 + $0xfe8] sm:$0xff] %v3719
        %4744 = vst [vmem:[%s135 + $0xff0] sm:$0xff] %v3720
        %4745 = vst [vmem:[%s135 + $0xff8] sm:$0xff] %v3721
        %4746 = vst [vmem:[%s135 + $0x1000] sm:$0xff] %v3722
        %4747 = vst [vmem:[%s135 + $0x1008] sm:$0xff] %v3723
        %4748 = vst [vmem:[%s135 + $0x1010] sm:$0xff] %v3724
        %4749 = vst [vmem:[%s135 + $0x1018] sm:$0xff] %v3725
        %4750 = vst [vmem:[%s135 + $0x1020] sm:$0xff] %v3726
        %4751 = vst [vmem:[%s135 + $0x1028] sm:$0xff] %v3727
        %4752 = vst [vmem:[%s135 + $0x1030] sm:$0xff] %v3728
        %4753 = vst [vmem:[%s135 + $0x1038] sm:$0xff] %v3729
        %4754 = vst [vmem:[%s135 + $0x1040] sm:$0xff] %v3730
        %4755 = vst [vmem:[%s135 + $0x1048] sm:$0xff] %v3731
        %4756 = vst [vmem:[%s135 + $0x1050] sm:$0xff] %v3732
        %4757 = vst [vmem:[%s135 + $0x1058] sm:$0xff] %v3733
        %4758 = vst [vmem:[%s135 + $0x1060] sm:$0xff] %v3734
        %4759 = vst [vmem:[%s135 + $0x1068] sm:$0xff] %v3735
        %4760 = vst [vmem:[%s135 + $0x1070] sm:$0xff] %v3736
        %4761 = vst [vmem:[%s135 + $0x1078] sm:$0xff] %v3737
        %4762 = vst [vmem:[%s135 + $0x1080] sm:$0xff] %v3738
        %4763 = vst [vmem:[%s135 + $0x1088] sm:$0xff] %v3739
        %4764 = vst [vmem:[%s135 + $0x1090] sm:$0xff] %v3740
        %4765 = vst [vmem:[%s135 + $0x1098] sm:$0xff] %v3741
        %4766 = vst [vmem:[%s135 + $0x10a0] sm:$0xff] %v3742
        %4767 = vst [vmem:[%s135 + $0x10a8] sm:$0xff] %v3743
        %4768 = vst [vmem:[%s135 + $0x10b0] sm:$0xff] %v3744
        %4769 = vst [vmem:[%s135 + $0x10b8] sm:$0xff] %v3745
        %4770 = vst [vmem:[%s135 + $0x10c0] sm:$0xff] %v3746
        %4771 = vst [vmem:[%s135 + $0x10c8] sm:$0xff] %v3747
        %4772 = vst [vmem:[%s135 + $0x10d0] sm:$0xff] %v3748
        %4773 = vst [vmem:[%s135 + $0x10d8] sm:$0xff] %v3749
        %4774 = vst [vmem:[%s135 + $0x10e0] sm:$0xff] %v3750
        %4775 = vst [vmem:[%s135 + $0x10e8] sm:$0xff] %v3751
        %4776 = vst [vmem:[%s135 + $0x10f0] sm:$0xff] %v3752
        %4777 = vst [vmem:[%s135 + $0x10f8] sm:$0xff] %v3753
        %4778 = vst [vmem:[%s135 + $0x1100] sm:$0xff] %v3754
        %4779 = vst [vmem:[%s135 + $0x1108] sm:$0xff] %v3755
        %4780 = vst [vmem:[%s135 + $0x1110] sm:$0xff] %v3756
        %4781 = vst [vmem:[%s135 + $0x1118] sm:$0xff] %v3757
        %4782 = vst [vmem:[%s135 + $0x1120] sm:$0xff] %v3758
        %4783 = vst [vmem:[%s135 + $0x1128] sm:$0xff] %v3759
        %4784 = vst [vmem:[%s135 + $0x1130] sm:$0xff] %v3760
        %4785 = vst [vmem:[%s135 + $0x1138] sm:$0xff] %v3761
        %4786 = vst [vmem:[%s135 + $0x1140] sm:$0xff] %v3762
        %4787 = vst [vmem:[%s135 + $0x1148] sm:$0xff] %v3763
        %4788 = vst [vmem:[%s135 + $0x1150] sm:$0xff] %v3764
        %4789 = vst [vmem:[%s135 + $0x1158] sm:$0xff] %v3765
        %4790 = vst [vmem:[%s135 + $0x1160] sm:$0xff] %v3766
        %4791 = vst [vmem:[%s135 + $0x1168] sm:$0xff] %v3767
        %4792 = vst [vmem:[%s135 + $0x1170] sm:$0xff] %v3768
        %4793 = vst [vmem:[%s135 + $0x1178] sm:$0xff] %v3769
        %4794 = vst [vmem:[%s135 + $0x1180] sm:$0xff] %v3770
        %4795 = vst [vmem:[%s135 + $0x1188] sm:$0xff] %v3771
        %4796 = vst [vmem:[%s135 + $0x1190] sm:$0xff] %v3772
        %4797 = vst [vmem:[%s135 + $0x1198] sm:$0xff] %v3773
        %4798 = vst [vmem:[%s135 + $0x11a0] sm:$0xff] %v3774
        %4799 = vst [vmem:[%s135 + $0x11a8] sm:$0xff] %v3775
        %4800 = vst [vmem:[%s135 + $0x11b0] sm:$0xff] %v3776
        %4801 = vst [vmem:[%s135 + $0x11b8] sm:$0xff] %v3777
        %4802 = vst [vmem:[%s135 + $0x11c0] sm:$0xff] %v3778
        %4803 = vst [vmem:[%s135 + $0x11c8] sm:$0xff] %v3779
        %4804 = vst [vmem:[%s135 + $0x11d0] sm:$0xff] %v3780
        %4805 = vst [vmem:[%s135 + $0x11d8] sm:$0xff] %v3781
        %4806 = vst [vmem:[%s135 + $0x11e0] sm:$0xff] %v3782
        %4807 = vst [vmem:[%s135 + $0x11e8] sm:$0xff] %v3783
        %4808 = vst [vmem:[%s135 + $0x11f0] sm:$0xff] %v3784
        %4809 = vst [vmem:[%s135 + $0x11f8] sm:$0xff] %v3785
        %4810 = vst [vmem:[%s135 + $0x1200] sm:$0xff] %v3786
        %4811 = vst [vmem:[%s135 + $0x1208] sm:$0xff] %v3787
        %4812 = vst [vmem:[%s135 + $0x1210] sm:$0xff] %v3788
        %4813 = vst [vmem:[%s135 + $0x1218] sm:$0xff] %v3789
        %4814 = vst [vmem:[%s135 + $0x1220] sm:$0xff] %v3790
        %4815 = vst [vmem:[%s135 + $0x1228] sm:$0xff] %v3791
        %4816 = vst [vmem:[%s135 + $0x1230] sm:$0xff] %v3792
        %4817 = vst [vmem:[%s135 + $0x1238] sm:$0xff] %v3793
        %4818 = vst [vmem:[%s135 + $0x1240] sm:$0xff] %v3794
        %4819 = vst [vmem:[%s135 + $0x1248] sm:$0xff] %v3795
        %4820 = vst [vmem:[%s135 + $0x1250] sm:$0xff] %v3796
        %4821 = vst [vmem:[%s135 + $0x1258] sm:$0xff] %v3797
        %4822 = vst [vmem:[%s135 + $0x1260] sm:$0xff] %v3798
        %4823 = vst [vmem:[%s135 + $0x1268] sm:$0xff] %v3799
        %4824 = vst [vmem:[%s135 + $0x1270] sm:$0xff] %v3800
        %4825 = vst [vmem:[%s135 + $0x1278] sm:$0xff] %v3801
        %4826 = vst [vmem:[%s135 + $0x1280] sm:$0xff] %v3802
        %4827 = vst [vmem:[%s135 + $0x1288] sm:$0xff] %v3803
        %4828 = vst [vmem:[%s135 + $0x1290] sm:$0xff] %v3804
        %4829 = vst [vmem:[%s135 + $0x1298] sm:$0xff] %v3805
        %4830 = vst [vmem:[%s135 + $0x12a0] sm:$0xff] %v3806
        %4831 = vst [vmem:[%s135 + $0x12a8] sm:$0xff] %v3807
        %4832 = vst [vmem:[%s135 + $0x12b0] sm:$0xff] %v3808
        %4833 = vst [vmem:[%s135 + $0x12b8] sm:$0xff] %v3809
        %4834 = vst [vmem:[%s135 + $0x12c0] sm:$0xff] %v3810
        %4835 = vst [vmem:[%s135 + $0x12c8] sm:$0xff] %v3811
        %4836 = vst [vmem:[%s135 + $0x12d0] sm:$0xff] %v3812
        %4837 = vst [vmem:[%s135 + $0x12d8] sm:$0xff] %v3813
        %4838 = vst [vmem:[%s135 + $0x12e0] sm:$0xff] %v3814
        %4839 = vst [vmem:[%s135 + $0x12e8] sm:$0xff] %v3815
        %4840 = vst [vmem:[%s135 + $0x12f0] sm:$0xff] %v3816
        %4841 = vst [vmem:[%s135 + $0x12f8] sm:$0xff] %v3817
        %4842 = vst [vmem:[%s135 + $0x1300] sm:$0xff] %v3818
        %4843 = vst [vmem:[%s135 + $0x1308] sm:$0xff] %v3819
        %4844 = vst [vmem:[%s135 + $0x1310] sm:$0xff] %v3820
        %4845 = vst [vmem:[%s135 + $0x1318] sm:$0xff] %v3821
        %4846 = vst [vmem:[%s135 + $0x1320] sm:$0xff] %v3822
        %4847 = vst [vmem:[%s135 + $0x1328] sm:$0xff] %v3823
        %4848 = vst [vmem:[%s135 + $0x1330] sm:$0xff] %v3824
        %4849 = vst [vmem:[%s135 + $0x1338] sm:$0xff] %v3825
        %4850 = vst [vmem:[%s135 + $0x1340] sm:$0xff] %v3826
        %4851 = vst [vmem:[%s135 + $0x1348] sm:$0xff] %v3827
        %4852 = vst [vmem:[%s135 + $0x1350] sm:$0xff] %v3828
        %4853 = vst [vmem:[%s135 + $0x1358] sm:$0xff] %v3829
        %4854 = vst [vmem:[%s135 + $0x1360] sm:$0xff] %v3830
        %4855 = vst [vmem:[%s135 + $0x1368] sm:$0xff] %v3831
        %4856 = vst [vmem:[%s135 + $0x1370] sm:$0xff] %v3832
        %4857 = vst [vmem:[%s135 + $0x1378] sm:$0xff] %v3833
        %4858 = vst [vmem:[%s135 + $0x1380] sm:$0xff] %v3834
        %4859 = vst [vmem:[%s135 + $0x1388] sm:$0xff] %v3835
        %4860 = vst [vmem:[%s135 + $0x1390] sm:$0xff] %v3836
        %4861 = vst [vmem:[%s135 + $0x1398] sm:$0xff] %v3837
        %4862 = vst [vmem:[%s135 + $0x13a0] sm:$0xff] %v3838
        %4863 = vst [vmem:[%s135 + $0x13a8] sm:$0xff] %v3839
        %4864 = vst [vmem:[%s135 + $0x13b0] sm:$0xff] %v3840
        %4865 = vst [vmem:[%s135 + $0x13b8] sm:$0xff] %v3841
        %4866 = vst [vmem:[%s135 + $0x13c0] sm:$0xff] %v3842
        %4867 = vst [vmem:[%s135 + $0x13c8] sm:$0xff] %v3843
        %4868 = vst [vmem:[%s135 + $0x13d0] sm:$0xff] %v3844
        %4869 = vst [vmem:[%s135 + $0x13d8] sm:$0xff] %v3845
        %4870 = vst [vmem:[%s135 + $0x13e0] sm:$0xff] %v3846
        %4871 = vst [vmem:[%s135 + $0x13e8] sm:$0xff] %v3847
        %4872 = vst [vmem:[%s135 + $0x13f0] sm:$0xff] %v3848
        %4873 = vst [vmem:[%s135 + $0x13f8] sm:$0xff] %v3849
        %4874 = vst [vmem:[%s135 + $0x1400] sm:$0xff] %v3850
        %4875 = vst [vmem:[%s135 + $0x1408] sm:$0xff] %v3851
        %4876 = vst [vmem:[%s135 + $0x1410] sm:$0xff] %v3852
        %4877 = vst [vmem:[%s135 + $0x1418] sm:$0xff] %v3853
        %4878 = vst [vmem:[%s135 + $0x1420] sm:$0xff] %v3854
        %4879 = vst [vmem:[%s135 + $0x1428] sm:$0xff] %v3855
        %4880 = vst [vmem:[%s135 + $0x1430] sm:$0xff] %v3856
        %4881 = vst [vmem:[%s135 + $0x1438] sm:$0xff] %v3857
        %4882 = vst [vmem:[%s135 + $0x1440] sm:$0xff] %v3858
        %4883 = vst [vmem:[%s135 + $0x1448] sm:$0xff] %v3859
        %4884 = vst [vmem:[%s135 + $0x1450] sm:$0xff] %v3860
        %4885 = vst [vmem:[%s135 + $0x1458] sm:$0xff] %v3861
        %4886 = vst [vmem:[%s135 + $0x1460] sm:$0xff] %v3862
        %4887 = vst [vmem:[%s135 + $0x1468] sm:$0xff] %v3863
        %4888 = vst [vmem:[%s135 + $0x1470] sm:$0xff] %v3864
        %4889 = vst [vmem:[%s135 + $0x1478] sm:$0xff] %v3865
        %4890 = vst [vmem:[%s135 + $0x1480] sm:$0xff] %v3866
        %4891 = vst [vmem:[%s135 + $0x1488] sm:$0xff] %v3867
        %4892 = vst [vmem:[%s135 + $0x1490] sm:$0xff] %v3868
        %4893 = vst [vmem:[%s135 + $0x1498] sm:$0xff] %v3869
        %4894 = vst [vmem:[%s135 + $0x14a0] sm:$0xff] %v3870
        %4895 = vst [vmem:[%s135 + $0x14a8] sm:$0xff] %v3871
        %4896 = vst [vmem:[%s135 + $0x14b0] sm:$0xff] %v3872
        %4897 = vst [vmem:[%s135 + $0x14b8] sm:$0xff] %v3873
        %4898 = vst [vmem:[%s135 + $0x14c0] sm:$0xff] %v3874
        %4899 = vst [vmem:[%s135 + $0x14c8] sm:$0xff] %v3875
        %4900 = vst [vmem:[%s135 + $0x14d0] sm:$0xff] %v3876
        %4901 = vst [vmem:[%s135 + $0x14d8] sm:$0xff] %v3877
        %4902 = vst [vmem:[%s135 + $0x14e0] sm:$0xff] %v3878
        %4903 = vst [vmem:[%s135 + $0x14e8] sm:$0xff] %v3879
        %4904 = vst [vmem:[%s135 + $0x14f0] sm:$0xff] %v3880
        %4905 = vst [vmem:[%s135 + $0x14f8] sm:$0xff] %v3881
        %4906 = vst [vmem:[%s135 + $0x1500] sm:$0xff] %v3882
        %4907 = vst [vmem:[%s135 + $0x1508] sm:$0xff] %v3883
        %4908 = vst [vmem:[%s135 + $0x1510] sm:$0xff] %v3884
        %4909 = vst [vmem:[%s135 + $0x1518] sm:$0xff] %v3885
        %4910 = vst [vmem:[%s135 + $0x1520] sm:$0xff] %v3886
        %4911 = vst [vmem:[%s135 + $0x1528] sm:$0xff] %v3887
        %4912 = vst [vmem:[%s135 + $0x1530] sm:$0xff] %v3888
        %4913 = vst [vmem:[%s135 + $0x1538] sm:$0xff] %v3889
        %4914 = vst [vmem:[%s135 + $0x1540] sm:$0xff] %v3890
        %4915 = vst [vmem:[%s135 + $0x1548] sm:$0xff] %v3891
        %4916 = vst [vmem:[%s135 + $0x1550] sm:$0xff] %v3892
        %4917 = vst [vmem:[%s135 + $0x1558] sm:$0xff] %v3893
        %4918 = vst [vmem:[%s135 + $0x1560] sm:$0xff] %v3894
        %4919 = vst [vmem:[%s135 + $0x1568] sm:$0xff] %v3895
        %4920 = vst [vmem:[%s135 + $0x1570] sm:$0xff] %v3896
        %4921 = vst [vmem:[%s135 + $0x1578] sm:$0xff] %v3897
        %4922 = vst [vmem:[%s135 + $0x1580] sm:$0xff] %v3898
        %4923 = vst [vmem:[%s135 + $0x1588] sm:$0xff] %v3899
        %4924 = vst [vmem:[%s135 + $0x1590] sm:$0xff] %v3900
        %4925 = vst [vmem:[%s135 + $0x1598] sm:$0xff] %v3901
        %4926 = vst [vmem:[%s135 + $0x15a0] sm:$0xff] %v3902
        %4927 = vst [vmem:[%s135 + $0x15a8] sm:$0xff] %v3903
        %4928 = vst [vmem:[%s135 + $0x15b0] sm:$0xff] %v3904
        %4929 = vst [vmem:[%s135 + $0x15b8] sm:$0xff] %v3905
        %4930 = vst [vmem:[%s135 + $0x15c0] sm:$0xff] %v3906
        %4931 = vst [vmem:[%s135 + $0x15c8] sm:$0xff] %v3907
        %4932 = vst [vmem:[%s135 + $0x15d0] sm:$0xff] %v3908
        %4933 = vst [vmem:[%s135 + $0x15d8] sm:$0xff] %v3909
        %4934 = vst [vmem:[%s135 + $0x15e0] sm:$0xff] %v3910
        %4935 = vst [vmem:[%s135 + $0x15e8] sm:$0xff] %v3911
        %4936 = vst [vmem:[%s135 + $0x15f0] sm:$0xff] %v3912
        %4937 = vst [vmem:[%s135 + $0x15f8] sm:$0xff] %v3913
        %4938 = vst [vmem:[%s135 + $0x1600] sm:$0xff] %v3914
        %4939 = vst [vmem:[%s135 + $0x1608] sm:$0xff] %v3915
        %4940 = vst [vmem:[%s135 + $0x1610] sm:$0xff] %v3916
        %4941 = vst [vmem:[%s135 + $0x1618] sm:$0xff] %v3917
        %4942 = vst [vmem:[%s135 + $0x1620] sm:$0xff] %v3918
        %4943 = vst [vmem:[%s135 + $0x1628] sm:$0xff] %v3919
        %4944 = vst [vmem:[%s135 + $0x1630] sm:$0xff] %v3920
        %4945 = vst [vmem:[%s135 + $0x1638] sm:$0xff] %v3921
        %4946 = vst [vmem:[%s135 + $0x1640] sm:$0xff] %v3922
        %4947 = vst [vmem:[%s135 + $0x1648] sm:$0xff] %v3923
        %4948 = vst [vmem:[%s135 + $0x1650] sm:$0xff] %v3924
        %4949 = vst [vmem:[%s135 + $0x1658] sm:$0xff] %v3925
        %4950 = vst [vmem:[%s135 + $0x1660] sm:$0xff] %v3926
        %4951 = vst [vmem:[%s135 + $0x1668] sm:$0xff] %v3927
        %4952 = vst [vmem:[%s135 + $0x1670] sm:$0xff] %v3928
        %4953 = vst [vmem:[%s135 + $0x1678] sm:$0xff] %v3929
        %4954 = vst [vmem:[%s135 + $0x1680] sm:$0xff] %v3930
        %4955 = vst [vmem:[%s135 + $0x1688] sm:$0xff] %v3931
        %4956 = vst [vmem:[%s135 + $0x1690] sm:$0xff] %v3932
        %4957 = vst [vmem:[%s135 + $0x1698] sm:$0xff] %v3933
        %4958 = vst [vmem:[%s135 + $0x16a0] sm:$0xff] %v3934
        %4959 = vst [vmem:[%s135 + $0x16a8] sm:$0xff] %v3935
        %4960 = vst [vmem:[%s135 + $0x16b0] sm:$0xff] %v3936
        %4961 = vst [vmem:[%s135 + $0x16b8] sm:$0xff] %v3937
        %4962 = vst [vmem:[%s135 + $0x16c0] sm:$0xff] %v3938
        %4963 = vst [vmem:[%s135 + $0x16c8] sm:$0xff] %v3939
        %4964 = vst [vmem:[%s135 + $0x16d0] sm:$0xff] %v3940
        %4965 = vst [vmem:[%s135 + $0x16d8] sm:$0xff] %v3941
        %4966 = vst [vmem:[%s135 + $0x16e0] sm:$0xff] %v3942
        %4967 = vst [vmem:[%s135 + $0x16e8] sm:$0xff] %v3943
        %4968 = vst [vmem:[%s135 + $0x16f0] sm:$0xff] %v3944
        %4969 = vst [vmem:[%s135 + $0x16f8] sm:$0xff] %v3945
        %4970 = vst [vmem:[%s135 + $0x1700] sm:$0xff] %v3946
        %4971 = vst [vmem:[%s135 + $0x1708] sm:$0xff] %v3947
        %4972 = vst [vmem:[%s135 + $0x1710] sm:$0xff] %v3948
        %4973 = vst [vmem:[%s135 + $0x1718] sm:$0xff] %v3949
        %4974 = vst [vmem:[%s135 + $0x1720] sm:$0xff] %v3950
        %4975 = vst [vmem:[%s135 + $0x1728] sm:$0xff] %v3951
        %4976 = vst [vmem:[%s135 + $0x1730] sm:$0xff] %v3952
        %4977 = vst [vmem:[%s135 + $0x1738] sm:$0xff] %v3953
        %4978 = vst [vmem:[%s135 + $0x1740] sm:$0xff] %v3954
        %4979 = vst [vmem:[%s135 + $0x1748] sm:$0xff] %v3955
        %4980 = vst [vmem:[%s135 + $0x1750] sm:$0xff] %v3956
        %4981 = vst [vmem:[%s135 + $0x1758] sm:$0xff] %v3957
        %4982 = vst [vmem:[%s135 + $0x1760] sm:$0xff] %v3958
        %4983 = vst [vmem:[%s135 + $0x1768] sm:$0xff] %v3959
        %4984 = vst [vmem:[%s135 + $0x1770] sm:$0xff] %v3960
        %4985 = vst [vmem:[%s135 + $0x1778] sm:$0xff] %v3961
        %4986 = vst [vmem:[%s135 + $0x1780] sm:$0xff] %v3962
        %4987 = vst [vmem:[%s135 + $0x1788] sm:$0xff] %v3963
        %4988 = vst [vmem:[%s135 + $0x1790] sm:$0xff] %v3964
        %4989 = vst [vmem:[%s135 + $0x1798] sm:$0xff] %v3965
        %4990 = vst [vmem:[%s135 + $0x17a0] sm:$0xff] %v3966
        %4991 = vst [vmem:[%s135 + $0x17a8] sm:$0xff] %v3967
        %4992 = vst [vmem:[%s135 + $0x17b0] sm:$0xff] %v3968
        %4993 = vst [vmem:[%s135 + $0x17b8] sm:$0xff] %v3969
        %4994 = vst [vmem:[%s135 + $0x17c0] sm:$0xff] %v3970
        %4995 = vst [vmem:[%s135 + $0x17c8] sm:$0xff] %v3971
        %4996 = vst [vmem:[%s135 + $0x17d0] sm:$0xff] %v3972
        %4997 = vst [vmem:[%s135 + $0x17d8] sm:$0xff] %v3973
        %4998 = vst [vmem:[%s135 + $0x17e0] sm:$0xff] %v3974
        %4999 = vst [vmem:[%s135 + $0x17e8] sm:$0xff] %v3975
        %5000 = vst [vmem:[%s135 + $0x17f0] sm:$0xff] %v3976
        %5001 = vst [vmem:[%s135 + $0x17f8] sm:$0xff] %v3977
        %5002 = vst [vmem:[%s135 + $0x1800] sm:$0xff] %v3978
        %5003 = vst [vmem:[%s135 + $0x1808] sm:$0xff] %v3979
        %5004 = vst [vmem:[%s135 + $0x1810] sm:$0xff] %v3980
        %5005 = vst [vmem:[%s135 + $0x1818] sm:$0xff] %v3981
        %5006 = vst [vmem:[%s135 + $0x1820] sm:$0xff] %v3982
        %5007 = vst [vmem:[%s135 + $0x1828] sm:$0xff] %v3983
        %5008 = vst [vmem:[%s135 + $0x1830] sm:$0xff] %v3984
        %5009 = vst [vmem:[%s135 + $0x1838] sm:$0xff] %v3985
        %5010 = vst [vmem:[%s135 + $0x1840] sm:$0xff] %v3986
        %5011 = vst [vmem:[%s135 + $0x1848] sm:$0xff] %v3987
        %5012 = vst [vmem:[%s135 + $0x1850] sm:$0xff] %v3988
        %5013 = vst [vmem:[%s135 + $0x1858] sm:$0xff] %v3989
        %5014 = vst [vmem:[%s135 + $0x1860] sm:$0xff] %v3990
        %5015 = vst [vmem:[%s135 + $0x1868] sm:$0xff] %v3991
        %5016 = vst [vmem:[%s135 + $0x1870] sm:$0xff] %v3992
        %5017 = vst [vmem:[%s135 + $0x1878] sm:$0xff] %v3993
        %5018 = vst [vmem:[%s135 + $0x1880] sm:$0xff] %v3994
        %5019 = vst [vmem:[%s135 + $0x1888] sm:$0xff] %v3995
        %5020 = vst [vmem:[%s135 + $0x1890] sm:$0xff] %v3996
        %5021 = vst [vmem:[%s135 + $0x1898] sm:$0xff] %v3997
        %5022 = vst [vmem:[%s135 + $0x18a0] sm:$0xff] %v3998
        %5023 = vst [vmem:[%s135 + $0x18a8] sm:$0xff] %v3999
        %5024 = vst [vmem:[%s135 + $0x18b0] sm:$0xff] %v4000
        %5025 = vst [vmem:[%s135 + $0x18b8] sm:$0xff] %v4001
        %5026 = vst [vmem:[%s135 + $0x18c0] sm:$0xff] %v4002
        %5027 = vst [vmem:[%s135 + $0x18c8] sm:$0xff] %v4003
        %5028 = vst [vmem:[%s135 + $0x18d0] sm:$0xff] %v4004
        %5029 = vst [vmem:[%s135 + $0x18d8] sm:$0xff] %v4005
        %5030 = vst [vmem:[%s135 + $0x18e0] sm:$0xff] %v4006
        %5031 = vst [vmem:[%s135 + $0x18e8] sm:$0xff] %v4007
        %5032 = vst [vmem:[%s135 + $0x18f0] sm:$0xff] %v4008
        %5033 = vst [vmem:[%s135 + $0x18f8] sm:$0xff] %v4009
        %5034 = vst [vmem:[%s135 + $0x1900] sm:$0xff] %v4010
        %5035 = vst [vmem:[%s135 + $0x1908] sm:$0xff] %v4011
        %5036 = vst [vmem:[%s135 + $0x1910] sm:$0xff] %v4012
        %5037 = vst [vmem:[%s135 + $0x1918] sm:$0xff] %v4013
        %5038 = vst [vmem:[%s135 + $0x1920] sm:$0xff] %v4014
        %5039 = vst [vmem:[%s135 + $0x1928] sm:$0xff] %v4015
        %5040 = vst [vmem:[%s135 + $0x1930] sm:$0xff] %v4016
        %5041 = vst [vmem:[%s135 + $0x1938] sm:$0xff] %v4017
        %5042 = vst [vmem:[%s135 + $0x1940] sm:$0xff] %v4018
        %5043 = vst [vmem:[%s135 + $0x1948] sm:$0xff] %v4019
        %5044 = vst [vmem:[%s135 + $0x1950] sm:$0xff] %v4020
        %5045 = vst [vmem:[%s135 + $0x1958] sm:$0xff] %v4021
        %5046 = vst [vmem:[%s135 + $0x1960] sm:$0xff] %v4022
        %5047 = vst [vmem:[%s135 + $0x1968] sm:$0xff] %v4023
        %5048 = vst [vmem:[%s135 + $0x1970] sm:$0xff] %v4024
        %5049 = vst [vmem:[%s135 + $0x1978] sm:$0xff] %v4025
        %5050 = vst [vmem:[%s135 + $0x1980] sm:$0xff] %v4026
        %5051 = vst [vmem:[%s135 + $0x1988] sm:$0xff] %v4027
        %5052 = vst [vmem:[%s135 + $0x1990] sm:$0xff] %v4028
        %5053 = vst [vmem:[%s135 + $0x1998] sm:$0xff] %v4029
        %5054 = vst [vmem:[%s135 + $0x19a0] sm:$0xff] %v4030
        %5055 = vst [vmem:[%s135 + $0x19a8] sm:$0xff] %v4031
        %5056 = vst [vmem:[%s135 + $0x19b0] sm:$0xff] %v4032
        %5057 = vst [vmem:[%s135 + $0x19b8] sm:$0xff] %v4033
        %5058 = vst [vmem:[%s135 + $0x19c0] sm:$0xff] %v4034
        %5059 = vst [vmem:[%s135 + $0x19c8] sm:$0xff] %v4035
        %5060 = vst [vmem:[%s135 + $0x19d0] sm:$0xff] %v4036
        %5061 = vst [vmem:[%s135 + $0x19d8] sm:$0xff] %v4037
        %5062 = vst [vmem:[%s135 + $0x19e0] sm:$0xff] %v4038
        %5063 = vst [vmem:[%s135 + $0x19e8] sm:$0xff] %v4039
        %5064 = vst [vmem:[%s135 + $0x19f0] sm:$0xff] %v4040
        %5065 = vst [vmem:[%s135 + $0x19f8] sm:$0xff] %v4041
        %5066 = vst [vmem:[%s135 + $0x1a00] sm:$0xff] %v4042
        %5067 = vst [vmem:[%s135 + $0x1a08] sm:$0xff] %v4043
        %5068 = vst [vmem:[%s135 + $0x1a10] sm:$0xff] %v4044
        %5069 = vst [vmem:[%s135 + $0x1a18] sm:$0xff] %v4045
        %5070 = vst [vmem:[%s135 + $0x1a20] sm:$0xff] %v4046
        %5071 = vst [vmem:[%s135 + $0x1a28] sm:$0xff] %v4047
        %5072 = vst [vmem:[%s135 + $0x1a30] sm:$0xff] %v4048
        %5073 = vst [vmem:[%s135 + $0x1a38] sm:$0xff] %v4049
        %5074 = vst [vmem:[%s135 + $0x1a40] sm:$0xff] %v4050
        %5075 = vst [vmem:[%s135 + $0x1a48] sm:$0xff] %v4051
        %5076 = vst [vmem:[%s135 + $0x1a50] sm:$0xff] %v4052
        %5077 = vst [vmem:[%s135 + $0x1a58] sm:$0xff] %v4053
        %5078 = vst [vmem:[%s135 + $0x1a60] sm:$0xff] %v4054
        %5079 = vst [vmem:[%s135 + $0x1a68] sm:$0xff] %v4055
        %5080 = vst [vmem:[%s135 + $0x1a70] sm:$0xff] %v4056
        %5081 = vst [vmem:[%s135 + $0x1a78] sm:$0xff] %v4057
        %5082 = vst [vmem:[%s135 + $0x1a80] sm:$0xff] %v4058
        %5083 = vst [vmem:[%s135 + $0x1a88] sm:$0xff] %v4059
        %5084 = vst [vmem:[%s135 + $0x1a90] sm:$0xff] %v4060
        %5085 = vst [vmem:[%s135 + $0x1a98] sm:$0xff] %v4061
        %5086 = vst [vmem:[%s135 + $0x1aa0] sm:$0xff] %v4062
        %5087 = vst [vmem:[%s135 + $0x1aa8] sm:$0xff] %v4063
        %5088 = vst [vmem:[%s135 + $0x1ab0] sm:$0xff] %v4064
        %5089 = vst [vmem:[%s135 + $0x1ab8] sm:$0xff] %v4065
        %5090 = vst [vmem:[%s135 + $0x1ac0] sm:$0xff] %v4066
        %5091 = vst [vmem:[%s135 + $0x1ac8] sm:$0xff] %v4067
        %5092 = vst [vmem:[%s135 + $0x1ad0] sm:$0xff] %v4068
        %5093 = vst [vmem:[%s135 + $0x1ad8] sm:$0xff] %v4069
        %5094 = vst [vmem:[%s135 + $0x1ae0] sm:$0xff] %v4070
        %5095 = vst [vmem:[%s135 + $0x1ae8] sm:$0xff] %v4071
        %5096 = vst [vmem:[%s135 + $0x1af0] sm:$0xff] %v4072
        %5097 = vst [vmem:[%s135 + $0x1af8] sm:$0xff] %v4073
        %5098 = vst [vmem:[%s135 + $0x1b00] sm:$0xff] %v4074
        %5099 = vst [vmem:[%s135 + $0x1b08] sm:$0xff] %v4075
        %5100 = vst [vmem:[%s135 + $0x1b10] sm:$0xff] %v4076
        %5101 = vst [vmem:[%s135 + $0x1b18] sm:$0xff] %v4077
        %5102 = vst [vmem:[%s135 + $0x1b20] sm:$0xff] %v4078
        %5103 = vst [vmem:[%s135 + $0x1b28] sm:$0xff] %v4079
        %5104 = vst [vmem:[%s135 + $0x1b30] sm:$0xff] %v4080
        %5105 = vst [vmem:[%s135 + $0x1b38] sm:$0xff] %v4081
        %5106 = vst [vmem:[%s135 + $0x1b40] sm:$0xff] %v4082
        %5107 = vst [vmem:[%s135 + $0x1b48] sm:$0xff] %v4083
        %5108 = vst [vmem:[%s135 + $0x1b50] sm:$0xff] %v4084
        %5109 = vst [vmem:[%s135 + $0x1b58] sm:$0xff] %v4085
        %5110 = vst [vmem:[%s135 + $0x1b60] sm:$0xff] %v4086
        %5111 = vst [vmem:[%s135 + $0x1b68] sm:$0xff] %v4087
        %5112 = vst [vmem:[%s135 + $0x1b70] sm:$0xff] %v4088
        %5113 = vst [vmem:[%s135 + $0x1b78] sm:$0xff] %v4089
        %5114 = vst [vmem:[%s135 + $0x1b80] sm:$0xff] %v4090
        %5115 = vst [vmem:[%s135 + $0x1b88] sm:$0xff] %v4091
        %5116 = vst [vmem:[%s135 + $0x1b90] sm:$0xff] %v4092
        %5117 = vst [vmem:[%s135 + $0x1b98] sm:$0xff] %v4093
        %5118 = vst [vmem:[%s135 + $0x1ba0] sm:$0xff] %v4094
        %5119 = vst [vmem:[%s135 + $0x1ba8] sm:$0xff] %v4095
        %5120 = vst [vmem:[%s135 + $0x1bb0] sm:$0xff] %v4096
        %5121 = vst [vmem:[%s135 + $0x1bb8] sm:$0xff] %v4097
        %5122 = vst [vmem:[%s135 + $0x1bc0] sm:$0xff] %v4098
        %5123 = vst [vmem:[%s135 + $0x1bc8] sm:$0xff] %v4099
        %5124 = vst [vmem:[%s135 + $0x1bd0] sm:$0xff] %v4100
        %5125 = vst [vmem:[%s135 + $0x1bd8] sm:$0xff] %v4101
        %5126 = vst [vmem:[%s135 + $0x1be0] sm:$0xff] %v4102
        %5127 = vst [vmem:[%s135 + $0x1be8] sm:$0xff] %v4103
        %5128 = vst [vmem:[%s135 + $0x1bf0] sm:$0xff] %v4104
        %5129 = vst [vmem:[%s135 + $0x1bf8] sm:$0xff] %v4105
        %5130 = vst [vmem:[%s135 + $0x1c00] sm:$0xff] %v4106
        %5131 = vst [vmem:[%s135 + $0x1c08] sm:$0xff] %v4107
        %5132 = vst [vmem:[%s135 + $0x1c10] sm:$0xff] %v4108
        %5133 = vst [vmem:[%s135 + $0x1c18] sm:$0xff] %v4109
        %5134 = vst [vmem:[%s135 + $0x1c20] sm:$0xff] %v4110
        %5135 = vst [vmem:[%s135 + $0x1c28] sm:$0xff] %v4111
        %5136 = vst [vmem:[%s135 + $0x1c30] sm:$0xff] %v4112
        %5137 = vst [vmem:[%s135 + $0x1c38] sm:$0xff] %v4113
        %5138 = vst [vmem:[%s135 + $0x1c40] sm:$0xff] %v4114
        %5139 = vst [vmem:[%s135 + $0x1c48] sm:$0xff] %v4115
        %5140 = vst [vmem:[%s135 + $0x1c50] sm:$0xff] %v4116
        %5141 = vst [vmem:[%s135 + $0x1c58] sm:$0xff] %v4117
        %5142 = vst [vmem:[%s135 + $0x1c60] sm:$0xff] %v4118
        %5143 = vst [vmem:[%s135 + $0x1c68] sm:$0xff] %v4119
        %5144 = vst [vmem:[%s135 + $0x1c70] sm:$0xff] %v4120
        %5145 = vst [vmem:[%s135 + $0x1c78] sm:$0xff] %v4121
        %5146 = vst [vmem:[%s135 + $0x1c80] sm:$0xff] %v4122
        %5147 = vst [vmem:[%s135 + $0x1c88] sm:$0xff] %v4123
        %5148 = vst [vmem:[%s135 + $0x1c90] sm:$0xff] %v4124
        %5149 = vst [vmem:[%s135 + $0x1c98] sm:$0xff] %v4125
        %5150 = vst [vmem:[%s135 + $0x1ca0] sm:$0xff] %v4126
        %5151 = vst [vmem:[%s135 + $0x1ca8] sm:$0xff] %v4127
        %5152 = vst [vmem:[%s135 + $0x1cb0] sm:$0xff] %v4128
        %5153 = vst [vmem:[%s135 + $0x1cb8] sm:$0xff] %v4129
        %5154 = vst [vmem:[%s135 + $0x1cc0] sm:$0xff] %v4130
        %5155 = vst [vmem:[%s135 + $0x1cc8] sm:$0xff] %v4131
        %5156 = vst [vmem:[%s135 + $0x1cd0] sm:$0xff] %v4132
        %5157 = vst [vmem:[%s135 + $0x1cd8] sm:$0xff] %v4133
        %5158 = vst [vmem:[%s135 + $0x1ce0] sm:$0xff] %v4134
        %5159 = vst [vmem:[%s135 + $0x1ce8] sm:$0xff] %v4135
        %5160 = vst [vmem:[%s135 + $0x1cf0] sm:$0xff] %v4136
        %5161 = vst [vmem:[%s135 + $0x1cf8] sm:$0xff] %v4137
        %5162 = vst [vmem:[%s135 + $0x1d00] sm:$0xff] %v4138
        %5163 = vst [vmem:[%s135 + $0x1d08] sm:$0xff] %v4139
        %5164 = vst [vmem:[%s135 + $0x1d10] sm:$0xff] %v4140
        %5165 = vst [vmem:[%s135 + $0x1d18] sm:$0xff] %v4141
        %5166 = vst [vmem:[%s135 + $0x1d20] sm:$0xff] %v4142
        %5167 = vst [vmem:[%s135 + $0x1d28] sm:$0xff] %v4143
        %5168 = vst [vmem:[%s135 + $0x1d30] sm:$0xff] %v4144
        %5169 = vst [vmem:[%s135 + $0x1d38] sm:$0xff] %v4145
        %5170 = vst [vmem:[%s135 + $0x1d40] sm:$0xff] %v4146
        %5171 = vst [vmem:[%s135 + $0x1d48] sm:$0xff] %v4147
        %5172 = vst [vmem:[%s135 + $0x1d50] sm:$0xff] %v4148
        %5173 = vst [vmem:[%s135 + $0x1d58] sm:$0xff] %v4149
        %5174 = vst [vmem:[%s135 + $0x1d60] sm:$0xff] %v4150
        %5175 = vst [vmem:[%s135 + $0x1d68] sm:$0xff] %v4151
        %5176 = vst [vmem:[%s135 + $0x1d70] sm:$0xff] %v4152
        %5177 = vst [vmem:[%s135 + $0x1d78] sm:$0xff] %v4153
        %5178 = vst [vmem:[%s135 + $0x1d80] sm:$0xff] %v4154
        %5179 = vst [vmem:[%s135 + $0x1d88] sm:$0xff] %v4155
        %5180 = vst [vmem:[%s135 + $0x1d90] sm:$0xff] %v4156
        %5181 = vst [vmem:[%s135 + $0x1d98] sm:$0xff] %v4157
        %5182 = vst [vmem:[%s135 + $0x1da0] sm:$0xff] %v4158
        %5183 = vst [vmem:[%s135 + $0x1da8] sm:$0xff] %v4159
        %5184 = vst [vmem:[%s135 + $0x1db0] sm:$0xff] %v4160
        %5185 = vst [vmem:[%s135 + $0x1db8] sm:$0xff] %v4161
        %5186 = vst [vmem:[%s135 + $0x1dc0] sm:$0xff] %v4162
        %5187 = vst [vmem:[%s135 + $0x1dc8] sm:$0xff] %v4163
        %5188 = vst [vmem:[%s135 + $0x1dd0] sm:$0xff] %v4164
        %5189 = vst [vmem:[%s135 + $0x1dd8] sm:$0xff] %v4165
        %5190 = vst [vmem:[%s135 + $0x1de0] sm:$0xff] %v4166
        %5191 = vst [vmem:[%s135 + $0x1de8] sm:$0xff] %v4167
        %5192 = vst [vmem:[%s135 + $0x1df0] sm:$0xff] %v4168
        %5193 = vst [vmem:[%s135 + $0x1df8] sm:$0xff] %v4169
        %5194 = vst [vmem:[%s135 + $0x1e00] sm:$0xff] %v4170
        %5195 = vst [vmem:[%s135 + $0x1e08] sm:$0xff] %v4171
        %5196 = vst [vmem:[%s135 + $0x1e10] sm:$0xff] %v4172
        %5197 = vst [vmem:[%s135 + $0x1e18] sm:$0xff] %v4173
        %5198 = vst [vmem:[%s135 + $0x1e20] sm:$0xff] %v4174
        %5199 = vst [vmem:[%s135 + $0x1e28] sm:$0xff] %v4175
        %5200 = vst [vmem:[%s135 + $0x1e30] sm:$0xff] %v4176
        %5201 = vst [vmem:[%s135 + $0x1e38] sm:$0xff] %v4177
        %5202 = vst [vmem:[%s135 + $0x1e40] sm:$0xff] %v4178
        %5203 = vst [vmem:[%s135 + $0x1e48] sm:$0xff] %v4179
        %5204 = vst [vmem:[%s135 + $0x1e50] sm:$0xff] %v4180
        %5205 = vst [vmem:[%s135 + $0x1e58] sm:$0xff] %v4181
        %5206 = vst [vmem:[%s135 + $0x1e60] sm:$0xff] %v4182
        %5207 = vst [vmem:[%s135 + $0x1e68] sm:$0xff] %v4183
        %5208 = vst [vmem:[%s135 + $0x1e70] sm:$0xff] %v4184
        %5209 = vst [vmem:[%s135 + $0x1e78] sm:$0xff] %v4185
        %5210 = vst [vmem:[%s135 + $0x1e80] sm:$0xff] %v4186
        %5211 = vst [vmem:[%s135 + $0x1e88] sm:$0xff] %v4187
        %5212 = vst [vmem:[%s135 + $0x1e90] sm:$0xff] %v4188
        %5213 = vst [vmem:[%s135 + $0x1e98] sm:$0xff] %v4189
        %5214 = vst [vmem:[%s135 + $0x1ea0] sm:$0xff] %v4190
        %5215 = vst [vmem:[%s135 + $0x1ea8] sm:$0xff] %v4191
        %5216 = vst [vmem:[%s135 + $0x1eb0] sm:$0xff] %v4192
        %5217 = vst [vmem:[%s135 + $0x1eb8] sm:$0xff] %v4193
        %5218 = vst [vmem:[%s135 + $0x1ec0] sm:$0xff] %v4194
        %5219 = vst [vmem:[%s135 + $0x1ec8] sm:$0xff] %v4195
        %5220 = vst [vmem:[%s135 + $0x1ed0] sm:$0xff] %v4196
        %5221 = vst [vmem:[%s135 + $0x1ed8] sm:$0xff] %v4197
        %5222 = vst [vmem:[%s135 + $0x1ee0] sm:$0xff] %v4198
        %5223 = vst [vmem:[%s135 + $0x1ee8] sm:$0xff] %v4199
        %5224 = vst [vmem:[%s135 + $0x1ef0] sm:$0xff] %v4200
        %5225 = vst [vmem:[%s135 + $0x1ef8] sm:$0xff] %v4201
        %5226 = vst [vmem:[%s135 + $0x1f00] sm:$0xff] %v4202
        %5227 = vst [vmem:[%s135 + $0x1f08] sm:$0xff] %v4203
        %5228 = vst [vmem:[%s135 + $0x1f10] sm:$0xff] %v4204
        %5229 = vst [vmem:[%s135 + $0x1f18] sm:$0xff] %v4205
        %5230 = vst [vmem:[%s135 + $0x1f20] sm:$0xff] %v4206
        %5231 = vst [vmem:[%s135 + $0x1f28] sm:$0xff] %v4207
        %5232 = vst [vmem:[%s135 + $0x1f30] sm:$0xff] %v4208
        %5233 = vst [vmem:[%s135 + $0x1f38] sm:$0xff] %v4209
        %5234 = vst [vmem:[%s135 + $0x1f40] sm:$0xff] %v4210
        %5235 = vst [vmem:[%s135 + $0x1f48] sm:$0xff] %v4211
        %5236 = vst [vmem:[%s135 + $0x1f50] sm:$0xff] %v4212
        %5237 = vst [vmem:[%s135 + $0x1f58] sm:$0xff] %v4213
        %5238 = vst [vmem:[%s135 + $0x1f60] sm:$0xff] %v4214
        %5239 = vst [vmem:[%s135 + $0x1f68] sm:$0xff] %v4215
        %5240 = vst [vmem:[%s135 + $0x1f70] sm:$0xff] %v4216
        %5241 = vst [vmem:[%s135 + $0x1f78] sm:$0xff] %v4217
        %5242 = vst [vmem:[%s135 + $0x1f80] sm:$0xff] %v4218
        %5243 = vst [vmem:[%s135 + $0x1f88] sm:$0xff] %v4219
        %5244 = vst [vmem:[%s135 + $0x1f90] sm:$0xff] %v4220
        %5245 = vst [vmem:[%s135 + $0x1f98] sm:$0xff] %v4221
        %5246 = vst [vmem:[%s135 + $0x1fa0] sm:$0xff] %v4222
        %5247 = vst [vmem:[%s135 + $0x1fa8] sm:$0xff] %v4223
        %5248 = vst [vmem:[%s135 + $0x1fb0] sm:$0xff] %v4224
        %5249 = vst [vmem:[%s135 + $0x1fb8] sm:$0xff] %v4225
        %5250 = vst [vmem:[%s135 + $0x1fc0] sm:$0xff] %v4226
        %5251 = vst [vmem:[%s135 + $0x1fc8] sm:$0xff] %v4227
        %5252 = vst [vmem:[%s135 + $0x1fd0] sm:$0xff] %v4228
        %5253 = vst [vmem:[%s135 + $0x1fd8] sm:$0xff] %v4229
        %5254 = vst [vmem:[%s135 + $0x1fe0] sm:$0xff] %v4230
        %5255 = vst [vmem:[%s135 + $0x1fe8] sm:$0xff] %v4231
        %5256 = vst [vmem:[%s135 + $0x1ff0] sm:$0xff] %v4232
        %5257 = vst [vmem:[%s135 + $0x1ff8] sm:$0xff] %v4233
        %s5258 = sand.u32 %s52, 1
        %s5259 = scalar_lea.sflag [#allocation4], %s5258
        %s5260 = sand.u32 %s52, 1
        %s5261 = smul.addr %s5260, 8192
        %s5262 = scalar_lea.vmem [#allocation5], %s5261
        // Predicated region
        $region29: #{tpu_custom_call.1} parent=23 // pred_check
          %p5263 = pneg %p62
        $region30: #{tpu_custom_call.1} parent=23 // pred_check_branch
          %5265 = sbr.rel (%p5263) target = $region32
        $region31: #{tpu_custom_call.1} parent=23 // pred_region
          %s5266 = smul.u32 128, %s18
          %s5268 = ssub.s32 131072, 131072
          %5269 = vsyncadd %s5259, %s5268
          %s5270 = smul.addr %s5266, 8
          %s5271 = smul.addr %s5270, 128
          %s5272 = scalar_lea.hbm %s1, %s5271
          %s5273 = sshll.u32 %s5262, 4
          %s5274 = int_to_ptr.vmem [resolvable:$true] %s5273
          %5279 = dma.vmem_to_hbm [thread:$0]  %s5274, 131072, %s5272, %s5259, 1024, 1024, 64
        $region32: #{tpu_custom_call.1} parent=23 // pred_fallthru
          _
      $region24: #{tpu_custom_call.1} parent=5 // pred_fallthru
        _
      %p5280 = scmp.le.s32.totalorder 2, %s13
      // Predicated region
      $region33: #{tpu_custom_call.1} parent=5 // pred_check
        %p5281 = pneg %p5280
      $region34: #{tpu_custom_call.1} parent=5 // pred_check_branch
        %5283 = sbr.rel (%p5281) target = $region36
      $region35: #{tpu_custom_call.1} parent=5 // pred_region
        %s5284 = ssub.s32 %s13, 2
        // Predicated region
        $region37: #{tpu_custom_call.1} parent=35 // pred_check
          %p5285 = pneg %p68
        $region38: #{tpu_custom_call.1} parent=35 // pred_check_branch
          %5287 = sbr.rel (%p5285) target = $region40
        $region39: #{tpu_custom_call.1} parent=35 // pred_region
          %s5288 = sand.u32 %s53, 1
          %s5289 = scalar_lea.sflag [#allocation4], %s5288
          %s5290 = sand.u32 %s53, 1
          %s5291 = smul.addr %s5290, 8192
          %s5292 = scalar_lea.vmem [#allocation5], %s5291
          %5293 = dma.done %s5289, 131072
        $region40: #{tpu_custom_call.1} parent=35 // pred_fallthru
          _
      $region36: #{tpu_custom_call.1} parent=5 // pred_fallthru
        _
    $region6: #{tpu_custom_call.1} parent=1 // loop_footer
      %s17 = sadd.s32 1, %s13
    $region7: #{tpu_custom_call.1} parent=1 // loop_footer_branch
      %12 = sbr.rel target = $region3
    $region8: #{tpu_custom_call.1} parent=1 // loop_exit
      _
    %5294 = vsyncpa [#allocation3], 1
    %s5295 = scalar_lea.sflag [#allocation3], 1
    %5296 = vsyncpa %s5295, 1
    %5297 = vsyncpa [#allocation4], 1
    %s5298 = scalar_lea.sflag [#allocation4], 1
    %5299 = vsyncpa %s5298, 1

</llo_original>
